<compile_context>
chip_gen: v5e
topology: v5e:2x2
jax: 0.10.0
libtpu: 0.0.40
codegen_flags: <defaults>
</compile_context>

<pallas_src>
import functools
import math

import jax
import jax.numpy as jnp
from jax import lax
from jax.experimental import pallas as pl
from jax.experimental.pallas import tpu as pltpu

# --------------------------------------------------------------------------
# Model dimensions (small synthetic config)
# --------------------------------------------------------------------------
B = 2          # batch
T = 8          # number of sign frames
C_IN = 16      # per-frame visual feature channels
D_VIS = 32     # vis_extractor output channels
D = 32         # transformer model dim
HEADS = 4      # attention heads
DH = D // HEADS
FF = 64        # feed-forward hidden dim
VOCAB = 16     # text vocabulary size
L = 6          # target sequence length
PAD_IDX = 1    # txt_vocab.stoi[PAD_TOKEN]
NEG_INF = -1e9

BT = B * T     # batch folded onto sublanes (encoder side)
BL = B * L     # batch folded onto sublanes (decoder side)
SLAB_W = 128   # lane-dense slab width


# --------------------------------------------------------------------------
# The fused whole-forward kernel (single grid step, whole-array VMEM blocks)
# --------------------------------------------------------------------------
def _fused_forward_kernel(sgn_ref, tok_ref, encb_ref, selfb_ref, crossb_ref,
                          w_ref, aux_ref, out_ref, *, w_off, a_off):
    # ---- static-slab accessors ------------------------------------------------
    def W(name, full=False):
        r0, nr, nc = w_off[name]
        return w_ref[r0:r0 + nr, :] if full else w_ref[r0:r0 + nr, :nc]

    def A(name, full=False):
        r0, nr, nc = a_off[name]
        return aux_ref[r0:r0 + nr, :] if full else aux_ref[r0:r0 + nr, :nc]

    def dense(x, wname, bname, relu=False):
        y = jnp.dot(x, W(wname), preferred_element_type=jnp.float32) + A(bname)
        return jnp.maximum(y, 0.0) if relu else y

    def layer_norm(x, gname, bname, eps=1e-6):
        mu = jnp.mean(x, axis=-1, keepdims=True)
        var = jnp.mean((x - mu) ** 2, axis=-1, keepdims=True)
        return (x - mu) * lax.rsqrt(var + eps) * A(gname) + A(bname)

    def stack_heads(x):                       # (Ls, D) -> (H*Ls, DH)
        return jnp.concatenate(
            [x[:, h * DH:(h + 1) * DH] for h in range(HEADS)], axis=0)

    def unstack_heads(x, ls):                 # (H*Ls, DH) -> (Ls, D)
        return jnp.concatenate(
            [x[h * ls:(h + 1) * ls, :] for h in range(HEADS)], axis=1)

    def mha(q, k, v, bias_h, wo_name, bo_name):
        """All heads in two MXU pushes.  bias_h is head-block-diagonal (and
        batch-block-diagonal), so cross-head / cross-batch score blocks get
        -1e9 and vanish in the softmax.  1/sqrt(DH) is pre-folded into wq/bq."""
        lq = q.shape[0]
        qs, ks, vs = stack_heads(q), stack_heads(k), stack_heads(v)
        s = lax.dot_general(qs, ks, (((1,), (1,)), ((), ())),
                            preferred_element_type=jnp.float32) + bias_h
        m = jnp.max(s, axis=-1, keepdims=True)
        e = jnp.exp(s - m)
        p = e / jnp.sum(e, axis=-1, keepdims=True)          # exact softmax
        ctx = unstack_heads(jnp.dot(p, vs, preferred_element_type=jnp.float32), lq)
        return jnp.dot(ctx, W(wo_name), preferred_element_type=jnp.float32) + A(bo_name)

    # ---- vis_extractor: temporal Conv1d(k=3, pad=1) per batch element + ReLU ---
    x = sgn_ref[...]                                            # (B*T, C_IN)
    pos = lax.broadcasted_iota(jnp.int32, (BT, 1), 0) % T       # frame index within batch
    x_prev = jnp.where(pos == 0, jnp.zeros_like(x),
                       pltpu.roll(x, shift=1, axis=0))
    x_next = jnp.where(pos == T - 1, jnp.zeros_like(x),
                       pltpu.roll(x, shift=BT - 1, axis=0))
    vw = W("vis_w")                                             # (3*C_IN, D_VIS)
    feats = (jnp.dot(x_prev, vw[:C_IN], preferred_element_type=jnp.float32)
             + jnp.dot(x, vw[C_IN:2 * C_IN], preferred_element_type=jnp.float32)
             + jnp.dot(x_next, vw[2 * C_IN:], preferred_element_type=jnp.float32)
             + A("vis_b"))
    feats = jnp.maximum(feats, 0.0)

    # ---- sgn_embed (V_encoder): Linear + BatchNorm1d(eval, folded identity) + ReLU
    emb = dense(feats, "emb_w", "emb_b", relu=True)

    # ---- transformer encoder layer (pre-LN) ------------------------------------
    xe = emb + A("pe_src")
    qkv = dense(layer_norm(xe, "enc_ln1_g", "enc_ln1_b"), "enc_wqkv", "enc_bqkv")
    h = xe + mha(qkv[:, :D], qkv[:, D:2 * D], qkv[:, 2 * D:],
                 encb_ref[...], "enc_wo", "enc_bo")
    h2 = h + dense(dense(layer_norm(h, "enc_ln2_g", "enc_ln2_b"),
                         "enc_w1", "enc_b1", relu=True), "enc_w2", "enc_b2")
    enc_out = layer_norm(h2, "enc_lnf_g", "enc_lnf_b")

    # ---- txt_embed: in-kernel one-hot(tok) @ (sqrt(D)-scaled embedding table) --
    onehot = (tok_ref[...] ==
              lax.broadcasted_iota(jnp.int32, (BL, VOCAB), 1)).astype(jnp.float32)
    t_emb = jnp.dot(onehot, W("txt_table"), preferred_element_type=jnp.float32)

    # ---- transformer decoder layer (pre-LN) + vocab projection ------------------
    y = t_emb + A("pe_trg")
    qkv = dense(layer_norm(y, "dec_ln1_g", "dec_ln1_b"),
                "dec_self_wqkv", "dec_self_bqkv")
    g = y + mha(qkv[:, :D], qkv[:, D:2 * D], qkv[:, 2 * D:],
                selfb_ref[...], "dec_self_wo", "dec_self_bo")
    cw, cb = W("dec_cross_wqkv"), A("dec_cross_bqkv")
    q = jnp.dot(layer_norm(g, "dec_ln2_g", "dec_ln2_b"), cw[:, :D],
                preferred_element_type=jnp.float32) + cb[:, :D]
    kv = jnp.dot(enc_out, cw[:, D:], preferred_element_type=jnp.float32) + cb[:, D:]
    g2 = g + mha(q, kv[:, :D], kv[:, D:],
                 crossb_ref[...], "dec_cross_wo", "dec_cross_bo")
    g3 = g2 + dense(dense(layer_norm(g2, "dec_ln3_g", "dec_ln3_b"),
                          "dec_w1", "dec_b1", relu=True), "dec_w2", "dec_b2")
    d_out = layer_norm(g3, "dec_lnf_g", "dec_lnf_b")

    # Lane-dense logits: w_out / b_out are zero-padded to 128 columns in the slab
    # so the whole (B*L, 128) store is an unmasked vst.
    out_ref[...] = (jnp.dot(d_out, W("dec_w_out", full=True),
                            preferred_element_type=jnp.float32)
                    + A("dec_b_out", full=True))


# --------------------------------------------------------------------------
# Host-side helpers: slab packing, positional encodings, bias construction
# --------------------------------------------------------------------------
def sinusoid_pe(length, d):
    pos = jnp.arange(length, dtype=jnp.float32)[:, None]
    i = jnp.arange(d // 2, dtype=jnp.float32)[None, :]
    angle = pos / jnp.power(10000.0, 2.0 * i / d)
    return jnp.concatenate([jnp.sin(angle), jnp.cos(angle)], axis=-1)    # (length, d)


def _pack_slab(entries, width=SLAB_W):
    """Pack (name, array) entries row-wise into one lane-dense (rows, width) slab.
    Returns (slab, {name: (row_start, n_rows, n_cols)}) with static offsets."""
    rows, offsets, r = [], {}, 0
    for name, arr in entries:
        arr = jnp.asarray(arr, jnp.float32)
        if arr.ndim == 1:
            arr = arr[None, :]
        nr, nc = arr.shape
        rows.append(jnp.pad(arr, ((0, 0), (0, width - nc))))
        offsets[name] = (r, nr, nc)
        r += nr
    slab = jnp.concatenate(rows, axis=0)
    pad = (-slab.shape[0]) % 8
    if pad:
        slab = jnp.pad(slab, ((0, pad), (0, 0)))
    return slab, offsets


def _head_tile(bias):
    """(Lq, Lk) additive bias -> (H*Lq, H*Lk) head-block-diagonal bias."""
    lq, lk = bias.shape
    head_block = jnp.repeat(jnp.repeat(jnp.eye(HEADS, dtype=bool), lq, axis=0),
                            lk, axis=1)
    return jnp.where(head_block, jnp.tile(bias, (HEADS, HEADS)),
                     NEG_INF).astype(jnp.float32)


def prepare_params(params):
    """One-time prep: fuse Q/K/V, fold 1/sqrt(DH) into wq/bq, pre-scale the txt
    embedding table by sqrt(D), and pack everything into two HBM slabs."""
    scale = 1.0 / math.sqrt(DH)

    def fuse_qkv(ap):
        return (jnp.concatenate([ap["wq"] * scale, ap["wk"], ap["wv"]], axis=1),
                jnp.concatenate([ap["bq"] * scale, ap["bk"], ap["bv"]]))

    enc, dec = params["encoder"], params["decoder"]
    e_wqkv, e_bqkv = fuse_qkv(enc["self_attn"])
    s_wqkv, s_bqkv = fuse_qkv(dec["self_attn"])
    c_wqkv, c_bqkv = fuse_qkv(dec["cross_attn"])

    w_entries = [
        ("vis_w", params["vis"]["w"]),
        ("emb_w", params["sgn_embed"]["w"]),
        ("enc_wqkv", e_wqkv),
        ("enc_wo", enc["self_attn"]["wo"]),
        ("enc_w1", enc["ffn"]["w1"]),
        ("enc_w2", enc["ffn"]["w2"]),
        ("txt_table", params["txt_embed"] * math.sqrt(D)),
        ("dec_self_wqkv", s_wqkv),
        ("dec_self_wo", dec["self_attn"]["wo"]),
        ("dec_cross_wqkv", c_wqkv),
        ("dec_cross_wo", dec["cross_attn"]["wo"]),
        ("dec_w1", dec["ffn"]["w1"]),
        ("dec_w2", dec["ffn"]["w2"]),
        ("dec_w_out", dec["w_out"]),
    ]

    a_entries = [
        ("vis_b", params["vis"]["b"]),
        ("emb_b", params["sgn_embed"]["b"]),
        ("enc_bqkv", e_bqkv),
        ("enc_bo", enc["self_attn"]["bo"]),
        ("enc_ln1_g", enc["ln1_g"]), ("enc_ln1_b", enc["ln1_b"]),
        ("enc_ln2_g", enc["ln2_g"]), ("enc_ln2_b", enc["ln2_b"]),
        ("enc_lnf_g", enc["lnf_g"]), ("enc_lnf_b", enc["lnf_b"]),
        ("enc_b1", enc["ffn"]["b1"]), ("enc_b2", enc["ffn"]["b2"]),
        ("dec_self_bqkv", s_bqkv),
        ("dec_self_bo", dec["self_attn"]["bo"]),
        ("dec_cross_bqkv", c_bqkv),
        ("dec_cross_bo", dec["cross_attn"]["bo"]),
        ("dec_ln1_g", dec["ln1_g"]), ("dec_ln1_b", dec["ln1_b"]),
        ("dec_ln2_g", dec["ln2_g"]), ("dec_ln2_b", dec["ln2_b"]),
        ("dec_ln3_g", dec["ln3_g"]), ("dec_ln3_b", dec["ln3_b"]),
        ("dec_lnf_g", dec["lnf_g"]), ("dec_lnf_b", dec["lnf_b"]),
        ("dec_b1", dec["ffn"]["b1"]), ("dec_b2", dec["ffn"]["b2"]),
        ("dec_b_out", dec["b_out"]),
        ("pe_src", jnp.tile(sinusoid_pe(T, D), (B, 1))),   # (B*T, D)
        ("pe_trg", jnp.tile(sinusoid_pe(L, D), (B, 1))),   # (B*L, D)
    ]

    w_slab, w_off = _pack_slab(w_entries)
    a_slab, a_off = _pack_slab(a_entries)
    return w_slab, a_slab, w_off, a_off


def make_forward(w_off, a_off):
    """Build the jitted SignModel.forward with the static slab layout baked in."""
    kernel = functools.partial(_fused_forward_kernel, w_off=w_off, a_off=a_off)

    @jax.jit
    def forward(w_slab, a_slab, sgn, sgn_mask, sgn_lengths, txt_input, txt_mask):
        # TODO(synk): txt_vocab.itos tokenization is a host-side string lookup
        # with no numerical effect on the forward output; omitted.
        del sgn_lengths  # only used to build sgn_mask (done by the caller)

        sgn_flat = sgn.reshape(BT, C_IN).astype(jnp.float32)        # batch on sublanes
        tok = txt_input.reshape(BL, 1).astype(jnp.int32)

        # Block-diagonal (batch) + head-block-diagonal additive attention biases.
        key_valid_src = sgn_mask[:, 0, :].reshape(BT)
        key_valid_trg = txt_mask[:, 0, :].reshape(BL)
        eye_b = jnp.eye(B, dtype=bool)
        same_src = jnp.repeat(jnp.repeat(eye_b, T, axis=0), T, axis=1)     # (BT, BT)
        same_trg = jnp.repeat(jnp.repeat(eye_b, L, axis=0), L, axis=1)     # (BL, BL)
        same_cross = jnp.repeat(jnp.repeat(eye_b, L, axis=0), T, axis=1)   # (BL, BT)
        causal = jnp.tile(jnp.tril(jnp.ones((L, L), dtype=bool)), (B, B))  # (BL, BL)

        enc_valid = same_src & key_valid_src[None, :]
        self_valid = same_trg & causal & key_valid_trg[None, :]
        cross_valid = same_cross & key_valid_src[None, :]

        enc_b = _head_tile(jnp.where(enc_valid, 0.0, NEG_INF))      # (H*BT, H*BT)
        self_b = _head_tile(jnp.where(self_valid, 0.0, NEG_INF))    # (H*BL, H*BL)
        cross_b = _head_tile(jnp.where(cross_valid, 0.0, NEG_INF))  # (H*BL, H*BT)

        out = pl.pallas_call(
            kernel,
            out_shape=jax.ShapeDtypeStruct((BL, SLAB_W), jnp.float32),
        )(sgn_flat, tok, enc_b, self_b, cross_b, w_slab, a_slab)

        return out.reshape(B, L, SLAB_W)[:, :, :VOCAB]              # (B, L, VOCAB)

    return forward


# --------------------------------------------------------------------------
# Deterministic parameter initialization (module-shaped params)
# --------------------------------------------------------------------------
def _init_linear(key, fan_in, fan_out):
    w = jax.random.normal(key, (fan_in, fan_out), jnp.float32) * 0.02
    b = jnp.zeros((fan_out,), jnp.float32)
    return w, b


def _attn_params(key, d):
    ks = jax.random.split(key, 4)
    p = {}
    for name, k in zip(("q", "k", "v", "o"), ks):
        w, b = _init_linear(k, d, d)
        p["w" + name] = w
        p["b" + name] = b
    return p


def _ln(d):
    return jnp.ones((d,), jnp.float32), jnp.zeros((d,), jnp.float32)


def init_params(key):
    ks = jax.random.split(key, 16)
    params = {}

    w, b = _init_linear(ks[0], 3 * C_IN, D_VIS)
    params["vis"] = {"w": w, "b": b}

    w, b = _init_linear(ks[1], D_VIS, D)
    params["sgn_embed"] = {"w": w, "b": b}

    enc = {"self_attn": _attn_params(ks[2], D)}
    enc["ln1_g"], enc["ln1_b"] = _ln(D)
    enc["ln2_g"], enc["ln2_b"] = _ln(D)
    enc["lnf_g"], enc["lnf_b"] = _ln(D)
    w1, b1 = _init_linear(ks[3], D, FF)
    w2, b2 = _init_linear(ks[4], FF, D)
    enc["ffn"] = {"w1": w1, "b1": b1, "w2": w2, "b2": b2}
    params["encoder"] = enc

    params["txt_embed"] = jax.random.normal(ks[5], (VOCAB, D), jnp.float32) * 0.02

    dec = {"self_attn": _attn_params(ks[6], D), "cross_attn": _attn_params(ks[7], D)}
    dec["ln1_g"], dec["ln1_b"] = _ln(D)
    dec["ln2_g"], dec["ln2_b"] = _ln(D)
    dec["ln3_g"], dec["ln3_b"] = _ln(D)
    dec["lnf_g"], dec["lnf_b"] = _ln(D)
    w1, b1 = _init_linear(ks[8], D, FF)
    w2, b2 = _init_linear(ks[9], FF, D)
    dec["ffn"] = {"w1": w1, "b1": b1, "w2": w2, "b2": b2}
    w_out, b_out = _init_linear(ks[10], D, VOCAB)
    dec["w_out"] = w_out
    dec["b_out"] = b_out
    params["decoder"] = dec
    return params


# --------------------------------------------------------------------------
# Main
# --------------------------------------------------------------------------
if __name__ == "__main__":
    key = jax.random.PRNGKey(0)
    k_param, k_sgn, k_txt = jax.random.split(key, 3)

    params = init_params(k_param)
    w_slab, a_slab, w_off, a_off = prepare_params(params)   # one-time slab packing
    forward = make_forward(w_off, a_off)

    sgn = jax.random.normal(k_sgn, (B, T, C_IN), jnp.float32)               # (B, T, C)
    sgn_lengths = jnp.array([T, T - 2], dtype=jnp.int32)                    # (B,)
    sgn_mask = (jnp.arange(T)[None, :] < sgn_lengths[:, None])[:, None, :]  # (B, 1, T)

    txt_input = jax.random.randint(k_txt, (B, L), 0, VOCAB, dtype=jnp.int32)
    txt_input = txt_input.at[1, L - 1].set(PAD_IDX)                         # exercise pad mask
    txt_mask = (txt_input != PAD_IDX)[:, None, :]                           # (B, 1, L)

    logits = forward(w_slab, a_slab, sgn, sgn_mask, sgn_lengths, txt_input, txt_mask)
    logits = jax.block_until_ready(logits)

    assert logits.shape == (B, L, VOCAB), logits.shape
    assert bool(jnp.all(jnp.isfinite(logits)))
    print("KERNEL_OK")
</pallas_src>

<mosaic_0001>
module attributes {stable_mosaic.version = 11 : i64} {
  func.func @_fused_forward_kernel(%arg0: memref<16x16xf32, #tpu.memory_space<vmem>>, %arg1: memref<12x1xi32, #tpu.memory_space<vmem>>, %arg2: memref<64x64xf32, #tpu.memory_space<vmem>>, %arg3: memref<48x48xf32, #tpu.memory_space<vmem>>, %arg4: memref<48x64xf32, #tpu.memory_space<vmem>>, %arg5: memref<512x128xf32, #tpu.memory_space<vmem>>, %arg6: memref<56x128xf32, #tpu.memory_space<vmem>>, %arg7: memref<12x128xf32, #tpu.memory_space<vmem>>) attributes {dimension_semantics = [], scalar_prefetch = 0 : i64, scratch_operands = 0 : i64, tpu.core_type = #tpu.core_type<tc>} {
    %c0 = arith.constant 0 : index
    %c0_0 = arith.constant 0 : index
    %0 = vector.load %arg0[%c0, %c0_0] : memref<16x16xf32, #tpu.memory_space<vmem>>, vector<16x16xf32>
    %1 = tpu.iota {dimensions = array<i32: 0>} : vector<16x1xi32>
    %c8_i32 = arith.constant 8 : i32
    %c0_i32 = arith.constant 0 : i32
    %2 = arith.cmpi eq, %c8_i32, %c0_i32 : i32
    %c1_i32 = arith.constant 1 : i32
    %3 = arith.select %2, %c1_i32, %c8_i32 : i32
    %4 = vector.broadcast %3 : i32 to vector<16x1xi32>
    %5 = arith.remsi %1, %4 : vector<16x1xi32>
    %c0_i32_1 = arith.constant 0 : i32
    %6 = vector.broadcast %c0_i32_1 : i32 to vector<16x1xi32>
    %7 = arith.cmpi ne, %5, %6 : vector<16x1xi32>
    %c0_i32_2 = arith.constant 0 : i32
    %8 = vector.broadcast %c0_i32_2 : i32 to vector<16x1xi32>
    %9 = arith.cmpi slt, %5, %8 : vector<16x1xi32>
    %c0_i32_3 = arith.constant 0 : i32
    %10 = arith.cmpi slt, %3, %c0_i32_3 : i32
    %11 = vector.broadcast %10 : i1 to vector<16x1xi1>
    %12 = vector.broadcast %11 : vector<16x1xi1> to vector<16x1xi1>
    %13 = arith.xori %9, %12 : vector<16x1xi1>
    %14 = arith.andi %13, %7 : vector<16x1xi1>
    %15 = vector.broadcast %3 : i32 to vector<16x1xi32>
    %16 = arith.addi %5, %15 : vector<16x1xi32>
    %17 = arith.select %14, %16, %5 : vector<16x1xi1>, vector<16x1xi32>
    %c0_i32_4 = arith.constant 0 : i32
    %18 = vector.broadcast %c0_i32_4 : i32 to vector<16x1xi32>
    %19 = arith.cmpi eq, %17, %18 : vector<16x1xi32>
    %cst = arith.constant 0.000000e+00 : f32
    %20 = vector.broadcast %cst : f32 to vector<16x16xf32>
    %c1_i32_5 = arith.constant 1 : i32
    %21 = tpu.dynamic_rotate %0 by %c1_i32_5 dim 0 : vector<16x16xf32>, i32 -> vector<16x16xf32>
    %22 = vector.shape_cast %19 : vector<16x1xi1> to vector<16x1xi1>
    %23 = vector.broadcast %22 : vector<16x1xi1> to vector<16x16xi1>
    %24 = arith.select %23, %20, %21 : vector<16x16xi1>, vector<16x16xf32>
    %c7_i32 = arith.constant 7 : i32
    %25 = vector.broadcast %c7_i32 : i32 to vector<16x1xi32>
    %26 = arith.cmpi eq, %17, %25 : vector<16x1xi32>
    %cst_6 = arith.constant 0.000000e+00 : f32
    %27 = vector.broadcast %cst_6 : f32 to vector<16x16xf32>
    %c15_i32 = arith.constant 15 : i32
    %28 = tpu.dynamic_rotate %0 by %c15_i32 dim 0 : vector<16x16xf32>, i32 -> vector<16x16xf32>
    %29 = vector.shape_cast %26 : vector<16x1xi1> to vector<16x1xi1>
    %30 = vector.broadcast %29 : vector<16x1xi1> to vector<16x16xi1>
    %31 = arith.select %30, %27, %28 : vector<16x16xi1>, vector<16x16xf32>
    %c0_7 = arith.constant 0 : index
    %c0_8 = arith.constant 0 : index
    %32 = vector.load %arg5[%c0_7, %c0_8] : memref<512x128xf32, #tpu.memory_space<vmem>>, vector<48x32xf32>
    %33 = vector.extract_strided_slice %32 {offsets = [0, 0], sizes = [16, 32], strides = [1, 1]} : vector<48x32xf32> to vector<16x32xf32>
    %cst_9 = arith.constant dense<0.000000e+00> : vector<16x32xf32>
    %34 = tpu.matmul %24, %33, %cst_9 {dimension_numbers = #tpu.dot_dimension_numbers<[1], [0], [0], [1], [0, 0, 1, 1], [], []>} : vector<16x16xf32>, vector<16x32xf32>, vector<16x32xf32> -> vector<16x32xf32>
    %35 = vector.extract_strided_slice %32 {offsets = [16, 0], sizes = [16, 32], strides = [1, 1]} : vector<48x32xf32> to vector<16x32xf32>
    %cst_10 = arith.constant dense<0.000000e+00> : vector<16x32xf32>
    %36 = tpu.matmul %0, %35, %cst_10 {dimension_numbers = #tpu.dot_dimension_numbers<[1], [0], [0], [1], [0, 0, 1, 1], [], []>} : vector<16x16xf32>, vector<16x32xf32>, vector<16x32xf32> -> vector<16x32xf32>
    %37 = arith.addf %34, %36 : vector<16x32xf32>
    %38 = vector.extract_strided_slice %32 {offsets = [32, 0], sizes = [16, 32], strides = [1, 1]} : vector<48x32xf32> to vector<16x32xf32>
    %cst_11 = arith.constant dense<0.000000e+00> : vector<16x32xf32>
    %39 = tpu.matmul %31, %38, %cst_11 {dimension_numbers = #tpu.dot_dimension_numbers<[1], [0], [0], [1], [0, 0, 1, 1], [], []>} : vector<16x16xf32>, vector<16x32xf32>, vector<16x32xf32> -> vector<16x32xf32>
    %40 = arith.addf %37, %39 : vector<16x32xf32>
    %c0_12 = arith.constant 0 : index
    %c0_13 = arith.constant 0 : index
    %41 = vector.load %arg6[%c0_12, %c0_13] : memref<56x128xf32, #tpu.memory_space<vmem>>, vector<1x32xf32>
    %42 = vector.broadcast %41 : vector<1x32xf32> to vector<16x32xf32>
    %43 = arith.addf %40, %42 : vector<16x32xf32>
    %cst_14 = arith.constant 0.000000e+00 : f32
    %44 = vector.broadcast %cst_14 : f32 to vector<16x32xf32>
    %45 = arith.maximumf %43, %44 : vector<16x32xf32>
    %c48 = arith.constant 48 : index
    %c0_15 = arith.constant 0 : index
    %46 = vector.load %arg5[%c48, %c0_15] : memref<512x128xf32, #tpu.memory_space<vmem>>, vector<32x32xf32>
    %cst_16 = arith.constant dense<0.000000e+00> : vector<16x32xf32>
    %47 = tpu.matmul %45, %46, %cst_16 {dimension_numbers = #tpu.dot_dimension_numbers<[1], [0], [0], [1], [0, 0, 1, 1], [], []>} : vector<16x32xf32>, vector<32x32xf32>, vector<16x32xf32> -> vector<16x32xf32>
    %c1 = arith.constant 1 : index
    %c0_17 = arith.constant 0 : index
    %48 = vector.load %arg6[%c1, %c0_17] : memref<56x128xf32, #tpu.memory_space<vmem>>, vector<1x32xf32>
    %49 = vector.broadcast %48 : vector<1x32xf32> to vector<16x32xf32>
    %50 = arith.addf %47, %49 : vector<16x32xf32>
    %cst_18 = arith.constant 0.000000e+00 : f32
    %51 = vector.broadcast %cst_18 : f32 to vector<16x32xf32>
    %52 = arith.maximumf %50, %51 : vector<16x32xf32>
    %c27 = arith.constant 27 : index
    %c0_19 = arith.constant 0 : index
    %53 = vector.load %arg6[%c27, %c0_19] : memref<56x128xf32, #tpu.memory_space<vmem>>, vector<16x32xf32>
    %54 = arith.addf %52, %53 : vector<16x32xf32>
    %cst_20 = arith.constant dense<0.000000e+00> : vector<16xf32>
    %55 = vector.multi_reduction <add>, %54, %cst_20 [1] : vector<16x32xf32> to vector<16xf32>
    %56 = vector.shape_cast %55 : vector<16xf32> to vector<16x1xf32>
    %cst_21 = arith.constant 3.200000e+01 : f32
    %57 = vector.broadcast %cst_21 : f32 to vector<16x1xf32>
    %58 = arith.divf %56, %57 : vector<16x1xf32>
    %59 = vector.broadcast %58 : vector<16x1xf32> to vector<16x32xf32>
    %60 = arith.subf %54, %59 : vector<16x32xf32>
    %61 = arith.mulf %60, %60 : vector<16x32xf32>
    %cst_22 = arith.constant dense<0.000000e+00> : vector<16xf32>
    %62 = vector.multi_reduction <add>, %61, %cst_22 [1] : vector<16x32xf32> to vector<16xf32>
    %63 = vector.shape_cast %62 : vector<16xf32> to vector<16x1xf32>
    %cst_23 = arith.constant 3.200000e+01 : f32
    %64 = vector.broadcast %cst_23 : f32 to vector<16x1xf32>
    %65 = arith.divf %63, %64 : vector<16x1xf32>
    %66 = vector.broadcast %58 : vector<16x1xf32> to vector<16x32xf32>
    %67 = arith.subf %54, %66 : vector<16x32xf32>
    %cst_24 = arith.constant 9.99999997E-7 : f32
    %68 = vector.broadcast %cst_24 : f32 to vector<16x1xf32>
    %69 = arith.addf %65, %68 : vector<16x1xf32>
    %70 = math.rsqrt %69 : vector<16x1xf32>
    %71 = vector.broadcast %70 : vector<16x1xf32> to vector<16x32xf32>
    %72 = arith.mulf %67, %71 : vector<16x32xf32>
    %c4 = arith.constant 4 : index
    %c0_25 = arith.constant 0 : index
    %73 = vector.load %arg6[%c4, %c0_25] : memref<56x128xf32, #tpu.memory_space<vmem>>, vector<1x32xf32>
    %74 = vector.broadcast %73 : vector<1x32xf32> to vector<16x32xf32>
    %75 = arith.mulf %72, %74 : vector<16x32xf32>
    %c5 = arith.constant 5 : index
    %c0_26 = arith.constant 0 : index
    %76 = vector.load %arg6[%c5, %c0_26] : memref<56x128xf32, #tpu.memory_space<vmem>>, vector<1x32xf32>
    %77 = vector.broadcast %76 : vector<1x32xf32> to vector<16x32xf32>
    %78 = arith.addf %75, %77 : vector<16x32xf32>
    %c80 = arith.constant 80 : index
    %c0_27 = arith.constant 0 : index
    %79 = vector.load %arg5[%c80, %c0_27] : memref<512x128xf32, #tpu.memory_space<vmem>>, vector<32x96xf32>
    %cst_28 = arith.constant dense<0.000000e+00> : vector<16x96xf32>
    %80 = tpu.matmul %78, %79, %cst_28 {dimension_numbers = #tpu.dot_dimension_numbers<[1], [0], [0], [1], [0, 0, 1, 1], [], []>} : vector<16x32xf32>, vector<32x96xf32>, vector<16x96xf32> -> vector<16x96xf32>
    %c2 = arith.constant 2 : index
    %c0_29 = arith.constant 0 : index
    %81 = vector.load %arg6[%c2, %c0_29] : memref<56x128xf32, #tpu.memory_space<vmem>>, vector<1x96xf32>
    %82 = vector.broadcast %81 : vector<1x96xf32> to vector<16x96xf32>
    %83 = arith.addf %80, %82 : vector<16x96xf32>
    %84 = vector.extract_strided_slice %83 {offsets = [0, 0], sizes = [16, 32], strides = [1, 1]} : vector<16x96xf32> to vector<16x32xf32>
    %85 = vector.extract_strided_slice %83 {offsets = [0, 32], sizes = [16, 32], strides = [1, 1]} : vector<16x96xf32> to vector<16x32xf32>
    %86 = vector.extract_strided_slice %83 {offsets = [0, 64], sizes = [16, 32], strides = [1, 1]} : vector<16x96xf32> to vector<16x32xf32>
    %c0_30 = arith.constant 0 : index
    %c0_31 = arith.constant 0 : index
    %87 = vector.load %arg2[%c0_30, %c0_31] : memref<64x64xf32, #tpu.memory_space<vmem>>, vector<64x64xf32>
    %88 = vector.extract_strided_slice %84 {offsets = [0, 0], sizes = [16, 8], strides = [1, 1]} : vector<16x32xf32> to vector<16x8xf32>
    %89 = vector.extract_strided_slice %84 {offsets = [0, 8], sizes = [16, 8], strides = [1, 1]} : vector<16x32xf32> to vector<16x8xf32>
    %90 = vector.extract_strided_slice %84 {offsets = [0, 16], sizes = [16, 8], strides = [1, 1]} : vector<16x32xf32> to vector<16x8xf32>
    %91 = vector.extract_strided_slice %84 {offsets = [0, 24], sizes = [16, 8], strides = [1, 1]} : vector<16x32xf32> to vector<16x8xf32>
    %92 = tpu.concatenate %88, %89, %90, %91 in 0 : vector<16x8xf32>, vector<16x8xf32>, vector<16x8xf32>, vector<16x8xf32> -> vector<64x8xf32>
    %93 = vector.extract_strided_slice %85 {offsets = [0, 0], sizes = [16, 8], strides = [1, 1]} : vector<16x32xf32> to vector<16x8xf32>
    %94 = vector.extract_strided_slice %85 {offsets = [0, 8], sizes = [16, 8], strides = [1, 1]} : vector<16x32xf32> to vector<16x8xf32>
    %95 = vector.extract_strided_slice %85 {offsets = [0, 16], sizes = [16, 8], strides = [1, 1]} : vector<16x32xf32> to vector<16x8xf32>
    %96 = vector.extract_strided_slice %85 {offsets = [0, 24], sizes = [16, 8], strides = [1, 1]} : vector<16x32xf32> to vector<16x8xf32>
    %97 = tpu.concatenate %93, %94, %95, %96 in 0 : vector<16x8xf32>, vector<16x8xf32>, vector<16x8xf32>, vector<16x8xf32> -> vector<64x8xf32>
    %98 = vector.extract_strided_slice %86 {offsets = [0, 0], sizes = [16, 8], strides = [1, 1]} : vector<16x32xf32> to vector<16x8xf32>
    %99 = vector.extract_strided_slice %86 {offsets = [0, 8], sizes = [16, 8], strides = [1, 1]} : vector<16x32xf32> to vector<16x8xf32>
    %100 = vector.extract_strided_slice %86 {offsets = [0, 16], sizes = [16, 8], strides = [1, 1]} : vector<16x32xf32> to vector<16x8xf32>
    %101 = vector.extract_strided_slice %86 {offsets = [0, 24], sizes = [16, 8], strides = [1, 1]} : vector<16x32xf32> to vector<16x8xf32>
    %102 = tpu.concatenate %98, %99, %100, %101 in 0 : vector<16x8xf32>, vector<16x8xf32>, vector<16x8xf32>, vector<16x8xf32> -> vector<64x8xf32>
    %cst_32 = arith.constant dense<0.000000e+00> : vector<64x64xf32>
    %103 = tpu.matmul %92, %97, %cst_32 {dimension_numbers = #tpu.dot_dimension_numbers<[1], [1], [0], [0], [0, 0, 1, 0], [], []>} : vector<64x8xf32>, vector<64x8xf32>, vector<64x64xf32> -> vector<64x64xf32>
    %104 = arith.addf %103, %87 : vector<64x64xf32>
    %cst_33 = arith.constant dense<0xFF800000> : vector<64xf32>
    %105 = vector.multi_reduction <maximumf>, %104, %cst_33 [1] : vector<64x64xf32> to vector<64xf32>
    %106 = vector.shape_cast %105 : vector<64xf32> to vector<64x1xf32>
    %107 = vector.broadcast %106 : vector<64x1xf32> to vector<64x64xf32>
    %108 = arith.subf %104, %107 : vector<64x64xf32>
    %109 = math.exp %108 : vector<64x64xf32>
    %cst_34 = arith.constant dense<0.000000e+00> : vector<64xf32>
    %110 = vector.multi_reduction <add>, %109, %cst_34 [1] : vector<64x64xf32> to vector<64xf32>
    %111 = vector.shape_cast %110 : vector<64xf32> to vector<64x1xf32>
    %112 = vector.broadcast %111 : vector<64x1xf32> to vector<64x64xf32>
    %113 = arith.divf %109, %112 : vector<64x64xf32>
    %cst_35 = arith.constant dense<0.000000e+00> : vector<64x8xf32>
    %114 = tpu.matmul %113, %102, %cst_35 {dimension_numbers = #tpu.dot_dimension_numbers<[1], [0], [0], [1], [0, 0, 1, 1], [], []>} : vector<64x64xf32>, vector<64x8xf32>, vector<64x8xf32> -> vector<64x8xf32>
    %115 = vector.extract_strided_slice %114 {offsets = [0, 0], sizes = [16, 8], strides = [1, 1]} : vector<64x8xf32> to vector<16x8xf32>
    %116 = vector.extract_strided_slice %114 {offsets = [16, 0], sizes = [16, 8], strides = [1, 1]} : vector<64x8xf32> to vector<16x8xf32>
    %117 = vector.extract_strided_slice %114 {offsets = [32, 0], sizes = [16, 8], strides = [1, 1]} : vector<64x8xf32> to vector<16x8xf32>
    %118 = vector.extract_strided_slice %114 {offsets = [48, 0], sizes = [16, 8], strides = [1, 1]} : vector<64x8xf32> to vector<16x8xf32>
    %119 = tpu.concatenate %115, %116, %117, %118 in 1 : vector<16x8xf32>, vector<16x8xf32>, vector<16x8xf32>, vector<16x8xf32> -> vector<16x32xf32>
    %c112 = arith.constant 112 : index
    %c0_36 = arith.constant 0 : index
    %120 = vector.load %arg5[%c112, %c0_36] : memref<512x128xf32, #tpu.memory_space<vmem>>, vector<32x32xf32>
    %cst_37 = arith.constant dense<0.000000e+00> : vector<16x32xf32>
    %121 = tpu.matmul %119, %120, %cst_37 {dimension_numbers = #tpu.dot_dimension_numbers<[1], [0], [0], [1], [0, 0, 1, 1], [], []>} : vector<16x32xf32>, vector<32x32xf32>, vector<16x32xf32> -> vector<16x32xf32>
    %c3 = arith.constant 3 : index
    %c0_38 = arith.constant 0 : index
    %122 = vector.load %arg6[%c3, %c0_38] : memref<56x128xf32, #tpu.memory_space<vmem>>, vector<1x32xf32>
    %123 = vector.broadcast %122 : vector<1x32xf32> to vector<16x32xf32>
    %124 = arith.addf %121, %123 : vector<16x32xf32>
    %125 = arith.addf %54, %124 : vector<16x32xf32>
    %cst_39 = arith.constant dense<0.000000e+00> : vector<16xf32>
    %126 = vector.multi_reduction <add>, %125, %cst_39 [1] : vector<16x32xf32> to vector<16xf32>
    %127 = vector.shape_cast %126 : vector<16xf32> to vector<16x1xf32>
    %cst_40 = arith.constant 3.200000e+01 : f32
    %128 = vector.broadcast %cst_40 : f32 to vector<16x1xf32>
    %129 = arith.divf %127, %128 : vector<16x1xf32>
    %130 = vector.broadcast %129 : vector<16x1xf32> to vector<16x32xf32>
    %131 = arith.subf %125, %130 : vector<16x32xf32>
    %132 = arith.mulf %131, %131 : vector<16x32xf32>
    %cst_41 = arith.constant dense<0.000000e+00> : vector<16xf32>
    %133 = vector.multi_reduction <add>, %132, %cst_41 [1] : vector<16x32xf32> to vector<16xf32>
    %134 = vector.shape_cast %133 : vector<16xf32> to vector<16x1xf32>
    %cst_42 = arith.constant 3.200000e+01 : f32
    %135 = vector.broadcast %cst_42 : f32 to vector<16x1xf32>
    %136 = arith.divf %134, %135 : vector<16x1xf32>
    %137 = vector.broadcast %129 : vector<16x1xf32> to vector<16x32xf32>
    %138 = arith.subf %125, %137 : vector<16x32xf32>
    %cst_43 = arith.constant 9.99999997E-7 : f32
    %139 = vector.broadcast %cst_43 : f32 to vector<16x1xf32>
    %140 = arith.addf %136, %139 : vector<16x1xf32>
    %141 = math.rsqrt %140 : vector<16x1xf32>
    %142 = vector.broadcast %141 : vector<16x1xf32> to vector<16x32xf32>
    %143 = arith.mulf %138, %142 : vector<16x32xf32>
    %c6 = arith.constant 6 : index
    %c0_44 = arith.constant 0 : index
    %144 = vector.load %arg6[%c6, %c0_44] : memref<56x128xf32, #tpu.memory_space<vmem>>, vector<1x32xf32>
    %145 = vector.broadcast %144 : vector<1x32xf32> to vector<16x32xf32>
    %146 = arith.mulf %143, %145 : vector<16x32xf32>
    %c7 = arith.constant 7 : index
    %c0_45 = arith.constant 0 : index
    %147 = vector.load %arg6[%c7, %c0_45] : memref<56x128xf32, #tpu.memory_space<vmem>>, vector<1x32xf32>
    %148 = vector.broadcast %147 : vector<1x32xf32> to vector<16x32xf32>
    %149 = arith.addf %146, %148 : vector<16x32xf32>
    %c144 = arith.constant 144 : index
    %c0_46 = arith.constant 0 : index
    %150 = vector.load %arg5[%c144, %c0_46] : memref<512x128xf32, #tpu.memory_space<vmem>>, vector<32x64xf32>
    %cst_47 = arith.constant dense<0.000000e+00> : vector<16x64xf32>
    %151 = tpu.matmul %149, %150, %cst_47 {dimension_numbers = #tpu.dot_dimension_numbers<[1], [0], [0], [1], [0, 0, 1, 1], [], []>} : vector<16x32xf32>, vector<32x64xf32>, vector<16x64xf32> -> vector<16x64xf32>
    %c10 = arith.constant 10 : index
    %c0_48 = arith.constant 0 : index
    %152 = vector.load %arg6[%c10, %c0_48] : memref<56x128xf32, #tpu.memory_space<vmem>>, vector<1x64xf32>
    %153 = vector.broadcast %152 : vector<1x64xf32> to vector<16x64xf32>
    %154 = arith.addf %151, %153 : vector<16x64xf32>
    %cst_49 = arith.constant 0.000000e+00 : f32
    %155 = vector.broadcast %cst_49 : f32 to vector<16x64xf32>
    %156 = arith.maximumf %154, %155 : vector<16x64xf32>
    %c176 = arith.constant 176 : index
    %c0_50 = arith.constant 0 : index
    %157 = vector.load %arg5[%c176, %c0_50] : memref<512x128xf32, #tpu.memory_space<vmem>>, vector<64x32xf32>
    %cst_51 = arith.constant dense<0.000000e+00> : vector<16x32xf32>
    %158 = tpu.matmul %156, %157, %cst_51 {dimension_numbers = #tpu.dot_dimension_numbers<[1], [0], [0], [1], [0, 0, 1, 1], [], []>} : vector<16x64xf32>, vector<64x32xf32>, vector<16x32xf32> -> vector<16x32xf32>
    %c11 = arith.constant 11 : index
    %c0_52 = arith.constant 0 : index
    %159 = vector.load %arg6[%c11, %c0_52] : memref<56x128xf32, #tpu.memory_space<vmem>>, vector<1x32xf32>
    %160 = vector.broadcast %159 : vector<1x32xf32> to vector<16x32xf32>
    %161 = arith.addf %158, %160 : vector<16x32xf32>
    %162 = arith.addf %125, %161 : vector<16x32xf32>
    %cst_53 = arith.constant dense<0.000000e+00> : vector<16xf32>
    %163 = vector.multi_reduction <add>, %162, %cst_53 [1] : vector<16x32xf32> to vector<16xf32>
    %164 = vector.shape_cast %163 : vector<16xf32> to vector<16x1xf32>
    %cst_54 = arith.constant 3.200000e+01 : f32
    %165 = vector.broadcast %cst_54 : f32 to vector<16x1xf32>
    %166 = arith.divf %164, %165 : vector<16x1xf32>
    %167 = vector.broadcast %166 : vector<16x1xf32> to vector<16x32xf32>
    %168 = arith.subf %162, %167 : vector<16x32xf32>
    %169 = arith.mulf %168, %168 : vector<16x32xf32>
    %cst_55 = arith.constant dense<0.000000e+00> : vector<16xf32>
    %170 = vector.multi_reduction <add>, %169, %cst_55 [1] : vector<16x32xf32> to vector<16xf32>
    %171 = vector.shape_cast %170 : vector<16xf32> to vector<16x1xf32>
    %cst_56 = arith.constant 3.200000e+01 : f32
    %172 = vector.broadcast %cst_56 : f32 to vector<16x1xf32>
    %173 = arith.divf %171, %172 : vector<16x1xf32>
    %174 = vector.broadcast %166 : vector<16x1xf32> to vector<16x32xf32>
    %175 = arith.subf %162, %174 : vector<16x32xf32>
    %cst_57 = arith.constant 9.99999997E-7 : f32
    %176 = vector.broadcast %cst_57 : f32 to vector<16x1xf32>
    %177 = arith.addf %173, %176 : vector<16x1xf32>
    %178 = math.rsqrt %177 : vector<16x1xf32>
    %179 = vector.broadcast %178 : vector<16x1xf32> to vector<16x32xf32>
    %180 = arith.mulf %175, %179 : vector<16x32xf32>
    %c8 = arith.constant 8 : index
    %c0_58 = arith.constant 0 : index
    %181 = vector.load %arg6[%c8, %c0_58] : memref<56x128xf32, #tpu.memory_space<vmem>>, vector<1x32xf32>
    %182 = vector.broadcast %181 : vector<1x32xf32> to vector<16x32xf32>
    %183 = arith.mulf %180, %182 : vector<16x32xf32>
    %c9 = arith.constant 9 : index
    %c0_59 = arith.constant 0 : index
    %184 = vector.load %arg6[%c9, %c0_59] : memref<56x128xf32, #tpu.memory_space<vmem>>, vector<1x32xf32>
    %185 = vector.broadcast %184 : vector<1x32xf32> to vector<16x32xf32>
    %186 = arith.addf %183, %185 : vector<16x32xf32>
    %c0_60 = arith.constant 0 : index
    %c0_61 = arith.constant 0 : index
    %187 = vector.load %arg1[%c0_60, %c0_61] : memref<12x1xi32, #tpu.memory_space<vmem>>, vector<12x1xi32>
    %188 = tpu.iota {dimensions = array<i32: 1>} : vector<12x16xi32>
    %189 = vector.broadcast %187 : vector<12x1xi32> to vector<12x16xi32>
    %190 = arith.cmpi eq, %189, %188 : vector<12x16xi32>
    %191 = arith.extui %190 : vector<12x16xi1> to vector<12x16xi32>
    %192 = arith.sitofp %191 : vector<12x16xi32> to vector<12x16xf32>
    %c240 = arith.constant 240 : index
    %c0_62 = arith.constant 0 : index
    %193 = vector.load %arg5[%c240, %c0_62] : memref<512x128xf32, #tpu.memory_space<vmem>>, vector<16x32xf32>
    %cst_63 = arith.constant dense<0.000000e+00> : vector<12x32xf32>
    %194 = tpu.matmul %192, %193, %cst_63 {dimension_numbers = #tpu.dot_dimension_numbers<[1], [0], [0], [1], [0, 0, 1, 1], [], []>} : vector<12x16xf32>, vector<16x32xf32>, vector<12x32xf32> -> vector<12x32xf32>
    %c43 = arith.constant 43 : index
    %c0_64 = arith.constant 0 : index
    %195 = vector.load %arg6[%c43, %c0_64] : memref<56x128xf32, #tpu.memory_space<vmem>>, vector<12x32xf32>
    %196 = arith.addf %194, %195 : vector<12x32xf32>
    %cst_65 = arith.constant dense<0.000000e+00> : vector<12xf32>
    %197 = vector.multi_reduction <add>, %196, %cst_65 [1] : vector<12x32xf32> to vector<12xf32>
    %198 = vector.shape_cast %197 : vector<12xf32> to vector<12x1xf32>
    %cst_66 = arith.constant 3.200000e+01 : f32
    %199 = vector.broadcast %cst_66 : f32 to vector<12x1xf32>
    %200 = arith.divf %198, %199 : vector<12x1xf32>
    %201 = vector.broadcast %200 : vector<12x1xf32> to vector<12x32xf32>
    %202 = arith.subf %196, %201 : vector<12x32xf32>
    %203 = arith.mulf %202, %202 : vector<12x32xf32>
    %cst_67 = arith.constant dense<0.000000e+00> : vector<12xf32>
    %204 = vector.multi_reduction <add>, %203, %cst_67 [1] : vector<12x32xf32> to vector<12xf32>
    %205 = vector.shape_cast %204 : vector<12xf32> to vector<12x1xf32>
    %cst_68 = arith.constant 3.200000e+01 : f32
    %206 = vector.broadcast %cst_68 : f32 to vector<12x1xf32>
    %207 = arith.divf %205, %206 : vector<12x1xf32>
    %208 = vector.broadcast %200 : vector<12x1xf32> to vector<12x32xf32>
    %209 = arith.subf %196, %208 : vector<12x32xf32>
    %cst_69 = arith.constant 9.99999997E-7 : f32
    %210 = vector.broadcast %cst_69 : f32 to vector<12x1xf32>
    %211 = arith.addf %207, %210 : vector<12x1xf32>
    %212 = math.rsqrt %211 : vector<12x1xf32>
    %213 = vector.broadcast %212 : vector<12x1xf32> to vector<12x32xf32>
    %214 = arith.mulf %209, %213 : vector<12x32xf32>
    %c16 = arith.constant 16 : index
    %c0_70 = arith.constant 0 : index
    %215 = vector.load %arg6[%c16, %c0_70] : memref<56x128xf32, #tpu.memory_space<vmem>>, vector<1x32xf32>
    %216 = vector.broadcast %215 : vector<1x32xf32> to vector<12x32xf32>
    %217 = arith.mulf %214, %216 : vector<12x32xf32>
    %c17 = arith.constant 17 : index
    %c0_71 = arith.constant 0 : index
    %218 = vector.load %arg6[%c17, %c0_71] : memref<56x128xf32, #tpu.memory_space<vmem>>, vector<1x32xf32>
    %219 = vector.broadcast %218 : vector<1x32xf32> to vector<12x32xf32>
    %220 = arith.addf %217, %219 : vector<12x32xf32>
    %c256 = arith.constant 256 : index
    %c0_72 = arith.constant 0 : index
    %221 = vector.load %arg5[%c256, %c0_72] : memref<512x128xf32, #tpu.memory_space<vmem>>, vector<32x96xf32>
    %cst_73 = arith.constant dense<0.000000e+00> : vector<12x96xf32>
    %222 = tpu.matmul %220, %221, %cst_73 {dimension_numbers = #tpu.dot_dimension_numbers<[1], [0], [0], [1], [0, 0, 1, 1], [], []>} : vector<12x32xf32>, vector<32x96xf32>, vector<12x96xf32> -> vector<12x96xf32>
    %c12 = arith.constant 12 : index
    %c0_74 = arith.constant 0 : index
    %223 = vector.load %arg6[%c12, %c0_74] : memref<56x128xf32, #tpu.memory_space<vmem>>, vector<1x96xf32>
    %224 = vector.broadcast %223 : vector<1x96xf32> to vector<12x96xf32>
    %225 = arith.addf %222, %224 : vector<12x96xf32>
    %226 = vector.extract_strided_slice %225 {offsets = [0, 0], sizes = [12, 32], strides = [1, 1]} : vector<12x96xf32> to vector<12x32xf32>
    %227 = vector.extract_strided_slice %225 {offsets = [0, 32], sizes = [12, 32], strides = [1, 1]} : vector<12x96xf32> to vector<12x32xf32>
    %228 = vector.extract_strided_slice %225 {offsets = [0, 64], sizes = [12, 32], strides = [1, 1]} : vector<12x96xf32> to vector<12x32xf32>
    %c0_75 = arith.constant 0 : index
    %c0_76 = arith.constant 0 : index
    %229 = vector.load %arg3[%c0_75, %c0_76] : memref<48x48xf32, #tpu.memory_space<vmem>>, vector<48x48xf32>
    %230 = vector.extract_strided_slice %226 {offsets = [0, 0], sizes = [12, 8], strides = [1, 1]} : vector<12x32xf32> to vector<12x8xf32>
    %231 = vector.extract_strided_slice %226 {offsets = [0, 8], sizes = [12, 8], strides = [1, 1]} : vector<12x32xf32> to vector<12x8xf32>
    %232 = vector.extract_strided_slice %226 {offsets = [0, 16], sizes = [12, 8], strides = [1, 1]} : vector<12x32xf32> to vector<12x8xf32>
    %233 = vector.extract_strided_slice %226 {offsets = [0, 24], sizes = [12, 8], strides = [1, 1]} : vector<12x32xf32> to vector<12x8xf32>
    %234 = tpu.concatenate %230, %231, %232, %233 in 0 : vector<12x8xf32>, vector<12x8xf32>, vector<12x8xf32>, vector<12x8xf32> -> vector<48x8xf32>
    %235 = vector.extract_strided_slice %227 {offsets = [0, 0], sizes = [12, 8], strides = [1, 1]} : vector<12x32xf32> to vector<12x8xf32>
    %236 = vector.extract_strided_slice %227 {offsets = [0, 8], sizes = [12, 8], strides = [1, 1]} : vector<12x32xf32> to vector<12x8xf32>
    %237 = vector.extract_strided_slice %227 {offsets = [0, 16], sizes = [12, 8], strides = [1, 1]} : vector<12x32xf32> to vector<12x8xf32>
    %238 = vector.extract_strided_slice %227 {offsets = [0, 24], sizes = [12, 8], strides = [1, 1]} : vector<12x32xf32> to vector<12x8xf32>
    %239 = tpu.concatenate %235, %236, %237, %238 in 0 : vector<12x8xf32>, vector<12x8xf32>, vector<12x8xf32>, vector<12x8xf32> -> vector<48x8xf32>
    %240 = vector.extract_strided_slice %228 {offsets = [0, 0], sizes = [12, 8], strides = [1, 1]} : vector<12x32xf32> to vector<12x8xf32>
    %241 = vector.extract_strided_slice %228 {offsets = [0, 8], sizes = [12, 8], strides = [1, 1]} : vector<12x32xf32> to vector<12x8xf32>
    %242 = vector.extract_strided_slice %228 {offsets = [0, 16], sizes = [12, 8], strides = [1, 1]} : vector<12x32xf32> to vector<12x8xf32>
    %243 = vector.extract_strided_slice %228 {offsets = [0, 24], sizes = [12, 8], strides = [1, 1]} : vector<12x32xf32> to vector<12x8xf32>
    %244 = tpu.concatenate %240, %241, %242, %243 in 0 : vector<12x8xf32>, vector<12x8xf32>, vector<12x8xf32>, vector<12x8xf32> -> vector<48x8xf32>
    %cst_77 = arith.constant dense<0.000000e+00> : vector<48x48xf32>
    %245 = tpu.matmul %234, %239, %cst_77 {dimension_numbers = #tpu.dot_dimension_numbers<[1], [1], [0], [0], [0, 0, 1, 0], [], []>} : vector<48x8xf32>, vector<48x8xf32>, vector<48x48xf32> -> vector<48x48xf32>
    %246 = arith.addf %245, %229 : vector<48x48xf32>
    %cst_78 = arith.constant dense<0xFF800000> : vector<48xf32>
    %247 = vector.multi_reduction <maximumf>, %246, %cst_78 [1] : vector<48x48xf32> to vector<48xf32>
    %248 = vector.shape_cast %247 : vector<48xf32> to vector<48x1xf32>
    %249 = vector.broadcast %248 : vector<48x1xf32> to vector<48x48xf32>
    %250 = arith.subf %246, %249 : vector<48x48xf32>
    %251 = math.exp %250 : vector<48x48xf32>
    %cst_79 = arith.constant dense<0.000000e+00> : vector<48xf32>
    %252 = vector.multi_reduction <add>, %251, %cst_79 [1] : vector<48x48xf32> to vector<48xf32>
    %253 = vector.shape_cast %252 : vector<48xf32> to vector<48x1xf32>
    %254 = vector.broadcast %253 : vector<48x1xf32> to vector<48x48xf32>
    %255 = arith.divf %251, %254 : vector<48x48xf32>
    %cst_80 = arith.constant dense<0.000000e+00> : vector<48x8xf32>
    %256 = tpu.matmul %255, %244, %cst_80 {dimension_numbers = #tpu.dot_dimension_numbers<[1], [0], [0], [1], [0, 0, 1, 1], [], []>} : vector<48x48xf32>, vector<48x8xf32>, vector<48x8xf32> -> vector<48x8xf32>
    %257 = vector.extract_strided_slice %256 {offsets = [0, 0], sizes = [12, 8], strides = [1, 1]} : vector<48x8xf32> to vector<12x8xf32>
    %258 = vector.extract_strided_slice %256 {offsets = [12, 0], sizes = [12, 8], strides = [1, 1]} : vector<48x8xf32> to vector<12x8xf32>
    %259 = vector.extract_strided_slice %256 {offsets = [24, 0], sizes = [12, 8], strides = [1, 1]} : vector<48x8xf32> to vector<12x8xf32>
    %260 = vector.extract_strided_slice %256 {offsets = [36, 0], sizes = [12, 8], strides = [1, 1]} : vector<48x8xf32> to vector<12x8xf32>
    %261 = tpu.concatenate %257, %258, %259, %260 in 1 : vector<12x8xf32>, vector<12x8xf32>, vector<12x8xf32>, vector<12x8xf32> -> vector<12x32xf32>
    %c288 = arith.constant 288 : index
    %c0_81 = arith.constant 0 : index
    %262 = vector.load %arg5[%c288, %c0_81] : memref<512x128xf32, #tpu.memory_space<vmem>>, vector<32x32xf32>
    %cst_82 = arith.constant dense<0.000000e+00> : vector<12x32xf32>
    %263 = tpu.matmul %261, %262, %cst_82 {dimension_numbers = #tpu.dot_dimension_numbers<[1], [0], [0], [1], [0, 0, 1, 1], [], []>} : vector<12x32xf32>, vector<32x32xf32>, vector<12x32xf32> -> vector<12x32xf32>
    %c13 = arith.constant 13 : index
    %c0_83 = arith.constant 0 : index
    %264 = vector.load %arg6[%c13, %c0_83] : memref<56x128xf32, #tpu.memory_space<vmem>>, vector<1x32xf32>
    %265 = vector.broadcast %264 : vector<1x32xf32> to vector<12x32xf32>
    %266 = arith.addf %263, %265 : vector<12x32xf32>
    %267 = arith.addf %196, %266 : vector<12x32xf32>
    %c320 = arith.constant 320 : index
    %c0_84 = arith.constant 0 : index
    %268 = vector.load %arg5[%c320, %c0_84] : memref<512x128xf32, #tpu.memory_space<vmem>>, vector<32x96xf32>
    %c14 = arith.constant 14 : index
    %c0_85 = arith.constant 0 : index
    %269 = vector.load %arg6[%c14, %c0_85] : memref<56x128xf32, #tpu.memory_space<vmem>>, vector<1x96xf32>
    %cst_86 = arith.constant dense<0.000000e+00> : vector<12xf32>
    %270 = vector.multi_reduction <add>, %267, %cst_86 [1] : vector<12x32xf32> to vector<12xf32>
    %271 = vector.shape_cast %270 : vector<12xf32> to vector<12x1xf32>
    %cst_87 = arith.constant 3.200000e+01 : f32
    %272 = vector.broadcast %cst_87 : f32 to vector<12x1xf32>
    %273 = arith.divf %271, %272 : vector<12x1xf32>
    %274 = vector.broadcast %273 : vector<12x1xf32> to vector<12x32xf32>
    %275 = arith.subf %267, %274 : vector<12x32xf32>
    %276 = arith.mulf %275, %275 : vector<12x32xf32>
    %cst_88 = arith.constant dense<0.000000e+00> : vector<12xf32>
    %277 = vector.multi_reduction <add>, %276, %cst_88 [1] : vector<12x32xf32> to vector<12xf32>
    %278 = vector.shape_cast %277 : vector<12xf32> to vector<12x1xf32>
    %cst_89 = arith.constant 3.200000e+01 : f32
    %279 = vector.broadcast %cst_89 : f32 to vector<12x1xf32>
    %280 = arith.divf %278, %279 : vector<12x1xf32>
    %281 = vector.broadcast %273 : vector<12x1xf32> to vector<12x32xf32>
    %282 = arith.subf %267, %281 : vector<12x32xf32>
    %cst_90 = arith.constant 9.99999997E-7 : f32
    %283 = vector.broadcast %cst_90 : f32 to vector<12x1xf32>
    %284 = arith.addf %280, %283 : vector<12x1xf32>
    %285 = math.rsqrt %284 : vector<12x1xf32>
    %286 = vector.broadcast %285 : vector<12x1xf32> to vector<12x32xf32>
    %287 = arith.mulf %282, %286 : vector<12x32xf32>
    %c18 = arith.constant 18 : index
    %c0_91 = arith.constant 0 : index
    %288 = vector.load %arg6[%c18, %c0_91] : memref<56x128xf32, #tpu.memory_space<vmem>>, vector<1x32xf32>
    %289 = vector.broadcast %288 : vector<1x32xf32> to vector<12x32xf32>
    %290 = arith.mulf %287, %289 : vector<12x32xf32>
    %c19 = arith.constant 19 : index
    %c0_92 = arith.constant 0 : index
    %291 = vector.load %arg6[%c19, %c0_92] : memref<56x128xf32, #tpu.memory_space<vmem>>, vector<1x32xf32>
    %292 = vector.broadcast %291 : vector<1x32xf32> to vector<12x32xf32>
    %293 = arith.addf %290, %292 : vector<12x32xf32>
    %294 = vector.extract_strided_slice %268 {offsets = [0, 0], sizes = [32, 32], strides = [1, 1]} : vector<32x96xf32> to vector<32x32xf32>
    %cst_93 = arith.constant dense<0.000000e+00> : vector<12x32xf32>
    %295 = tpu.matmul %293, %294, %cst_93 {dimension_numbers = #tpu.dot_dimension_numbers<[1], [0], [0], [1], [0, 0, 1, 1], [], []>} : vector<12x32xf32>, vector<32x32xf32>, vector<12x32xf32> -> vector<12x32xf32>
    %296 = vector.extract_strided_slice %269 {offsets = [0, 0], sizes = [1, 32], strides = [1, 1]} : vector<1x96xf32> to vector<1x32xf32>
    %297 = vector.broadcast %296 : vector<1x32xf32> to vector<12x32xf32>
    %298 = arith.addf %295, %297 : vector<12x32xf32>
    %299 = vector.extract_strided_slice %268 {offsets = [0, 32], sizes = [32, 64], strides = [1, 1]} : vector<32x96xf32> to vector<32x64xf32>
    %cst_94 = arith.constant dense<0.000000e+00> : vector<16x64xf32>
    %300 = tpu.matmul %186, %299, %cst_94 {dimension_numbers = #tpu.dot_dimension_numbers<[1], [0], [0], [1], [0, 0, 1, 1], [], []>} : vector<16x32xf32>, vector<32x64xf32>, vector<16x64xf32> -> vector<16x64xf32>
    %301 = vector.extract_strided_slice %269 {offsets = [0, 32], sizes = [1, 64], strides = [1, 1]} : vector<1x96xf32> to vector<1x64xf32>
    %302 = vector.broadcast %301 : vector<1x64xf32> to vector<16x64xf32>
    %303 = arith.addf %300, %302 : vector<16x64xf32>
    %304 = vector.extract_strided_slice %303 {offsets = [0, 0], sizes = [16, 32], strides = [1, 1]} : vector<16x64xf32> to vector<16x32xf32>
    %305 = vector.extract_strided_slice %303 {offsets = [0, 32], sizes = [16, 32], strides = [1, 1]} : vector<16x64xf32> to vector<16x32xf32>
    %c0_95 = arith.constant 0 : index
    %c0_96 = arith.constant 0 : index
    %306 = vector.load %arg4[%c0_95, %c0_96] : memref<48x64xf32, #tpu.memory_space<vmem>>, vector<48x64xf32>
    %307 = vector.extract_strided_slice %298 {offsets = [0, 0], sizes = [12, 8], strides = [1, 1]} : vector<12x32xf32> to vector<12x8xf32>
    %308 = vector.extract_strided_slice %298 {offsets = [0, 8], sizes = [12, 8], strides = [1, 1]} : vector<12x32xf32> to vector<12x8xf32>
    %309 = vector.extract_strided_slice %298 {offsets = [0, 16], sizes = [12, 8], strides = [1, 1]} : vector<12x32xf32> to vector<12x8xf32>
    %310 = vector.extract_strided_slice %298 {offsets = [0, 24], sizes = [12, 8], strides = [1, 1]} : vector<12x32xf32> to vector<12x8xf32>
    %311 = tpu.concatenate %307, %308, %309, %310 in 0 : vector<12x8xf32>, vector<12x8xf32>, vector<12x8xf32>, vector<12x8xf32> -> vector<48x8xf32>
    %312 = vector.extract_strided_slice %304 {offsets = [0, 0], sizes = [16, 8], strides = [1, 1]} : vector<16x32xf32> to vector<16x8xf32>
    %313 = vector.extract_strided_slice %304 {offsets = [0, 8], sizes = [16, 8], strides = [1, 1]} : vector<16x32xf32> to vector<16x8xf32>
    %314 = vector.extract_strided_slice %304 {offsets = [0, 16], sizes = [16, 8], strides = [1, 1]} : vector<16x32xf32> to vector<16x8xf32>
    %315 = vector.extract_strided_slice %304 {offsets = [0, 24], sizes = [16, 8], strides = [1, 1]} : vector<16x32xf32> to vector<16x8xf32>
    %316 = tpu.concatenate %312, %313, %314, %315 in 0 : vector<16x8xf32>, vector<16x8xf32>, vector<16x8xf32>, vector<16x8xf32> -> vector<64x8xf32>
    %317 = vector.extract_strided_slice %305 {offsets = [0, 0], sizes = [16, 8], strides = [1, 1]} : vector<16x32xf32> to vector<16x8xf32>
    %318 = vector.extract_strided_slice %305 {offsets = [0, 8], sizes = [16, 8], strides = [1, 1]} : vector<16x32xf32> to vector<16x8xf32>
    %319 = vector.extract_strided_slice %305 {offsets = [0, 16], sizes = [16, 8], strides = [1, 1]} : vector<16x32xf32> to vector<16x8xf32>
    %320 = vector.extract_strided_slice %305 {offsets = [0, 24], sizes = [16, 8], strides = [1, 1]} : vector<16x32xf32> to vector<16x8xf32>
    %321 = tpu.concatenate %317, %318, %319, %320 in 0 : vector<16x8xf32>, vector<16x8xf32>, vector<16x8xf32>, vector<16x8xf32> -> vector<64x8xf32>
    %cst_97 = arith.constant dense<0.000000e+00> : vector<48x64xf32>
    %322 = tpu.matmul %311, %316, %cst_97 {dimension_numbers = #tpu.dot_dimension_numbers<[1], [1], [0], [0], [0, 0, 1, 0], [], []>} : vector<48x8xf32>, vector<64x8xf32>, vector<48x64xf32> -> vector<48x64xf32>
    %323 = arith.addf %322, %306 : vector<48x64xf32>
    %cst_98 = arith.constant dense<0xFF800000> : vector<48xf32>
    %324 = vector.multi_reduction <maximumf>, %323, %cst_98 [1] : vector<48x64xf32> to vector<48xf32>
    %325 = vector.shape_cast %324 : vector<48xf32> to vector<48x1xf32>
    %326 = vector.broadcast %325 : vector<48x1xf32> to vector<48x64xf32>
    %327 = arith.subf %323, %326 : vector<48x64xf32>
    %328 = math.exp %327 : vector<48x64xf32>
    %cst_99 = arith.constant dense<0.000000e+00> : vector<48xf32>
    %329 = vector.multi_reduction <add>, %328, %cst_99 [1] : vector<48x64xf32> to vector<48xf32>
    %330 = vector.shape_cast %329 : vector<48xf32> to vector<48x1xf32>
    %331 = vector.broadcast %330 : vector<48x1xf32> to vector<48x64xf32>
    %332 = arith.divf %328, %331 : vector<48x64xf32>
    %cst_100 = arith.constant dense<0.000000e+00> : vector<48x8xf32>
    %333 = tpu.matmul %332, %321, %cst_100 {dimension_numbers = #tpu.dot_dimension_numbers<[1], [0], [0], [1], [0, 0, 1, 1], [], []>} : vector<48x64xf32>, vector<64x8xf32>, vector<48x8xf32> -> vector<48x8xf32>
    %334 = vector.extract_strided_slice %333 {offsets = [0, 0], sizes = [12, 8], strides = [1, 1]} : vector<48x8xf32> to vector<12x8xf32>
    %335 = vector.extract_strided_slice %333 {offsets = [12, 0], sizes = [12, 8], strides = [1, 1]} : vector<48x8xf32> to vector<12x8xf32>
    %336 = vector.extract_strided_slice %333 {offsets = [24, 0], sizes = [12, 8], strides = [1, 1]} : vector<48x8xf32> to vector<12x8xf32>
    %337 = vector.extract_strided_slice %333 {offsets = [36, 0], sizes = [12, 8], strides = [1, 1]} : vector<48x8xf32> to vector<12x8xf32>
    %338 = tpu.concatenate %334, %335, %336, %337 in 1 : vector<12x8xf32>, vector<12x8xf32>, vector<12x8xf32>, vector<12x8xf32> -> vector<12x32xf32>
    %c352 = arith.constant 352 : index
    %c0_101 = arith.constant 0 : index
    %339 = vector.load %arg5[%c352, %c0_101] : memref<512x128xf32, #tpu.memory_space<vmem>>, vector<32x32xf32>
    %cst_102 = arith.constant dense<0.000000e+00> : vector<12x32xf32>
    %340 = tpu.matmul %338, %339, %cst_102 {dimension_numbers = #tpu.dot_dimension_numbers<[1], [0], [0], [1], [0, 0, 1, 1], [], []>} : vector<12x32xf32>, vector<32x32xf32>, vector<12x32xf32> -> vector<12x32xf32>
    %c15 = arith.constant 15 : index
    %c0_103 = arith.constant 0 : index
    %341 = vector.load %arg6[%c15, %c0_103] : memref<56x128xf32, #tpu.memory_space<vmem>>, vector<1x32xf32>
    %342 = vector.broadcast %341 : vector<1x32xf32> to vector<12x32xf32>
    %343 = arith.addf %340, %342 : vector<12x32xf32>
    %344 = arith.addf %267, %343 : vector<12x32xf32>
    %cst_104 = arith.constant dense<0.000000e+00> : vector<12xf32>
    %345 = vector.multi_reduction <add>, %344, %cst_104 [1] : vector<12x32xf32> to vector<12xf32>
    %346 = vector.shape_cast %345 : vector<12xf32> to vector<12x1xf32>
    %cst_105 = arith.constant 3.200000e+01 : f32
    %347 = vector.broadcast %cst_105 : f32 to vector<12x1xf32>
    %348 = arith.divf %346, %347 : vector<12x1xf32>
    %349 = vector.broadcast %348 : vector<12x1xf32> to vector<12x32xf32>
    %350 = arith.subf %344, %349 : vector<12x32xf32>
    %351 = arith.mulf %350, %350 : vector<12x32xf32>
    %cst_106 = arith.constant dense<0.000000e+00> : vector<12xf32>
    %352 = vector.multi_reduction <add>, %351, %cst_106 [1] : vector<12x32xf32> to vector<12xf32>
    %353 = vector.shape_cast %352 : vector<12xf32> to vector<12x1xf32>
    %cst_107 = arith.constant 3.200000e+01 : f32
    %354 = vector.broadcast %cst_107 : f32 to vector<12x1xf32>
    %355 = arith.divf %353, %354 : vector<12x1xf32>
    %356 = vector.broadcast %348 : vector<12x1xf32> to vector<12x32xf32>
    %357 = arith.subf %344, %356 : vector<12x32xf32>
    %cst_108 = arith.constant 9.99999997E-7 : f32
    %358 = vector.broadcast %cst_108 : f32 to vector<12x1xf32>
    %359 = arith.addf %355, %358 : vector<12x1xf32>
    %360 = math.rsqrt %359 : vector<12x1xf32>
    %361 = vector.broadcast %360 : vector<12x1xf32> to vector<12x32xf32>
    %362 = arith.mulf %357, %361 : vector<12x32xf32>
    %c20 = arith.constant 20 : index
    %c0_109 = arith.constant 0 : index
    %363 = vector.load %arg6[%c20, %c0_109] : memref<56x128xf32, #tpu.memory_space<vmem>>, vector<1x32xf32>
    %364 = vector.broadcast %363 : vector<1x32xf32> to vector<12x32xf32>
    %365 = arith.mulf %362, %364 : vector<12x32xf32>
    %c21 = arith.constant 21 : index
    %c0_110 = arith.constant 0 : index
    %366 = vector.load %arg6[%c21, %c0_110] : memref<56x128xf32, #tpu.memory_space<vmem>>, vector<1x32xf32>
    %367 = vector.broadcast %366 : vector<1x32xf32> to vector<12x32xf32>
    %368 = arith.addf %365, %367 : vector<12x32xf32>
    %c384 = arith.constant 384 : index
    %c0_111 = arith.constant 0 : index
    %369 = vector.load %arg5[%c384, %c0_111] : memref<512x128xf32, #tpu.memory_space<vmem>>, vector<32x64xf32>
    %cst_112 = arith.constant dense<0.000000e+00> : vector<12x64xf32>
    %370 = tpu.matmul %368, %369, %cst_112 {dimension_numbers = #tpu.dot_dimension_numbers<[1], [0], [0], [1], [0, 0, 1, 1], [], []>} : vector<12x32xf32>, vector<32x64xf32>, vector<12x64xf32> -> vector<12x64xf32>
    %c24 = arith.constant 24 : index
    %c0_113 = arith.constant 0 : index
    %371 = vector.load %arg6[%c24, %c0_113] : memref<56x128xf32, #tpu.memory_space<vmem>>, vector<1x64xf32>
    %372 = vector.broadcast %371 : vector<1x64xf32> to vector<12x64xf32>
    %373 = arith.addf %370, %372 : vector<12x64xf32>
    %cst_114 = arith.constant 0.000000e+00 : f32
    %374 = vector.broadcast %cst_114 : f32 to vector<12x64xf32>
    %375 = arith.maximumf %373, %374 : vector<12x64xf32>
    %c416 = arith.constant 416 : index
    %c0_115 = arith.constant 0 : index
    %376 = vector.load %arg5[%c416, %c0_115] : memref<512x128xf32, #tpu.memory_space<vmem>>, vector<64x32xf32>
    %cst_116 = arith.constant dense<0.000000e+00> : vector<12x32xf32>
    %377 = tpu.matmul %375, %376, %cst_116 {dimension_numbers = #tpu.dot_dimension_numbers<[1], [0], [0], [1], [0, 0, 1, 1], [], []>} : vector<12x64xf32>, vector<64x32xf32>, vector<12x32xf32> -> vector<12x32xf32>
    %c25 = arith.constant 25 : index
    %c0_117 = arith.constant 0 : index
    %378 = vector.load %arg6[%c25, %c0_117] : memref<56x128xf32, #tpu.memory_space<vmem>>, vector<1x32xf32>
    %379 = vector.broadcast %378 : vector<1x32xf32> to vector<12x32xf32>
    %380 = arith.addf %377, %379 : vector<12x32xf32>
    %381 = arith.addf %344, %380 : vector<12x32xf32>
    %cst_118 = arith.constant dense<0.000000e+00> : vector<12xf32>
    %382 = vector.multi_reduction <add>, %381, %cst_118 [1] : vector<12x32xf32> to vector<12xf32>
    %383 = vector.shape_cast %382 : vector<12xf32> to vector<12x1xf32>
    %cst_119 = arith.constant 3.200000e+01 : f32
    %384 = vector.broadcast %cst_119 : f32 to vector<12x1xf32>
    %385 = arith.divf %383, %384 : vector<12x1xf32>
    %386 = vector.broadcast %385 : vector<12x1xf32> to vector<12x32xf32>
    %387 = arith.subf %381, %386 : vector<12x32xf32>
    %388 = arith.mulf %387, %387 : vector<12x32xf32>
    %cst_120 = arith.constant dense<0.000000e+00> : vector<12xf32>
    %389 = vector.multi_reduction <add>, %388, %cst_120 [1] : vector<12x32xf32> to vector<12xf32>
    %390 = vector.shape_cast %389 : vector<12xf32> to vector<12x1xf32>
    %cst_121 = arith.constant 3.200000e+01 : f32
    %391 = vector.broadcast %cst_121 : f32 to vector<12x1xf32>
    %392 = arith.divf %390, %391 : vector<12x1xf32>
    %393 = vector.broadcast %385 : vector<12x1xf32> to vector<12x32xf32>
    %394 = arith.subf %381, %393 : vector<12x32xf32>
    %cst_122 = arith.constant 9.99999997E-7 : f32
    %395 = vector.broadcast %cst_122 : f32 to vector<12x1xf32>
    %396 = arith.addf %392, %395 : vector<12x1xf32>
    %397 = math.rsqrt %396 : vector<12x1xf32>
    %398 = vector.broadcast %397 : vector<12x1xf32> to vector<12x32xf32>
    %399 = arith.mulf %394, %398 : vector<12x32xf32>
    %c22 = arith.constant 22 : index
    %c0_123 = arith.constant 0 : index
    %400 = vector.load %arg6[%c22, %c0_123] : memref<56x128xf32, #tpu.memory_space<vmem>>, vector<1x32xf32>
    %401 = vector.broadcast %400 : vector<1x32xf32> to vector<12x32xf32>
    %402 = arith.mulf %399, %401 : vector<12x32xf32>
    %c23 = arith.constant 23 : index
    %c0_124 = arith.constant 0 : index
    %403 = vector.load %arg6[%c23, %c0_124] : memref<56x128xf32, #tpu.memory_space<vmem>>, vector<1x32xf32>
    %404 = vector.broadcast %403 : vector<1x32xf32> to vector<12x32xf32>
    %405 = arith.addf %402, %404 : vector<12x32xf32>
    %c480 = arith.constant 480 : index
    %c0_125 = arith.constant 0 : index
    %406 = vector.load %arg5[%c480, %c0_125] : memref<512x128xf32, #tpu.memory_space<vmem>>, vector<32x128xf32>
    %cst_126 = arith.constant dense<0.000000e+00> : vector<12x128xf32>
    %407 = tpu.matmul %405, %406, %cst_126 {dimension_numbers = #tpu.dot_dimension_numbers<[1], [0], [0], [1], [0, 0, 1, 1], [], []>} : vector<12x32xf32>, vector<32x128xf32>, vector<12x128xf32> -> vector<12x128xf32>
    %c26 = arith.constant 26 : index
    %c0_127 = arith.constant 0 : index
    %408 = vector.load %arg6[%c26, %c0_127] : memref<56x128xf32, #tpu.memory_space<vmem>>, vector<1x128xf32>
    %409 = vector.broadcast %408 : vector<1x128xf32> to vector<12x128xf32>
    %410 = arith.addf %407, %409 : vector<12x128xf32>
    %c0_128 = arith.constant 0 : index
    %c0_129 = arith.constant 0 : index
    %411 = vector.load %arg7[%c0_128, %c0_129] : memref<12x128xf32, #tpu.memory_space<vmem>>, vector<12x128xf32>
    tpu.vector_store %arg7[%c0_128, %c0_129], %410 {strides = array<i32>} : memref<12x128xf32, #tpu.memory_space<vmem>>, vector<12x128xf32>,
    return
  }
}

</mosaic_0001>

<llo_original>
// kernel: tile.28
$region0: #{tile.28}
  #allocation0 [shape = 's32[1]{0}', space=sflag, size = 0x4, scoped, tag = 'scoped memory for tile.28']
  %s0 = inlined_call_operand.vmem [shape: f32[16,16], index: 0, kind: input, shape index: {}]
  %s1 = inlined_call_operand.vmem [shape: f32[4,16,4,16], index: 1, kind: output, shape index: {}]
  // Predicated region
  $region2: #{tile.28} parent=0 // pred_check
    _
  $region3: #{tile.28} parent=0 // pred_check_branch
    %3 = sbr.rel (0) target = $region5
  $region4: #{tile.28} parent=0 // pred_region
    _
  $region5: #{tile.28} parent=0 // pred_fallthru
    _
  %v4 = vld [vmem:[%s0] ss:$0 sm:$0xff]
  %5 = vst [vmem:[%s1] sm:$0xf] %v4
  %s6 = scalar_lea.vmem %s1, 64
  %7 = vst [vmem:[%s6] sm:$0xf] %v4
  %s8 = scalar_lea.vmem %s1, 128
  %9 = vst [vmem:[%s8] sm:$0xf] %v4
  %s10 = scalar_lea.vmem %s1, 192
  %11 = vst [vmem:[%s10] sm:$0xf] %v4
  %s12 = scalar_lea.vmem %s0, 1
  %v13 = vld [vmem:[%s12] ss:$0 sm:$0xff]
  %s14 = scalar_lea.vmem %s1, 4
  %15 = vst [vmem:[%s14] sm:$0xf] %v13
  %s16 = scalar_lea.vmem %s1, 68
  %17 = vst [vmem:[%s16] sm:$0xf] %v13
  %s18 = scalar_lea.vmem %s1, 132
  %19 = vst [vmem:[%s18] sm:$0xf] %v13
  %s20 = scalar_lea.vmem %s1, 196
  %21 = vst [vmem:[%s20] sm:$0xf] %v13
  %s22 = scalar_lea.vmem %s0, 2
  %v23 = vld [vmem:[%s22] ss:$0 sm:$0xff]
  %s24 = scalar_lea.vmem %s1, 8
  %25 = vst [vmem:[%s24] sm:$0xf] %v23
  %s26 = scalar_lea.vmem %s1, 72
  %27 = vst [vmem:[%s26] sm:$0xf] %v23
  %s28 = scalar_lea.vmem %s1, 136
  %29 = vst [vmem:[%s28] sm:$0xf] %v23
  %s30 = scalar_lea.vmem %s1, 200
  %31 = vst [vmem:[%s30] sm:$0xf] %v23
  %s32 = scalar_lea.vmem %s0, 3
  %v33 = vld [vmem:[%s32] ss:$0 sm:$0xff]
  %s34 = scalar_lea.vmem %s1, 12
  %35 = vst [vmem:[%s34] sm:$0xf] %v33
  %s36 = scalar_lea.vmem %s1, 76
  %37 = vst [vmem:[%s36] sm:$0xf] %v33
  %s38 = scalar_lea.vmem %s1, 140
  %39 = vst [vmem:[%s38] sm:$0xf] %v33
  %s40 = scalar_lea.vmem %s1, 204
  %41 = vst [vmem:[%s40] sm:$0xf] %v33
  %s42 = scalar_lea.vmem %s0, 4
  %v43 = vld [vmem:[%s42] ss:$0 sm:$0xff]
  %s44 = scalar_lea.vmem %s1, 16
  %45 = vst [vmem:[%s44] sm:$0xf] %v43
  %s46 = scalar_lea.vmem %s1, 80
  %47 = vst [vmem:[%s46] sm:$0xf] %v43
  %s48 = scalar_lea.vmem %s1, 144
  %49 = vst [vmem:[%s48] sm:$0xf] %v43
  %s50 = scalar_lea.vmem %s1, 208
  %51 = vst [vmem:[%s50] sm:$0xf] %v43
  %s52 = scalar_lea.vmem %s0, 5
  %v53 = vld [vmem:[%s52] ss:$0 sm:$0xff]
  %s54 = scalar_lea.vmem %s1, 20
  %55 = vst [vmem:[%s54] sm:$0xf] %v53
  %s56 = scalar_lea.vmem %s1, 84
  %57 = vst [vmem:[%s56] sm:$0xf] %v53
  %s58 = scalar_lea.vmem %s1, 148
  %59 = vst [vmem:[%s58] sm:$0xf] %v53
  %s60 = scalar_lea.vmem %s1, 212
  %61 = vst [vmem:[%s60] sm:$0xf] %v53
  %s62 = scalar_lea.vmem %s0, 6
  %v63 = vld [vmem:[%s62] ss:$0 sm:$0xff]
  %s64 = scalar_lea.vmem %s1, 24
  %65 = vst [vmem:[%s64] sm:$0xf] %v63
  %s66 = scalar_lea.vmem %s1, 88
  %67 = vst [vmem:[%s66] sm:$0xf] %v63
  %s68 = scalar_lea.vmem %s1, 152
  %69 = vst [vmem:[%s68] sm:$0xf] %v63
  %s70 = scalar_lea.vmem %s1, 216
  %71 = vst [vmem:[%s70] sm:$0xf] %v63
  %s72 = scalar_lea.vmem %s0, 7
  %v73 = vld [vmem:[%s72] ss:$0 sm:$0xff]
  %s74 = scalar_lea.vmem %s1, 28
  %75 = vst [vmem:[%s74] sm:$0xf] %v73
  %s76 = scalar_lea.vmem %s1, 92
  %77 = vst [vmem:[%s76] sm:$0xf] %v73
  %s78 = scalar_lea.vmem %s1, 156
  %79 = vst [vmem:[%s78] sm:$0xf] %v73
  %s80 = scalar_lea.vmem %s1, 220
  %81 = vst [vmem:[%s80] sm:$0xf] %v73
  %s82 = scalar_lea.vmem %s0, 8
  %v83 = vld [vmem:[%s82] ss:$0 sm:$0xff]
  %s84 = scalar_lea.vmem %s1, 32
  %85 = vst [vmem:[%s84] sm:$0xf] %v83
  %s86 = scalar_lea.vmem %s1, 96
  %87 = vst [vmem:[%s86] sm:$0xf] %v83
  %s88 = scalar_lea.vmem %s1, 160
  %89 = vst [vmem:[%s88] sm:$0xf] %v83
  %s90 = scalar_lea.vmem %s1, 224
  %91 = vst [vmem:[%s90] sm:$0xf] %v83
  %s92 = scalar_lea.vmem %s0, 8
  %s93 = scalar_lea.vmem %s92, 1
  %v94 = vld [vmem:[%s93] ss:$0 sm:$0xff]
  %s95 = scalar_lea.vmem %s1, 36
  %96 = vst [vmem:[%s95] sm:$0xf] %v94
  %s97 = scalar_lea.vmem %s1, 100
  %98 = vst [vmem:[%s97] sm:$0xf] %v94
  %s99 = scalar_lea.vmem %s1, 164
  %100 = vst [vmem:[%s99] sm:$0xf] %v94
  %s101 = scalar_lea.vmem %s1, 228
  %102 = vst [vmem:[%s101] sm:$0xf] %v94
  %s103 = scalar_lea.vmem %s0, 8
  %s104 = scalar_lea.vmem %s103, 2
  %v105 = vld [vmem:[%s104] ss:$0 sm:$0xff]
  %s106 = scalar_lea.vmem %s1, 40
  %107 = vst [vmem:[%s106] sm:$0xf] %v105
  %s108 = scalar_lea.vmem %s1, 104
  %109 = vst [vmem:[%s108] sm:$0xf] %v105
  %s110 = scalar_lea.vmem %s1, 168
  %111 = vst [vmem:[%s110] sm:$0xf] %v105
  %s112 = scalar_lea.vmem %s1, 232
  %113 = vst [vmem:[%s112] sm:$0xf] %v105
  %s114 = scalar_lea.vmem %s0, 8
  %s115 = scalar_lea.vmem %s114, 3
  %v116 = vld [vmem:[%s115] ss:$0 sm:$0xff]
  %s117 = scalar_lea.vmem %s1, 44
  %118 = vst [vmem:[%s117] sm:$0xf] %v116
  %s119 = scalar_lea.vmem %s1, 108
  %120 = vst [vmem:[%s119] sm:$0xf] %v116
  %s121 = scalar_lea.vmem %s1, 172
  %122 = vst [vmem:[%s121] sm:$0xf] %v116
  %s123 = scalar_lea.vmem %s1, 236
  %124 = vst [vmem:[%s123] sm:$0xf] %v116
  %s125 = scalar_lea.vmem %s0, 8
  %s126 = scalar_lea.vmem %s125, 4
  %v127 = vld [vmem:[%s126] ss:$0 sm:$0xff]
  %s128 = scalar_lea.vmem %s1, 48
  %129 = vst [vmem:[%s128] sm:$0xf] %v127
  %s130 = scalar_lea.vmem %s1, 112
  %131 = vst [vmem:[%s130] sm:$0xf] %v127
  %s132 = scalar_lea.vmem %s1, 176
  %133 = vst [vmem:[%s132] sm:$0xf] %v127
  %s134 = scalar_lea.vmem %s1, 240
  %135 = vst [vmem:[%s134] sm:$0xf] %v127
  %s136 = scalar_lea.vmem %s0, 8
  %s137 = scalar_lea.vmem %s136, 5
  %v138 = vld [vmem:[%s137] ss:$0 sm:$0xff]
  %s139 = scalar_lea.vmem %s1, 52
  %140 = vst [vmem:[%s139] sm:$0xf] %v138
  %s141 = scalar_lea.vmem %s1, 116
  %142 = vst [vmem:[%s141] sm:$0xf] %v138
  %s143 = scalar_lea.vmem %s1, 180
  %144 = vst [vmem:[%s143] sm:$0xf] %v138
  %s145 = scalar_lea.vmem %s1, 244
  %146 = vst [vmem:[%s145] sm:$0xf] %v138
  %s147 = scalar_lea.vmem %s0, 8
  %s148 = scalar_lea.vmem %s147, 6
  %v149 = vld [vmem:[%s148] ss:$0 sm:$0xff]
  %s150 = scalar_lea.vmem %s1, 56
  %151 = vst [vmem:[%s150] sm:$0xf] %v149
  %s152 = scalar_lea.vmem %s1, 120
  %153 = vst [vmem:[%s152] sm:$0xf] %v149
  %s154 = scalar_lea.vmem %s1, 184
  %155 = vst [vmem:[%s154] sm:$0xf] %v149
  %s156 = scalar_lea.vmem %s1, 248
  %157 = vst [vmem:[%s156] sm:$0xf] %v149
  %s158 = scalar_lea.vmem %s0, 8
  %s159 = scalar_lea.vmem %s158, 7
  %v160 = vld [vmem:[%s159] ss:$0 sm:$0xff]
  %s161 = scalar_lea.vmem %s1, 60
  %162 = vst [vmem:[%s161] sm:$0xf] %v160
  %s163 = scalar_lea.vmem %s1, 124
  %164 = vst [vmem:[%s163] sm:$0xf] %v160
  %s165 = scalar_lea.vmem %s1, 188
  %166 = vst [vmem:[%s165] sm:$0xf] %v160
  %s167 = scalar_lea.vmem %s1, 252
  %168 = vst [vmem:[%s167] sm:$0xf] %v160

// kernel: tile.29
$region0: #{tile.29}
  %s0 = inlined_call_operand.vmem [shape: f32[4,16,4,16], index: 0, kind: input, shape index: {}]
  %s1 = inlined_call_operand.vmem [shape: f32[64,64], index: 1, kind: output, shape index: {}]
  $region1: #{tile.29} parent=0
    #allocation0 [shape = 'u8[262144]{0}', space=vmem, size = 0x40000, scoped, tag = 'scoped mem for input reshape']
    %s3 = ssub.s32 16, 1
    %s4 = scalar_lea.vmem %s0, 252
    %v5 = vld [vmem:[%s4] sm:%s3]
    %s6 = scalar_lea.vmem [#allocation0], 504
    %7 = vst [vmem:[%s6] sm:%s3] %v5
    %s8 = scalar_lea.vmem %s0, 248
    %v9 = vld [vmem:[%s8] sm:%s3]
    %s10 = scalar_lea.vmem [#allocation0], 496
    %11 = vst [vmem:[%s10] sm:%s3] %v9
    %s12 = scalar_lea.vmem %s0, 244
    %v13 = vld [vmem:[%s12] sm:%s3]
    %s14 = scalar_lea.vmem [#allocation0], 488
    %15 = vst [vmem:[%s14] sm:%s3] %v13
    %s16 = scalar_lea.vmem %s0, 240
    %v17 = vld [vmem:[%s16] sm:%s3]
    %s18 = scalar_lea.vmem [#allocation0], 480
    %19 = vst [vmem:[%s18] sm:%s3] %v17
    %s20 = scalar_lea.vmem %s0, 236
    %v21 = vld [vmem:[%s20] sm:%s3]
    %s22 = scalar_lea.vmem [#allocation0], 472
    %23 = vst [vmem:[%s22] sm:%s3] %v21
    %s24 = scalar_lea.vmem %s0, 232
    %v25 = vld [vmem:[%s24] sm:%s3]
    %s26 = scalar_lea.vmem [#allocation0], 464
    %27 = vst [vmem:[%s26] sm:%s3] %v25
    %s28 = scalar_lea.vmem %s0, 228
    %v29 = vld [vmem:[%s28] sm:%s3]
    %s30 = scalar_lea.vmem [#allocation0], 456
    %31 = vst [vmem:[%s30] sm:%s3] %v29
    %s32 = scalar_lea.vmem %s0, 224
    %v33 = vld [vmem:[%s32] sm:%s3]
    %s34 = scalar_lea.vmem [#allocation0], 448
    %35 = vst [vmem:[%s34] sm:%s3] %v33
    %s36 = scalar_lea.vmem %s0, 220
    %v37 = vld [vmem:[%s36] sm:%s3]
    %s38 = scalar_lea.vmem [#allocation0], 440
    %39 = vst [vmem:[%s38] sm:%s3] %v37
    %s40 = scalar_lea.vmem %s0, 216
    %v41 = vld [vmem:[%s40] sm:%s3]
    %s42 = scalar_lea.vmem [#allocation0], 432
    %43 = vst [vmem:[%s42] sm:%s3] %v41
    %s44 = scalar_lea.vmem %s0, 212
    %v45 = vld [vmem:[%s44] sm:%s3]
    %s46 = scalar_lea.vmem [#allocation0], 424
    %47 = vst [vmem:[%s46] sm:%s3] %v45
    %s48 = scalar_lea.vmem %s0, 208
    %v49 = vld [vmem:[%s48] sm:%s3]
    %s50 = scalar_lea.vmem [#allocation0], 416
    %51 = vst [vmem:[%s50] sm:%s3] %v49
    %s52 = scalar_lea.vmem %s0, 204
    %v53 = vld [vmem:[%s52] sm:%s3]
    %s54 = scalar_lea.vmem [#allocation0], 408
    %55 = vst [vmem:[%s54] sm:%s3] %v53
    %s56 = scalar_lea.vmem %s0, 200
    %v57 = vld [vmem:[%s56] sm:%s3]
    %s58 = scalar_lea.vmem [#allocation0], 400
    %59 = vst [vmem:[%s58] sm:%s3] %v57
    %s60 = scalar_lea.vmem %s0, 196
    %v61 = vld [vmem:[%s60] sm:%s3]
    %s62 = scalar_lea.vmem [#allocation0], 392
    %63 = vst [vmem:[%s62] sm:%s3] %v61
    %s64 = scalar_lea.vmem %s0, 192
    %v65 = vld [vmem:[%s64] sm:%s3]
    %s66 = scalar_lea.vmem [#allocation0], 384
    %67 = vst [vmem:[%s66] sm:%s3] %v65
    %s68 = scalar_lea.vmem %s0, 188
    %v69 = vld [vmem:[%s68] sm:%s3]
    %s70 = scalar_lea.vmem [#allocation0], 376
    %71 = vst [vmem:[%s70] sm:%s3] %v69
    %s72 = scalar_lea.vmem %s0, 184
    %v73 = vld [vmem:[%s72] sm:%s3]
    %s74 = scalar_lea.vmem [#allocation0], 368
    %75 = vst [vmem:[%s74] sm:%s3] %v73
    %s76 = scalar_lea.vmem %s0, 180
    %v77 = vld [vmem:[%s76] sm:%s3]
    %s78 = scalar_lea.vmem [#allocation0], 360
    %79 = vst [vmem:[%s78] sm:%s3] %v77
    %s80 = scalar_lea.vmem %s0, 176
    %v81 = vld [vmem:[%s80] sm:%s3]
    %s82 = scalar_lea.vmem [#allocation0], 352
    %83 = vst [vmem:[%s82] sm:%s3] %v81
    %s84 = scalar_lea.vmem %s0, 172
    %v85 = vld [vmem:[%s84] sm:%s3]
    %s86 = scalar_lea.vmem [#allocation0], 344
    %87 = vst [vmem:[%s86] sm:%s3] %v85
    %s88 = scalar_lea.vmem %s0, 168
    %v89 = vld [vmem:[%s88] sm:%s3]
    %s90 = scalar_lea.vmem [#allocation0], 336
    %91 = vst [vmem:[%s90] sm:%s3] %v89
    %s92 = scalar_lea.vmem %s0, 164
    %v93 = vld [vmem:[%s92] sm:%s3]
    %s94 = scalar_lea.vmem [#allocation0], 328
    %95 = vst [vmem:[%s94] sm:%s3] %v93
    %s96 = scalar_lea.vmem %s0, 160
    %v97 = vld [vmem:[%s96] sm:%s3]
    %s98 = scalar_lea.vmem [#allocation0], 320
    %99 = vst [vmem:[%s98] sm:%s3] %v97
    %s100 = scalar_lea.vmem %s0, 156
    %v101 = vld [vmem:[%s100] sm:%s3]
    %s102 = scalar_lea.vmem [#allocation0], 312
    %103 = vst [vmem:[%s102] sm:%s3] %v101
    %s104 = scalar_lea.vmem %s0, 152
    %v105 = vld [vmem:[%s104] sm:%s3]
    %s106 = scalar_lea.vmem [#allocation0], 304
    %107 = vst [vmem:[%s106] sm:%s3] %v105
    %s108 = scalar_lea.vmem %s0, 148
    %v109 = vld [vmem:[%s108] sm:%s3]
    %s110 = scalar_lea.vmem [#allocation0], 296
    %111 = vst [vmem:[%s110] sm:%s3] %v109
    %s112 = scalar_lea.vmem %s0, 144
    %v113 = vld [vmem:[%s112] sm:%s3]
    %s114 = scalar_lea.vmem [#allocation0], 288
    %115 = vst [vmem:[%s114] sm:%s3] %v113
    %s116 = scalar_lea.vmem %s0, 140
    %v117 = vld [vmem:[%s116] sm:%s3]
    %s118 = scalar_lea.vmem [#allocation0], 280
    %119 = vst [vmem:[%s118] sm:%s3] %v117
    %s120 = scalar_lea.vmem %s0, 136
    %v121 = vld [vmem:[%s120] sm:%s3]
    %s122 = scalar_lea.vmem [#allocation0], 272
    %123 = vst [vmem:[%s122] sm:%s3] %v121
    %s124 = scalar_lea.vmem %s0, 132
    %v125 = vld [vmem:[%s124] sm:%s3]
    %s126 = scalar_lea.vmem [#allocation0], 264
    %127 = vst [vmem:[%s126] sm:%s3] %v125
    %s128 = scalar_lea.vmem %s0, 128
    %v129 = vld [vmem:[%s128] sm:%s3]
    %s130 = scalar_lea.vmem [#allocation0], 256
    %131 = vst [vmem:[%s130] sm:%s3] %v129
    %s132 = scalar_lea.vmem %s0, 124
    %v133 = vld [vmem:[%s132] sm:%s3]
    %s134 = scalar_lea.vmem [#allocation0], 248
    %135 = vst [vmem:[%s134] sm:%s3] %v133
    %s136 = scalar_lea.vmem %s0, 120
    %v137 = vld [vmem:[%s136] sm:%s3]
    %s138 = scalar_lea.vmem [#allocation0], 240
    %139 = vst [vmem:[%s138] sm:%s3] %v137
    %s140 = scalar_lea.vmem %s0, 116
    %v141 = vld [vmem:[%s140] sm:%s3]
    %s142 = scalar_lea.vmem [#allocation0], 232
    %143 = vst [vmem:[%s142] sm:%s3] %v141
    %s144 = scalar_lea.vmem %s0, 112
    %v145 = vld [vmem:[%s144] sm:%s3]
    %s146 = scalar_lea.vmem [#allocation0], 224
    %147 = vst [vmem:[%s146] sm:%s3] %v145
    %s148 = scalar_lea.vmem %s0, 108
    %v149 = vld [vmem:[%s148] sm:%s3]
    %s150 = scalar_lea.vmem [#allocation0], 216
    %151 = vst [vmem:[%s150] sm:%s3] %v149
    %s152 = scalar_lea.vmem %s0, 104
    %v153 = vld [vmem:[%s152] sm:%s3]
    %s154 = scalar_lea.vmem [#allocation0], 208
    %155 = vst [vmem:[%s154] sm:%s3] %v153
    %s156 = scalar_lea.vmem %s0, 100
    %v157 = vld [vmem:[%s156] sm:%s3]
    %s158 = scalar_lea.vmem [#allocation0], 200
    %159 = vst [vmem:[%s158] sm:%s3] %v157
    %s160 = scalar_lea.vmem %s0, 96
    %v161 = vld [vmem:[%s160] sm:%s3]
    %s162 = scalar_lea.vmem [#allocation0], 192
    %163 = vst [vmem:[%s162] sm:%s3] %v161
    %s164 = scalar_lea.vmem %s0, 92
    %v165 = vld [vmem:[%s164] sm:%s3]
    %s166 = scalar_lea.vmem [#allocation0], 184
    %167 = vst [vmem:[%s166] sm:%s3] %v165
    %s168 = scalar_lea.vmem %s0, 88
    %v169 = vld [vmem:[%s168] sm:%s3]
    %s170 = scalar_lea.vmem [#allocation0], 176
    %171 = vst [vmem:[%s170] sm:%s3] %v169
    %s172 = scalar_lea.vmem %s0, 84
    %v173 = vld [vmem:[%s172] sm:%s3]
    %s174 = scalar_lea.vmem [#allocation0], 168
    %175 = vst [vmem:[%s174] sm:%s3] %v173
    %s176 = scalar_lea.vmem %s0, 80
    %v177 = vld [vmem:[%s176] sm:%s3]
    %s178 = scalar_lea.vmem [#allocation0], 160
    %179 = vst [vmem:[%s178] sm:%s3] %v177
    %s180 = scalar_lea.vmem %s0, 76
    %v181 = vld [vmem:[%s180] sm:%s3]
    %s182 = scalar_lea.vmem [#allocation0], 152
    %183 = vst [vmem:[%s182] sm:%s3] %v181
    %s184 = scalar_lea.vmem %s0, 72
    %v185 = vld [vmem:[%s184] sm:%s3]
    %s186 = scalar_lea.vmem [#allocation0], 144
    %187 = vst [vmem:[%s186] sm:%s3] %v185
    %s188 = scalar_lea.vmem %s0, 68
    %v189 = vld [vmem:[%s188] sm:%s3]
    %s190 = scalar_lea.vmem [#allocation0], 136
    %191 = vst [vmem:[%s190] sm:%s3] %v189
    %s192 = scalar_lea.vmem %s0, 64
    %v193 = vld [vmem:[%s192] sm:%s3]
    %s194 = scalar_lea.vmem [#allocation0], 128
    %195 = vst [vmem:[%s194] sm:%s3] %v193
    %s196 = scalar_lea.vmem %s0, 60
    %v197 = vld [vmem:[%s196] sm:%s3]
    %s198 = scalar_lea.vmem [#allocation0], 120
    %199 = vst [vmem:[%s198] sm:%s3] %v197
    %s200 = scalar_lea.vmem %s0, 56
    %v201 = vld [vmem:[%s200] sm:%s3]
    %s202 = scalar_lea.vmem [#allocation0], 112
    %203 = vst [vmem:[%s202] sm:%s3] %v201
    %s204 = scalar_lea.vmem %s0, 52
    %v205 = vld [vmem:[%s204] sm:%s3]
    %s206 = scalar_lea.vmem [#allocation0], 104
    %207 = vst [vmem:[%s206] sm:%s3] %v205
    %s208 = scalar_lea.vmem %s0, 48
    %v209 = vld [vmem:[%s208] sm:%s3]
    %s210 = scalar_lea.vmem [#allocation0], 96
    %211 = vst [vmem:[%s210] sm:%s3] %v209
    %s212 = scalar_lea.vmem %s0, 44
    %v213 = vld [vmem:[%s212] sm:%s3]
    %s214 = scalar_lea.vmem [#allocation0], 88
    %215 = vst [vmem:[%s214] sm:%s3] %v213
    %s216 = scalar_lea.vmem %s0, 40
    %v217 = vld [vmem:[%s216] sm:%s3]
    %s218 = scalar_lea.vmem [#allocation0], 80
    %219 = vst [vmem:[%s218] sm:%s3] %v217
    %s220 = scalar_lea.vmem %s0, 36
    %v221 = vld [vmem:[%s220] sm:%s3]
    %s222 = scalar_lea.vmem [#allocation0], 72
    %223 = vst [vmem:[%s222] sm:%s3] %v221
    %s224 = scalar_lea.vmem %s0, 32
    %v225 = vld [vmem:[%s224] sm:%s3]
    %s226 = scalar_lea.vmem [#allocation0], 64
    %227 = vst [vmem:[%s226] sm:%s3] %v225
    %s228 = scalar_lea.vmem %s0, 28
    %v229 = vld [vmem:[%s228] sm:%s3]
    %s230 = scalar_lea.vmem [#allocation0], 56
    %231 = vst [vmem:[%s230] sm:%s3] %v229
    %s232 = scalar_lea.vmem %s0, 24
    %v233 = vld [vmem:[%s232] sm:%s3]
    %s234 = scalar_lea.vmem [#allocation0], 48
    %235 = vst [vmem:[%s234] sm:%s3] %v233
    %s236 = scalar_lea.vmem %s0, 20
    %v237 = vld [vmem:[%s236] sm:%s3]
    %s238 = scalar_lea.vmem [#allocation0], 40
    %239 = vst [vmem:[%s238] sm:%s3] %v237
    %s240 = scalar_lea.vmem %s0, 16
    %v241 = vld [vmem:[%s240] sm:%s3]
    %s242 = scalar_lea.vmem [#allocation0], 32
    %243 = vst [vmem:[%s242] sm:%s3] %v241
    %s244 = scalar_lea.vmem %s0, 12
    %v245 = vld [vmem:[%s244] sm:%s3]
    %s246 = scalar_lea.vmem [#allocation0], 24
    %247 = vst [vmem:[%s246] sm:%s3] %v245
    %s248 = scalar_lea.vmem %s0, 8
    %v249 = vld [vmem:[%s248] sm:%s3]
    %s250 = scalar_lea.vmem [#allocation0], 16
    %251 = vst [vmem:[%s250] sm:%s3] %v249
    %s252 = scalar_lea.vmem %s0, 4
    %v253 = vld [vmem:[%s252] sm:%s3]
    %s254 = scalar_lea.vmem [#allocation0], 8
    %255 = vst [vmem:[%s254] sm:%s3] %v253
    %v256 = vld [vmem:[%s0] sm:%s3]
    %257 = vst [vmem:[#allocation0] sm:%s3] %v256
    %v258 = vld [vmem:[#allocation0] ss:$8 sm:$0xf]
    %v259 = vld [vmem:[#allocation0] ss:$8 sm:$0xf0]
    %vm260 = vcmask 1047556
    %v261 = vsel %vm260, %v259, %v258
    %vm262 = vcmask 130048
    %263 = vst.msk [vmem:[%s1] sm:$0xff] %vm262, %v261
    %s264 = scalar_lea.vmem [#allocation0], 64
    %v265 = vld [vmem:[%s264] ss:$8 sm:$0xf]
    %s266 = scalar_lea.vmem [#allocation0], 64
    %v267 = vld [vmem:[%s266] ss:$8 sm:$0xf0]
    %vm268 = vcmask 1047556
    %v269 = vsel %vm268, %v267, %v265
    %vm270 = vcmask 130048
    %s271 = scalar_lea.vmem %s1, 8
    %272 = vst.msk [vmem:[%s271] sm:$0xff] %vm270, %v269
    %s273 = scalar_lea.vmem [#allocation0], 128
    %v274 = vld [vmem:[%s273] ss:$8 sm:$0xf]
    %s275 = scalar_lea.vmem [#allocation0], 128
    %v276 = vld [vmem:[%s275] ss:$8 sm:$0xf0]
    %vm277 = vcmask 1047556
    %v278 = vsel %vm277, %v276, %v274
    %vm279 = vcmask 130048
    %s280 = scalar_lea.vmem %s1, 16
    %281 = vst.msk [vmem:[%s280] sm:$0xff] %vm279, %v278
    %s282 = scalar_lea.vmem [#allocation0], 192
    %v283 = vld [vmem:[%s282] ss:$8 sm:$0xf]
    %s284 = scalar_lea.vmem [#allocation0], 192
    %v285 = vld [vmem:[%s284] ss:$8 sm:$0xf0]
    %vm286 = vcmask 1047556
    %v287 = vsel %vm286, %v285, %v283
    %vm288 = vcmask 130048
    %s289 = scalar_lea.vmem %s1, 24
    %290 = vst.msk [vmem:[%s289] sm:$0xff] %vm288, %v287
    %s291 = scalar_lea.vmem [#allocation0], 256
    %v292 = vld [vmem:[%s291] ss:$8 sm:$0xf]
    %s293 = scalar_lea.vmem [#allocation0], 256
    %v294 = vld [vmem:[%s293] ss:$8 sm:$0xf0]
    %vm295 = vcmask 1047556
    %v296 = vsel %vm295, %v294, %v292
    %vm297 = vcmask 130048
    %s298 = scalar_lea.vmem %s1, 32
    %299 = vst.msk [vmem:[%s298] sm:$0xff] %vm297, %v296
    %s300 = scalar_lea.vmem [#allocation0], 320
    %v301 = vld [vmem:[%s300] ss:$8 sm:$0xf]
    %s302 = scalar_lea.vmem [#allocation0], 320
    %v303 = vld [vmem:[%s302] ss:$8 sm:$0xf0]
    %vm304 = vcmask 1047556
    %v305 = vsel %vm304, %v303, %v301
    %vm306 = vcmask 130048
    %s307 = scalar_lea.vmem %s1, 40
    %308 = vst.msk [vmem:[%s307] sm:$0xff] %vm306, %v305
    %s309 = scalar_lea.vmem [#allocation0], 384
    %v310 = vld [vmem:[%s309] ss:$8 sm:$0xf]
    %s311 = scalar_lea.vmem [#allocation0], 384
    %v312 = vld [vmem:[%s311] ss:$8 sm:$0xf0]
    %vm313 = vcmask 1047556
    %v314 = vsel %vm313, %v312, %v310
    %vm315 = vcmask 130048
    %s316 = scalar_lea.vmem %s1, 48
    %317 = vst.msk [vmem:[%s316] sm:$0xff] %vm315, %v314
    %s318 = scalar_lea.vmem [#allocation0], 448
    %v319 = vld [vmem:[%s318] ss:$8 sm:$0xf]
    %s320 = scalar_lea.vmem [#allocation0], 448
    %v321 = vld [vmem:[%s320] ss:$8 sm:$0xf0]
    %vm322 = vcmask 1047556
    %v323 = vsel %vm322, %v321, %v319
    %vm324 = vcmask 130048
    %s325 = scalar_lea.vmem %s1, 56
    %326 = vst.msk [vmem:[%s325] sm:$0xff] %vm324, %v323
    %s327 = scalar_lea.vmem [#allocation0], 3
    %v328 = vld [vmem:[%s327] ss:$8 sm:$0xf]
    %s329 = scalar_lea.vmem [#allocation0], 3
    %v330 = vld [vmem:[%s329] ss:$8 sm:$0xf0]
    %vm331 = vcmask 1047556
    %v332 = vsel %vm331, %v330, %v328
    %333 = vrot.lane.b32.xlu0 %v332, 48
    %v334 = vpop.permute.xlu0 %333
    %vm335 = vcmask 523648
    %336 = vst.msk [vmem:[%s1] sm:$0xff] %vm335, %v334
    %s337 = scalar_lea.vmem [#allocation0], 259
    %v338 = vld [vmem:[%s337] ss:$8 sm:$0xf]
    %s339 = scalar_lea.vmem [#allocation0], 259
    %v340 = vld [vmem:[%s339] ss:$8 sm:$0xf0]
    %vm341 = vcmask 1047556
    %v342 = vsel %vm341, %v340, %v338
    %343 = vrot.lane.b32.xlu0 %v342, 48
    %v344 = vpop.permute.xlu0 %343
    %vm345 = vcmask 523648
    %s346 = scalar_lea.vmem %s1, 32
    %347 = vst.msk [vmem:[%s346] sm:$0xff] %vm345, %v344
    %s348 = scalar_lea.vmem [#allocation0], 67
    %v349 = vld [vmem:[%s348] ss:$8 sm:$0xf]
    %s350 = scalar_lea.vmem [#allocation0], 67
    %v351 = vld [vmem:[%s350] ss:$8 sm:$0xf0]
    %vm352 = vcmask 1047556
    %v353 = vsel %vm352, %v351, %v349
    %354 = vrot.lane.b32.xlu0 %v353, 48
    %v355 = vpop.permute.xlu0 %354
    %vm356 = vcmask 523648
    %s357 = scalar_lea.vmem %s1, 8
    %358 = vst.msk [vmem:[%s357] sm:$0xff] %vm356, %v355
    %s359 = scalar_lea.vmem [#allocation0], 323
    %v360 = vld [vmem:[%s359] ss:$8 sm:$0xf]
    %s361 = scalar_lea.vmem [#allocation0], 323
    %v362 = vld [vmem:[%s361] ss:$8 sm:$0xf0]
    %vm363 = vcmask 1047556
    %v364 = vsel %vm363, %v362, %v360
    %365 = vrot.lane.b32.xlu0 %v364, 48
    %v366 = vpop.permute.xlu0 %365
    %vm367 = vcmask 523648
    %s368 = scalar_lea.vmem %s1, 40
    %369 = vst.msk [vmem:[%s368] sm:$0xff] %vm367, %v366
    %s370 = scalar_lea.vmem [#allocation0], 131
    %v371 = vld [vmem:[%s370] ss:$8 sm:$0xf]
    %s372 = scalar_lea.vmem [#allocation0], 131
    %v373 = vld [vmem:[%s372] ss:$8 sm:$0xf0]
    %vm374 = vcmask 1047556
    %v375 = vsel %vm374, %v373, %v371
    %376 = vrot.lane.b32.xlu0 %v375, 48
    %v377 = vpop.permute.xlu0 %376
    %vm378 = vcmask 523648
    %s379 = scalar_lea.vmem %s1, 16
    %380 = vst.msk [vmem:[%s379] sm:$0xff] %vm378, %v377
    %s381 = scalar_lea.vmem [#allocation0], 387
    %v382 = vld [vmem:[%s381] ss:$8 sm:$0xf]
    %s383 = scalar_lea.vmem [#allocation0], 387
    %v384 = vld [vmem:[%s383] ss:$8 sm:$0xf0]
    %vm385 = vcmask 1047556
    %v386 = vsel %vm385, %v384, %v382
    %387 = vrot.lane.b32.xlu0 %v386, 48
    %v388 = vpop.permute.xlu0 %387
    %vm389 = vcmask 523648
    %s390 = scalar_lea.vmem %s1, 48
    %391 = vst.msk [vmem:[%s390] sm:$0xff] %vm389, %v388
    %s392 = scalar_lea.vmem [#allocation0], 195
    %v393 = vld [vmem:[%s392] ss:$8 sm:$0xf]
    %s394 = scalar_lea.vmem [#allocation0], 195
    %v395 = vld [vmem:[%s394] ss:$8 sm:$0xf0]
    %vm396 = vcmask 1047556
    %v397 = vsel %vm396, %v395, %v393
    %398 = vrot.lane.b32.xlu0 %v397, 48
    %v399 = vpop.permute.xlu0 %398
    %vm400 = vcmask 523648
    %s401 = scalar_lea.vmem %s1, 24
    %402 = vst.msk [vmem:[%s401] sm:$0xff] %vm400, %v399
    %s403 = scalar_lea.vmem [#allocation0], 451
    %v404 = vld [vmem:[%s403] ss:$8 sm:$0xf]
    %s405 = scalar_lea.vmem [#allocation0], 451
    %v406 = vld [vmem:[%s405] ss:$8 sm:$0xf0]
    %vm407 = vcmask 1047556
    %v408 = vsel %vm407, %v406, %v404
    %409 = vrot.lane.b32.xlu0 %v408, 48
    %v410 = vpop.permute.xlu0 %409
    %vm411 = vcmask 523648
    %s412 = scalar_lea.vmem %s1, 56
    %413 = vst.msk [vmem:[%s412] sm:$0xff] %vm411, %v410
    %s414 = scalar_lea.vmem [#allocation0], 2
    %v415 = vld [vmem:[%s414] ss:$8 sm:$0xf]
    %s416 = scalar_lea.vmem [#allocation0], 2
    %v417 = vld [vmem:[%s416] ss:$8 sm:$0xf0]
    %vm418 = vcmask 1047556
    %v419 = vsel %vm418, %v417, %v415
    %420 = vrot.lane.b32.xlu0 %v419, 32
    %v421 = vpop.permute.xlu0 %420
    %vm422 = vcmask 392448
    %423 = vst.msk [vmem:[%s1] sm:$0xff] %vm422, %v421
    %s424 = scalar_lea.vmem [#allocation0], 258
    %v425 = vld [vmem:[%s424] ss:$8 sm:$0xf]
    %s426 = scalar_lea.vmem [#allocation0], 258
    %v427 = vld [vmem:[%s426] ss:$8 sm:$0xf0]
    %vm428 = vcmask 1047556
    %v429 = vsel %vm428, %v427, %v425
    %430 = vrot.lane.b32.xlu0 %v429, 32
    %v431 = vpop.permute.xlu0 %430
    %vm432 = vcmask 392448
    %s433 = scalar_lea.vmem %s1, 32
    %434 = vst.msk [vmem:[%s433] sm:$0xff] %vm432, %v431
    %s435 = scalar_lea.vmem [#allocation0], 66
    %v436 = vld [vmem:[%s435] ss:$8 sm:$0xf]
    %s437 = scalar_lea.vmem [#allocation0], 66
    %v438 = vld [vmem:[%s437] ss:$8 sm:$0xf0]
    %vm439 = vcmask 1047556
    %v440 = vsel %vm439, %v438, %v436
    %441 = vrot.lane.b32.xlu0 %v440, 32
    %v442 = vpop.permute.xlu0 %441
    %vm443 = vcmask 392448
    %s444 = scalar_lea.vmem %s1, 8
    %445 = vst.msk [vmem:[%s444] sm:$0xff] %vm443, %v442
    %s446 = scalar_lea.vmem [#allocation0], 322
    %v447 = vld [vmem:[%s446] ss:$8 sm:$0xf]
    %s448 = scalar_lea.vmem [#allocation0], 322
    %v449 = vld [vmem:[%s448] ss:$8 sm:$0xf0]
    %vm450 = vcmask 1047556
    %v451 = vsel %vm450, %v449, %v447
    %452 = vrot.lane.b32.xlu0 %v451, 32
    %v453 = vpop.permute.xlu0 %452
    %vm454 = vcmask 392448
    %s455 = scalar_lea.vmem %s1, 40
    %456 = vst.msk [vmem:[%s455] sm:$0xff] %vm454, %v453
    %s457 = scalar_lea.vmem [#allocation0], 130
    %v458 = vld [vmem:[%s457] ss:$8 sm:$0xf]
    %s459 = scalar_lea.vmem [#allocation0], 130
    %v460 = vld [vmem:[%s459] ss:$8 sm:$0xf0]
    %vm461 = vcmask 1047556
    %v462 = vsel %vm461, %v460, %v458
    %463 = vrot.lane.b32.xlu0 %v462, 32
    %v464 = vpop.permute.xlu0 %463
    %vm465 = vcmask 392448
    %s466 = scalar_lea.vmem %s1, 16
    %467 = vst.msk [vmem:[%s466] sm:$0xff] %vm465, %v464
    %s468 = scalar_lea.vmem [#allocation0], 386
    %v469 = vld [vmem:[%s468] ss:$8 sm:$0xf]
    %s470 = scalar_lea.vmem [#allocation0], 386
    %v471 = vld [vmem:[%s470] ss:$8 sm:$0xf0]
    %vm472 = vcmask 1047556
    %v473 = vsel %vm472, %v471, %v469
    %474 = vrot.lane.b32.xlu0 %v473, 32
    %v475 = vpop.permute.xlu0 %474
    %vm476 = vcmask 392448
    %s477 = scalar_lea.vmem %s1, 48
    %478 = vst.msk [vmem:[%s477] sm:$0xff] %vm476, %v475
    %s479 = scalar_lea.vmem [#allocation0], 194
    %v480 = vld [vmem:[%s479] ss:$8 sm:$0xf]
    %s481 = scalar_lea.vmem [#allocation0], 194
    %v482 = vld [vmem:[%s481] ss:$8 sm:$0xf0]
    %vm483 = vcmask 1047556
    %v484 = vsel %vm483, %v482, %v480
    %485 = vrot.lane.b32.xlu0 %v484, 32
    %v486 = vpop.permute.xlu0 %485
    %vm487 = vcmask 392448
    %s488 = scalar_lea.vmem %s1, 24
    %489 = vst.msk [vmem:[%s488] sm:$0xff] %vm487, %v486
    %s490 = scalar_lea.vmem [#allocation0], 450
    %v491 = vld [vmem:[%s490] ss:$8 sm:$0xf]
    %s492 = scalar_lea.vmem [#allocation0], 450
    %v493 = vld [vmem:[%s492] ss:$8 sm:$0xf0]
    %vm494 = vcmask 1047556
    %v495 = vsel %vm494, %v493, %v491
    %496 = vrot.lane.b32.xlu0 %v495, 32
    %v497 = vpop.permute.xlu0 %496
    %vm498 = vcmask 392448
    %s499 = scalar_lea.vmem %s1, 56
    %500 = vst.msk [vmem:[%s499] sm:$0xff] %vm498, %v497
    %s501 = scalar_lea.vmem [#allocation0], 1
    %v502 = vld [vmem:[%s501] ss:$8 sm:$0xf]
    %s503 = scalar_lea.vmem [#allocation0], 1
    %v504 = vld [vmem:[%s503] ss:$8 sm:$0xf0]
    %vm505 = vcmask 1047556
    %v506 = vsel %vm505, %v504, %v502
    %507 = vrot.lane.b32.xlu0 %v506, 16
    %v508 = vpop.permute.xlu0 %507
    %vm509 = vcmask 261248
    %510 = vst.msk [vmem:[%s1] sm:$0xff] %vm509, %v508
    %s511 = scalar_lea.vmem [#allocation0], 257
    %v512 = vld [vmem:[%s511] ss:$8 sm:$0xf]
    %s513 = scalar_lea.vmem [#allocation0], 257
    %v514 = vld [vmem:[%s513] ss:$8 sm:$0xf0]
    %vm515 = vcmask 1047556
    %v516 = vsel %vm515, %v514, %v512
    %517 = vrot.lane.b32.xlu0 %v516, 16
    %v518 = vpop.permute.xlu0 %517
    %vm519 = vcmask 261248
    %s520 = scalar_lea.vmem %s1, 32
    %521 = vst.msk [vmem:[%s520] sm:$0xff] %vm519, %v518
    %s522 = scalar_lea.vmem [#allocation0], 65
    %v523 = vld [vmem:[%s522] ss:$8 sm:$0xf]
    %s524 = scalar_lea.vmem [#allocation0], 65
    %v525 = vld [vmem:[%s524] ss:$8 sm:$0xf0]
    %vm526 = vcmask 1047556
    %v527 = vsel %vm526, %v525, %v523
    %528 = vrot.lane.b32.xlu0 %v527, 16
    %v529 = vpop.permute.xlu0 %528
    %vm530 = vcmask 261248
    %s531 = scalar_lea.vmem %s1, 8
    %532 = vst.msk [vmem:[%s531] sm:$0xff] %vm530, %v529
    %s533 = scalar_lea.vmem [#allocation0], 321
    %v534 = vld [vmem:[%s533] ss:$8 sm:$0xf]
    %s535 = scalar_lea.vmem [#allocation0], 321
    %v536 = vld [vmem:[%s535] ss:$8 sm:$0xf0]
    %vm537 = vcmask 1047556
    %v538 = vsel %vm537, %v536, %v534
    %539 = vrot.lane.b32.xlu0 %v538, 16
    %v540 = vpop.permute.xlu0 %539
    %vm541 = vcmask 261248
    %s542 = scalar_lea.vmem %s1, 40
    %543 = vst.msk [vmem:[%s542] sm:$0xff] %vm541, %v540
    %s544 = scalar_lea.vmem [#allocation0], 129
    %v545 = vld [vmem:[%s544] ss:$8 sm:$0xf]
    %s546 = scalar_lea.vmem [#allocation0], 129
    %v547 = vld [vmem:[%s546] ss:$8 sm:$0xf0]
    %vm548 = vcmask 1047556
    %v549 = vsel %vm548, %v547, %v545
    %550 = vrot.lane.b32.xlu0 %v549, 16
    %v551 = vpop.permute.xlu0 %550
    %vm552 = vcmask 261248
    %s553 = scalar_lea.vmem %s1, 16
    %554 = vst.msk [vmem:[%s553] sm:$0xff] %vm552, %v551
    %s555 = scalar_lea.vmem [#allocation0], 385
    %v556 = vld [vmem:[%s555] ss:$8 sm:$0xf]
    %s557 = scalar_lea.vmem [#allocation0], 385
    %v558 = vld [vmem:[%s557] ss:$8 sm:$0xf0]
    %vm559 = vcmask 1047556
    %v560 = vsel %vm559, %v558, %v556
    %561 = vrot.lane.b32.xlu0 %v560, 16
    %v562 = vpop.permute.xlu0 %561
    %vm563 = vcmask 261248
    %s564 = scalar_lea.vmem %s1, 48
    %565 = vst.msk [vmem:[%s564] sm:$0xff] %vm563, %v562
    %s566 = scalar_lea.vmem [#allocation0], 193
    %v567 = vld [vmem:[%s566] ss:$8 sm:$0xf]
    %s568 = scalar_lea.vmem [#allocation0], 193
    %v569 = vld [vmem:[%s568] ss:$8 sm:$0xf0]
    %vm570 = vcmask 1047556
    %v571 = vsel %vm570, %v569, %v567
    %572 = vrot.lane.b32.xlu0 %v571, 16
    %v573 = vpop.permute.xlu0 %572
    %vm574 = vcmask 261248
    %s575 = scalar_lea.vmem %s1, 24
    %576 = vst.msk [vmem:[%s575] sm:$0xff] %vm574, %v573
    %s577 = scalar_lea.vmem [#allocation0], 449
    %v578 = vld [vmem:[%s577] ss:$8 sm:$0xf]
    %s579 = scalar_lea.vmem [#allocation0], 449
    %v580 = vld [vmem:[%s579] ss:$8 sm:$0xf0]
    %vm581 = vcmask 1047556
    %v582 = vsel %vm581, %v580, %v578
    %583 = vrot.lane.b32.xlu0 %v582, 16
    %v584 = vpop.permute.xlu0 %583
    %vm585 = vcmask 261248
    %s586 = scalar_lea.vmem %s1, 56
    %587 = vst.msk [vmem:[%s586] sm:$0xff] %vm585, %v584

// kernel: tile.23
$region0: #{tile.23}
  #allocation0 [shape = 's32[1]{0}', space=sflag, size = 0x4, scoped, tag = 'scoped memory for tile.23']
  %s0 = inlined_call_operand.vmem [shape: pred[6,6], index: 0, kind: input, shape index: {}]
  %s1 = inlined_call_operand.vmem [shape: pred[2,6,2,6], index: 1, kind: output, shape index: {}]
  // Predicated region
  $region2: #{tile.23} parent=0 // pred_check
    _
  $region3: #{tile.23} parent=0 // pred_check_branch
    %3 = sbr.rel (0) target = $region5
  $region4: #{tile.23} parent=0 // pred_region
    _
  $region5: #{tile.23} parent=0 // pred_fallthru
    _
  %v4 = vld [vmem:[%s0] ss:$0 sm:$0xff]
  %v6 = vshra.s32 %v4, 0
  %v7 = vand.u32 %v6, 255
  %v8 = vpack.c.b16 0, %v7
  %v9 = vpack.c.b8 0, %v8
  %s11 = ssub.s32 2, 1
  %12 = vst [vmem:[%s1] sm:%s11] %v9
  %s13 = scalar_lea.vmem %s1, 6
  %v14 = vpack.c.b16 0, %v7
  %v15 = vpack.c.b8 0, %v14
  %s17 = ssub.s32 2, 1
  %18 = vst [vmem:[%s13] sm:%s17] %v15
  %v19 = vld [vmem:[%s0] ss:$0 sm:$0xff]
  %v21 = vshra.s32 %v19, 8
  %v22 = vand.u32 %v21, 255
  %s23 = scalar_lea.vmem %s1, 1
  %v24 = vpack.c.b16 0, %v22
  %v25 = vpack.c.b8 0, %v24
  %s27 = ssub.s32 2, 1
  %28 = vst [vmem:[%s23] sm:%s27] %v25
  %s29 = scalar_lea.vmem %s1, 7
  %v30 = vpack.c.b16 0, %v22
  %v31 = vpack.c.b8 0, %v30
  %s33 = ssub.s32 2, 1
  %34 = vst [vmem:[%s29] sm:%s33] %v31
  %v35 = vld [vmem:[%s0] ss:$0 sm:$0xff]
  %v37 = vshra.s32 %v35, 16
  %v38 = vand.u32 %v37, 255
  %s39 = scalar_lea.vmem %s1, 2
  %v40 = vpack.c.b16 0, %v38
  %v41 = vpack.c.b8 0, %v40
  %s43 = ssub.s32 2, 1
  %44 = vst [vmem:[%s39] sm:%s43] %v41
  %s45 = scalar_lea.vmem %s1, 8
  %v46 = vpack.c.b16 0, %v38
  %v47 = vpack.c.b8 0, %v46
  %s49 = ssub.s32 2, 1
  %50 = vst [vmem:[%s45] sm:%s49] %v47
  %v51 = vld [vmem:[%s0] ss:$0 sm:$0xff]
  %v53 = vshra.s32 %v51, 24
  %v54 = vand.u32 %v53, 255
  %s55 = scalar_lea.vmem %s1, 3
  %v56 = vpack.c.b16 0, %v54
  %v57 = vpack.c.b8 0, %v56
  %s59 = ssub.s32 2, 1
  %60 = vst [vmem:[%s55] sm:%s59] %v57
  %s61 = scalar_lea.vmem %s1, 9
  %v62 = vpack.c.b16 0, %v54
  %v63 = vpack.c.b8 0, %v62
  %s65 = ssub.s32 2, 1
  %66 = vst [vmem:[%s61] sm:%s65] %v63
  %s67 = scalar_lea.vmem %s0, 1
  %v68 = vld [vmem:[%s67] ss:$0 sm:$0xff]
  %v70 = vshra.s32 %v68, 0
  %v71 = vand.u32 %v70, 255
  %s72 = scalar_lea.vmem %s1, 4
  %v73 = vpack.c.b16 0, %v71
  %v74 = vpack.c.b8 0, %v73
  %s76 = ssub.s32 2, 1
  %77 = vst [vmem:[%s72] sm:%s76] %v74
  %s78 = scalar_lea.vmem %s1, 10
  %v79 = vpack.c.b16 0, %v71
  %v80 = vpack.c.b8 0, %v79
  %s82 = ssub.s32 2, 1
  %83 = vst [vmem:[%s78] sm:%s82] %v80
  %s84 = scalar_lea.vmem %s0, 1
  %v85 = vld [vmem:[%s84] ss:$0 sm:$0xff]
  %v87 = vshra.s32 %v85, 8
  %v88 = vand.u32 %v87, 255
  %s89 = scalar_lea.vmem %s1, 5
  %v90 = vpack.c.b16 0, %v88
  %v91 = vpack.c.b8 0, %v90
  %s93 = ssub.s32 2, 1
  %94 = vst [vmem:[%s89] sm:%s93] %v91
  %s95 = scalar_lea.vmem %s1, 11
  %v96 = vpack.c.b16 0, %v88
  %v97 = vpack.c.b8 0, %v96
  %s99 = ssub.s32 2, 1
  %100 = vst [vmem:[%s95] sm:%s99] %v97

// kernel: tile.33
$region0: #{tile.33}
  #allocation0 [shape = 's32[1]{0}', space=sflag, size = 0x4, scoped, tag = 'scoped memory for tile.33']
  %s0 = inlined_call_operand.vmem [shape: f32[12,12], index: 0, kind: input, shape index: {}]
  %s1 = inlined_call_operand.vmem [shape: f32[4,12,4,12], index: 1, kind: output, shape index: {}]
  // Predicated region
  $region2: #{tile.33} parent=0 // pred_check
    _
  $region3: #{tile.33} parent=0 // pred_check_branch
    %3 = sbr.rel (0) target = $region5
  $region4: #{tile.33} parent=0 // pred_region
    _
  $region5: #{tile.33} parent=0 // pred_fallthru
    _
  %v4 = vld [vmem:[%s0] ss:$0 sm:$0xff]
  %5 = vst [vmem:[%s1] sm:$0xf] %v4
  %s6 = scalar_lea.vmem %s1, 48
  %7 = vst [vmem:[%s6] sm:$0xf] %v4
  %s8 = scalar_lea.vmem %s1, 96
  %9 = vst [vmem:[%s8] sm:$0xf] %v4
  %s10 = scalar_lea.vmem %s1, 144
  %11 = vst [vmem:[%s10] sm:$0xf] %v4
  %s12 = scalar_lea.vmem %s0, 1
  %v13 = vld [vmem:[%s12] ss:$0 sm:$0xff]
  %s14 = scalar_lea.vmem %s1, 4
  %15 = vst [vmem:[%s14] sm:$0xf] %v13
  %s16 = scalar_lea.vmem %s1, 52
  %17 = vst [vmem:[%s16] sm:$0xf] %v13
  %s18 = scalar_lea.vmem %s1, 100
  %19 = vst [vmem:[%s18] sm:$0xf] %v13
  %s20 = scalar_lea.vmem %s1, 148
  %21 = vst [vmem:[%s20] sm:$0xf] %v13
  %s22 = scalar_lea.vmem %s0, 2
  %v23 = vld [vmem:[%s22] ss:$0 sm:$0xff]
  %s24 = scalar_lea.vmem %s1, 8
  %25 = vst [vmem:[%s24] sm:$0xf] %v23
  %s26 = scalar_lea.vmem %s1, 56
  %27 = vst [vmem:[%s26] sm:$0xf] %v23
  %s28 = scalar_lea.vmem %s1, 104
  %29 = vst [vmem:[%s28] sm:$0xf] %v23
  %s30 = scalar_lea.vmem %s1, 152
  %31 = vst [vmem:[%s30] sm:$0xf] %v23
  %s32 = scalar_lea.vmem %s0, 3
  %v33 = vld [vmem:[%s32] ss:$0 sm:$0xff]
  %s34 = scalar_lea.vmem %s1, 12
  %35 = vst [vmem:[%s34] sm:$0xf] %v33
  %s36 = scalar_lea.vmem %s1, 60
  %37 = vst [vmem:[%s36] sm:$0xf] %v33
  %s38 = scalar_lea.vmem %s1, 108
  %39 = vst [vmem:[%s38] sm:$0xf] %v33
  %s40 = scalar_lea.vmem %s1, 156
  %41 = vst [vmem:[%s40] sm:$0xf] %v33
  %s42 = scalar_lea.vmem %s0, 4
  %v43 = vld [vmem:[%s42] ss:$0 sm:$0xff]
  %s44 = scalar_lea.vmem %s1, 16
  %45 = vst [vmem:[%s44] sm:$0xf] %v43
  %s46 = scalar_lea.vmem %s1, 64
  %47 = vst [vmem:[%s46] sm:$0xf] %v43
  %s48 = scalar_lea.vmem %s1, 112
  %49 = vst [vmem:[%s48] sm:$0xf] %v43
  %s50 = scalar_lea.vmem %s1, 160
  %51 = vst [vmem:[%s50] sm:$0xf] %v43
  %s52 = scalar_lea.vmem %s0, 5
  %v53 = vld [vmem:[%s52] ss:$0 sm:$0xff]
  %s54 = scalar_lea.vmem %s1, 20
  %55 = vst [vmem:[%s54] sm:$0xf] %v53
  %s56 = scalar_lea.vmem %s1, 68
  %57 = vst [vmem:[%s56] sm:$0xf] %v53
  %s58 = scalar_lea.vmem %s1, 116
  %59 = vst [vmem:[%s58] sm:$0xf] %v53
  %s60 = scalar_lea.vmem %s1, 164
  %61 = vst [vmem:[%s60] sm:$0xf] %v53
  %s62 = scalar_lea.vmem %s0, 6
  %v63 = vld [vmem:[%s62] ss:$0 sm:$0xff]
  %s64 = scalar_lea.vmem %s1, 24
  %65 = vst [vmem:[%s64] sm:$0xf] %v63
  %s66 = scalar_lea.vmem %s1, 72
  %67 = vst [vmem:[%s66] sm:$0xf] %v63
  %s68 = scalar_lea.vmem %s1, 120
  %69 = vst [vmem:[%s68] sm:$0xf] %v63
  %s70 = scalar_lea.vmem %s1, 168
  %71 = vst [vmem:[%s70] sm:$0xf] %v63
  %s72 = scalar_lea.vmem %s0, 7
  %v73 = vld [vmem:[%s72] ss:$0 sm:$0xff]
  %s74 = scalar_lea.vmem %s1, 28
  %75 = vst [vmem:[%s74] sm:$0xf] %v73
  %s76 = scalar_lea.vmem %s1, 76
  %77 = vst [vmem:[%s76] sm:$0xf] %v73
  %s78 = scalar_lea.vmem %s1, 124
  %79 = vst [vmem:[%s78] sm:$0xf] %v73
  %s80 = scalar_lea.vmem %s1, 172
  %81 = vst [vmem:[%s80] sm:$0xf] %v73
  %s82 = scalar_lea.vmem %s0, 8
  %v83 = vld [vmem:[%s82] ss:$0 sm:$0xff]
  %s84 = scalar_lea.vmem %s1, 32
  %85 = vst [vmem:[%s84] sm:$0xf] %v83
  %s86 = scalar_lea.vmem %s1, 80
  %87 = vst [vmem:[%s86] sm:$0xf] %v83
  %s88 = scalar_lea.vmem %s1, 128
  %89 = vst [vmem:[%s88] sm:$0xf] %v83
  %s90 = scalar_lea.vmem %s1, 176
  %91 = vst [vmem:[%s90] sm:$0xf] %v83
  %s92 = scalar_lea.vmem %s0, 8
  %s93 = scalar_lea.vmem %s92, 1
  %v94 = vld [vmem:[%s93] ss:$0 sm:$0xff]
  %s95 = scalar_lea.vmem %s1, 36
  %96 = vst [vmem:[%s95] sm:$0xf] %v94
  %s97 = scalar_lea.vmem %s1, 84
  %98 = vst [vmem:[%s97] sm:$0xf] %v94
  %s99 = scalar_lea.vmem %s1, 132
  %100 = vst [vmem:[%s99] sm:$0xf] %v94
  %s101 = scalar_lea.vmem %s1, 180
  %102 = vst [vmem:[%s101] sm:$0xf] %v94
  %s103 = scalar_lea.vmem %s0, 8
  %s104 = scalar_lea.vmem %s103, 2
  %v105 = vld [vmem:[%s104] ss:$0 sm:$0xff]
  %s106 = scalar_lea.vmem %s1, 40
  %107 = vst [vmem:[%s106] sm:$0xf] %v105
  %s108 = scalar_lea.vmem %s1, 88
  %109 = vst [vmem:[%s108] sm:$0xf] %v105
  %s110 = scalar_lea.vmem %s1, 136
  %111 = vst [vmem:[%s110] sm:$0xf] %v105
  %s112 = scalar_lea.vmem %s1, 184
  %113 = vst [vmem:[%s112] sm:$0xf] %v105
  %s114 = scalar_lea.vmem %s0, 8
  %s115 = scalar_lea.vmem %s114, 3
  %v116 = vld [vmem:[%s115] ss:$0 sm:$0xff]
  %s117 = scalar_lea.vmem %s1, 44
  %118 = vst [vmem:[%s117] sm:$0xf] %v116
  %s119 = scalar_lea.vmem %s1, 92
  %120 = vst [vmem:[%s119] sm:$0xf] %v116
  %s121 = scalar_lea.vmem %s1, 140
  %122 = vst [vmem:[%s121] sm:$0xf] %v116
  %s123 = scalar_lea.vmem %s1, 188
  %124 = vst [vmem:[%s123] sm:$0xf] %v116

// kernel: tile.34
$region0: #{tile.34}
  %s0 = inlined_call_operand.vmem [shape: f32[4,12,4,12], index: 0, kind: input, shape index: {}]
  %s1 = inlined_call_operand.vmem [shape: f32[48,48], index: 1, kind: output, shape index: {}]
  $region1: #{tile.34} parent=0
    #allocation0 [shape = 'u8[196608]{0}', space=vmem, size = 0x30000, scoped, tag = 'scoped mem for input reshape']
    %s3 = ssub.s32 16, 1
    %s4 = scalar_lea.vmem %s0, 188
    %v5 = vld [vmem:[%s4] sm:%s3]
    %s6 = scalar_lea.vmem [#allocation0], 376
    %7 = vst [vmem:[%s6] sm:%s3] %v5
    %s8 = scalar_lea.vmem %s0, 184
    %v9 = vld [vmem:[%s8] sm:%s3]
    %s10 = scalar_lea.vmem [#allocation0], 368
    %11 = vst [vmem:[%s10] sm:%s3] %v9
    %s12 = scalar_lea.vmem %s0, 180
    %v13 = vld [vmem:[%s12] sm:%s3]
    %s14 = scalar_lea.vmem [#allocation0], 360
    %15 = vst [vmem:[%s14] sm:%s3] %v13
    %s16 = scalar_lea.vmem %s0, 176
    %v17 = vld [vmem:[%s16] sm:%s3]
    %s18 = scalar_lea.vmem [#allocation0], 352
    %19 = vst [vmem:[%s18] sm:%s3] %v17
    %s20 = scalar_lea.vmem %s0, 172
    %v21 = vld [vmem:[%s20] sm:%s3]
    %s22 = scalar_lea.vmem [#allocation0], 344
    %23 = vst [vmem:[%s22] sm:%s3] %v21
    %s24 = scalar_lea.vmem %s0, 168
    %v25 = vld [vmem:[%s24] sm:%s3]
    %s26 = scalar_lea.vmem [#allocation0], 336
    %27 = vst [vmem:[%s26] sm:%s3] %v25
    %s28 = scalar_lea.vmem %s0, 164
    %v29 = vld [vmem:[%s28] sm:%s3]
    %s30 = scalar_lea.vmem [#allocation0], 328
    %31 = vst [vmem:[%s30] sm:%s3] %v29
    %s32 = scalar_lea.vmem %s0, 160
    %v33 = vld [vmem:[%s32] sm:%s3]
    %s34 = scalar_lea.vmem [#allocation0], 320
    %35 = vst [vmem:[%s34] sm:%s3] %v33
    %s36 = scalar_lea.vmem %s0, 156
    %v37 = vld [vmem:[%s36] sm:%s3]
    %s38 = scalar_lea.vmem [#allocation0], 312
    %39 = vst [vmem:[%s38] sm:%s3] %v37
    %s40 = scalar_lea.vmem %s0, 152
    %v41 = vld [vmem:[%s40] sm:%s3]
    %s42 = scalar_lea.vmem [#allocation0], 304
    %43 = vst [vmem:[%s42] sm:%s3] %v41
    %s44 = scalar_lea.vmem %s0, 148
    %v45 = vld [vmem:[%s44] sm:%s3]
    %s46 = scalar_lea.vmem [#allocation0], 296
    %47 = vst [vmem:[%s46] sm:%s3] %v45
    %s48 = scalar_lea.vmem %s0, 144
    %v49 = vld [vmem:[%s48] sm:%s3]
    %s50 = scalar_lea.vmem [#allocation0], 288
    %51 = vst [vmem:[%s50] sm:%s3] %v49
    %s52 = scalar_lea.vmem %s0, 140
    %v53 = vld [vmem:[%s52] sm:%s3]
    %s54 = scalar_lea.vmem [#allocation0], 280
    %55 = vst [vmem:[%s54] sm:%s3] %v53
    %s56 = scalar_lea.vmem %s0, 136
    %v57 = vld [vmem:[%s56] sm:%s3]
    %s58 = scalar_lea.vmem [#allocation0], 272
    %59 = vst [vmem:[%s58] sm:%s3] %v57
    %s60 = scalar_lea.vmem %s0, 132
    %v61 = vld [vmem:[%s60] sm:%s3]
    %s62 = scalar_lea.vmem [#allocation0], 264
    %63 = vst [vmem:[%s62] sm:%s3] %v61
    %s64 = scalar_lea.vmem %s0, 128
    %v65 = vld [vmem:[%s64] sm:%s3]
    %s66 = scalar_lea.vmem [#allocation0], 256
    %67 = vst [vmem:[%s66] sm:%s3] %v65
    %s68 = scalar_lea.vmem %s0, 124
    %v69 = vld [vmem:[%s68] sm:%s3]
    %s70 = scalar_lea.vmem [#allocation0], 248
    %71 = vst [vmem:[%s70] sm:%s3] %v69
    %s72 = scalar_lea.vmem %s0, 120
    %v73 = vld [vmem:[%s72] sm:%s3]
    %s74 = scalar_lea.vmem [#allocation0], 240
    %75 = vst [vmem:[%s74] sm:%s3] %v73
    %s76 = scalar_lea.vmem %s0, 116
    %v77 = vld [vmem:[%s76] sm:%s3]
    %s78 = scalar_lea.vmem [#allocation0], 232
    %79 = vst [vmem:[%s78] sm:%s3] %v77
    %s80 = scalar_lea.vmem %s0, 112
    %v81 = vld [vmem:[%s80] sm:%s3]
    %s82 = scalar_lea.vmem [#allocation0], 224
    %83 = vst [vmem:[%s82] sm:%s3] %v81
    %s84 = scalar_lea.vmem %s0, 108
    %v85 = vld [vmem:[%s84] sm:%s3]
    %s86 = scalar_lea.vmem [#allocation0], 216
    %87 = vst [vmem:[%s86] sm:%s3] %v85
    %s88 = scalar_lea.vmem %s0, 104
    %v89 = vld [vmem:[%s88] sm:%s3]
    %s90 = scalar_lea.vmem [#allocation0], 208
    %91 = vst [vmem:[%s90] sm:%s3] %v89
    %s92 = scalar_lea.vmem %s0, 100
    %v93 = vld [vmem:[%s92] sm:%s3]
    %s94 = scalar_lea.vmem [#allocation0], 200
    %95 = vst [vmem:[%s94] sm:%s3] %v93
    %s96 = scalar_lea.vmem %s0, 96
    %v97 = vld [vmem:[%s96] sm:%s3]
    %s98 = scalar_lea.vmem [#allocation0], 192
    %99 = vst [vmem:[%s98] sm:%s3] %v97
    %s100 = scalar_lea.vmem %s0, 92
    %v101 = vld [vmem:[%s100] sm:%s3]
    %s102 = scalar_lea.vmem [#allocation0], 184
    %103 = vst [vmem:[%s102] sm:%s3] %v101
    %s104 = scalar_lea.vmem %s0, 88
    %v105 = vld [vmem:[%s104] sm:%s3]
    %s106 = scalar_lea.vmem [#allocation0], 176
    %107 = vst [vmem:[%s106] sm:%s3] %v105
    %s108 = scalar_lea.vmem %s0, 84
    %v109 = vld [vmem:[%s108] sm:%s3]
    %s110 = scalar_lea.vmem [#allocation0], 168
    %111 = vst [vmem:[%s110] sm:%s3] %v109
    %s112 = scalar_lea.vmem %s0, 80
    %v113 = vld [vmem:[%s112] sm:%s3]
    %s114 = scalar_lea.vmem [#allocation0], 160
    %115 = vst [vmem:[%s114] sm:%s3] %v113
    %s116 = scalar_lea.vmem %s0, 76
    %v117 = vld [vmem:[%s116] sm:%s3]
    %s118 = scalar_lea.vmem [#allocation0], 152
    %119 = vst [vmem:[%s118] sm:%s3] %v117
    %s120 = scalar_lea.vmem %s0, 72
    %v121 = vld [vmem:[%s120] sm:%s3]
    %s122 = scalar_lea.vmem [#allocation0], 144
    %123 = vst [vmem:[%s122] sm:%s3] %v121
    %s124 = scalar_lea.vmem %s0, 68
    %v125 = vld [vmem:[%s124] sm:%s3]
    %s126 = scalar_lea.vmem [#allocation0], 136
    %127 = vst [vmem:[%s126] sm:%s3] %v125
    %s128 = scalar_lea.vmem %s0, 64
    %v129 = vld [vmem:[%s128] sm:%s3]
    %s130 = scalar_lea.vmem [#allocation0], 128
    %131 = vst [vmem:[%s130] sm:%s3] %v129
    %s132 = scalar_lea.vmem %s0, 60
    %v133 = vld [vmem:[%s132] sm:%s3]
    %s134 = scalar_lea.vmem [#allocation0], 120
    %135 = vst [vmem:[%s134] sm:%s3] %v133
    %s136 = scalar_lea.vmem %s0, 56
    %v137 = vld [vmem:[%s136] sm:%s3]
    %s138 = scalar_lea.vmem [#allocation0], 112
    %139 = vst [vmem:[%s138] sm:%s3] %v137
    %s140 = scalar_lea.vmem %s0, 52
    %v141 = vld [vmem:[%s140] sm:%s3]
    %s142 = scalar_lea.vmem [#allocation0], 104
    %143 = vst [vmem:[%s142] sm:%s3] %v141
    %s144 = scalar_lea.vmem %s0, 48
    %v145 = vld [vmem:[%s144] sm:%s3]
    %s146 = scalar_lea.vmem [#allocation0], 96
    %147 = vst [vmem:[%s146] sm:%s3] %v145
    %s148 = scalar_lea.vmem %s0, 44
    %v149 = vld [vmem:[%s148] sm:%s3]
    %s150 = scalar_lea.vmem [#allocation0], 88
    %151 = vst [vmem:[%s150] sm:%s3] %v149
    %s152 = scalar_lea.vmem %s0, 40
    %v153 = vld [vmem:[%s152] sm:%s3]
    %s154 = scalar_lea.vmem [#allocation0], 80
    %155 = vst [vmem:[%s154] sm:%s3] %v153
    %s156 = scalar_lea.vmem %s0, 36
    %v157 = vld [vmem:[%s156] sm:%s3]
    %s158 = scalar_lea.vmem [#allocation0], 72
    %159 = vst [vmem:[%s158] sm:%s3] %v157
    %s160 = scalar_lea.vmem %s0, 32
    %v161 = vld [vmem:[%s160] sm:%s3]
    %s162 = scalar_lea.vmem [#allocation0], 64
    %163 = vst [vmem:[%s162] sm:%s3] %v161
    %s164 = scalar_lea.vmem %s0, 28
    %v165 = vld [vmem:[%s164] sm:%s3]
    %s166 = scalar_lea.vmem [#allocation0], 56
    %167 = vst [vmem:[%s166] sm:%s3] %v165
    %s168 = scalar_lea.vmem %s0, 24
    %v169 = vld [vmem:[%s168] sm:%s3]
    %s170 = scalar_lea.vmem [#allocation0], 48
    %171 = vst [vmem:[%s170] sm:%s3] %v169
    %s172 = scalar_lea.vmem %s0, 20
    %v173 = vld [vmem:[%s172] sm:%s3]
    %s174 = scalar_lea.vmem [#allocation0], 40
    %175 = vst [vmem:[%s174] sm:%s3] %v173
    %s176 = scalar_lea.vmem %s0, 16
    %v177 = vld [vmem:[%s176] sm:%s3]
    %s178 = scalar_lea.vmem [#allocation0], 32
    %179 = vst [vmem:[%s178] sm:%s3] %v177
    %s180 = scalar_lea.vmem %s0, 12
    %v181 = vld [vmem:[%s180] sm:%s3]
    %s182 = scalar_lea.vmem [#allocation0], 24
    %183 = vst [vmem:[%s182] sm:%s3] %v181
    %s184 = scalar_lea.vmem %s0, 8
    %v185 = vld [vmem:[%s184] sm:%s3]
    %s186 = scalar_lea.vmem [#allocation0], 16
    %187 = vst [vmem:[%s186] sm:%s3] %v185
    %s188 = scalar_lea.vmem %s0, 4
    %v189 = vld [vmem:[%s188] sm:%s3]
    %s190 = scalar_lea.vmem [#allocation0], 8
    %191 = vst [vmem:[%s190] sm:%s3] %v189
    %v192 = vld [vmem:[%s0] sm:%s3]
    %193 = vst [vmem:[#allocation0] sm:%s3] %v192
    %v194 = vld [vmem:[#allocation0] ss:$8 sm:$0xf]
    %v195 = vld [vmem:[#allocation0] ss:$8 sm:$0xf0]
    %vm196 = vcmask 1047556
    %v197 = vsel %vm196, %v195, %v194
    %vm198 = vcmask 97280
    %199 = vst.msk [vmem:[%s1] sm:$0xff] %vm198, %v197
    %s200 = scalar_lea.vmem [#allocation0], 64
    %v201 = vld [vmem:[%s200] ss:$8 sm:$0xf]
    %s202 = scalar_lea.vmem [#allocation0], 64
    %v203 = vld [vmem:[%s202] ss:$8 sm:$0xf0]
    %vm204 = vcmask 1047556
    %v205 = vsel %vm204, %v203, %v201
    %vm206 = vcmask 97280
    %s207 = scalar_lea.vmem %s1, 8
    %208 = vst.msk [vmem:[%s207] sm:$0xff] %vm206, %v205
    %s209 = scalar_lea.vmem [#allocation0], 128
    %v210 = vld [vmem:[%s209] ss:$8 sm:$0xf]
    %s211 = scalar_lea.vmem [#allocation0], 128
    %v212 = vld [vmem:[%s211] ss:$8 sm:$0xf0]
    %vm213 = vcmask 1047556
    %v214 = vsel %vm213, %v212, %v210
    %vm215 = vcmask 97280
    %s216 = scalar_lea.vmem %s1, 16
    %217 = vst.msk [vmem:[%s216] sm:$0xff] %vm215, %v214
    %s218 = scalar_lea.vmem [#allocation0], 192
    %v219 = vld [vmem:[%s218] ss:$8 sm:$0xf]
    %s220 = scalar_lea.vmem [#allocation0], 192
    %v221 = vld [vmem:[%s220] ss:$8 sm:$0xf0]
    %vm222 = vcmask 1047556
    %v223 = vsel %vm222, %v221, %v219
    %vm224 = vcmask 97280
    %s225 = scalar_lea.vmem %s1, 24
    %226 = vst.msk [vmem:[%s225] sm:$0xff] %vm224, %v223
    %s227 = scalar_lea.vmem [#allocation0], 256
    %v228 = vld [vmem:[%s227] ss:$8 sm:$0xf]
    %s229 = scalar_lea.vmem [#allocation0], 256
    %v230 = vld [vmem:[%s229] ss:$8 sm:$0xf0]
    %vm231 = vcmask 1047556
    %v232 = vsel %vm231, %v230, %v228
    %vm233 = vcmask 97280
    %s234 = scalar_lea.vmem %s1, 32
    %235 = vst.msk [vmem:[%s234] sm:$0xff] %vm233, %v232
    %s236 = scalar_lea.vmem [#allocation0], 320
    %v237 = vld [vmem:[%s236] ss:$8 sm:$0xf]
    %s238 = scalar_lea.vmem [#allocation0], 320
    %v239 = vld [vmem:[%s238] ss:$8 sm:$0xf0]
    %vm240 = vcmask 1047556
    %v241 = vsel %vm240, %v239, %v237
    %vm242 = vcmask 97280
    %s243 = scalar_lea.vmem %s1, 40
    %244 = vst.msk [vmem:[%s243] sm:$0xff] %vm242, %v241
    %s245 = scalar_lea.vmem [#allocation0], 3
    %v246 = vld [vmem:[%s245] ss:$8 sm:$0xf]
    %s247 = scalar_lea.vmem [#allocation0], 3
    %v248 = vld [vmem:[%s247] ss:$8 sm:$0xf0]
    %vm249 = vcmask 1047556
    %v250 = vsel %vm249, %v248, %v246
    %251 = vrot.lane.b32.xlu0 %v250, 36
    %v252 = vpop.permute.xlu0 %251
    %vm253 = vcmask 392480
    %254 = vst.msk [vmem:[%s1] sm:$0xff] %vm253, %v252
    %s255 = scalar_lea.vmem [#allocation0], 259
    %v256 = vld [vmem:[%s255] ss:$8 sm:$0xf]
    %s257 = scalar_lea.vmem [#allocation0], 259
    %v258 = vld [vmem:[%s257] ss:$8 sm:$0xf0]
    %vm259 = vcmask 1047556
    %v260 = vsel %vm259, %v258, %v256
    %261 = vrot.lane.b32.xlu0 %v260, 36
    %v262 = vpop.permute.xlu0 %261
    %vm263 = vcmask 392480
    %s264 = scalar_lea.vmem %s1, 32
    %265 = vst.msk [vmem:[%s264] sm:$0xff] %vm263, %v262
    %s266 = scalar_lea.vmem [#allocation0], 67
    %v267 = vld [vmem:[%s266] ss:$8 sm:$0xf]
    %s268 = scalar_lea.vmem [#allocation0], 67
    %v269 = vld [vmem:[%s268] ss:$8 sm:$0xf0]
    %vm270 = vcmask 1047556
    %v271 = vsel %vm270, %v269, %v267
    %272 = vrot.lane.b32.xlu0 %v271, 36
    %v273 = vpop.permute.xlu0 %272
    %vm274 = vcmask 392480
    %s275 = scalar_lea.vmem %s1, 8
    %276 = vst.msk [vmem:[%s275] sm:$0xff] %vm274, %v273
    %s277 = scalar_lea.vmem [#allocation0], 323
    %v278 = vld [vmem:[%s277] ss:$8 sm:$0xf]
    %s279 = scalar_lea.vmem [#allocation0], 323
    %v280 = vld [vmem:[%s279] ss:$8 sm:$0xf0]
    %vm281 = vcmask 1047556
    %v282 = vsel %vm281, %v280, %v278
    %283 = vrot.lane.b32.xlu0 %v282, 36
    %v284 = vpop.permute.xlu0 %283
    %vm285 = vcmask 392480
    %s286 = scalar_lea.vmem %s1, 40
    %287 = vst.msk [vmem:[%s286] sm:$0xff] %vm285, %v284
    %s288 = scalar_lea.vmem [#allocation0], 131
    %v289 = vld [vmem:[%s288] ss:$8 sm:$0xf]
    %s290 = scalar_lea.vmem [#allocation0], 131
    %v291 = vld [vmem:[%s290] ss:$8 sm:$0xf0]
    %vm292 = vcmask 1047556
    %v293 = vsel %vm292, %v291, %v289
    %294 = vrot.lane.b32.xlu0 %v293, 36
    %v295 = vpop.permute.xlu0 %294
    %vm296 = vcmask 392480
    %s297 = scalar_lea.vmem %s1, 16
    %298 = vst.msk [vmem:[%s297] sm:$0xff] %vm296, %v295
    %s299 = scalar_lea.vmem [#allocation0], 195
    %v300 = vld [vmem:[%s299] ss:$8 sm:$0xf]
    %s301 = scalar_lea.vmem [#allocation0], 195
    %v302 = vld [vmem:[%s301] ss:$8 sm:$0xf0]
    %vm303 = vcmask 1047556
    %v304 = vsel %vm303, %v302, %v300
    %305 = vrot.lane.b32.xlu0 %v304, 36
    %v306 = vpop.permute.xlu0 %305
    %vm307 = vcmask 392480
    %s308 = scalar_lea.vmem %s1, 24
    %309 = vst.msk [vmem:[%s308] sm:$0xff] %vm307, %v306
    %s310 = scalar_lea.vmem [#allocation0], 2
    %v311 = vld [vmem:[%s310] ss:$8 sm:$0xf]
    %s312 = scalar_lea.vmem [#allocation0], 2
    %v313 = vld [vmem:[%s312] ss:$8 sm:$0xf0]
    %vm314 = vcmask 1047556
    %v315 = vsel %vm314, %v313, %v311
    %316 = vrot.lane.b32.xlu0 %v315, 24
    %v317 = vpop.permute.xlu0 %316
    %vm318 = vcmask 294080
    %319 = vst.msk [vmem:[%s1] sm:$0xff] %vm318, %v317
    %s320 = scalar_lea.vmem [#allocation0], 258
    %v321 = vld [vmem:[%s320] ss:$8 sm:$0xf]
    %s322 = scalar_lea.vmem [#allocation0], 258
    %v323 = vld [vmem:[%s322] ss:$8 sm:$0xf0]
    %vm324 = vcmask 1047556
    %v325 = vsel %vm324, %v323, %v321
    %326 = vrot.lane.b32.xlu0 %v325, 24
    %v327 = vpop.permute.xlu0 %326
    %vm328 = vcmask 294080
    %s329 = scalar_lea.vmem %s1, 32
    %330 = vst.msk [vmem:[%s329] sm:$0xff] %vm328, %v327
    %s331 = scalar_lea.vmem [#allocation0], 66
    %v332 = vld [vmem:[%s331] ss:$8 sm:$0xf]
    %s333 = scalar_lea.vmem [#allocation0], 66
    %v334 = vld [vmem:[%s333] ss:$8 sm:$0xf0]
    %vm335 = vcmask 1047556
    %v336 = vsel %vm335, %v334, %v332
    %337 = vrot.lane.b32.xlu0 %v336, 24
    %v338 = vpop.permute.xlu0 %337
    %vm339 = vcmask 294080
    %s340 = scalar_lea.vmem %s1, 8
    %341 = vst.msk [vmem:[%s340] sm:$0xff] %vm339, %v338
    %s342 = scalar_lea.vmem [#allocation0], 322
    %v343 = vld [vmem:[%s342] ss:$8 sm:$0xf]
    %s344 = scalar_lea.vmem [#allocation0], 322
    %v345 = vld [vmem:[%s344] ss:$8 sm:$0xf0]
    %vm346 = vcmask 1047556
    %v347 = vsel %vm346, %v345, %v343
    %348 = vrot.lane.b32.xlu0 %v347, 24
    %v349 = vpop.permute.xlu0 %348
    %vm350 = vcmask 294080
    %s351 = scalar_lea.vmem %s1, 40
    %352 = vst.msk [vmem:[%s351] sm:$0xff] %vm350, %v349
    %s353 = scalar_lea.vmem [#allocation0], 130
    %v354 = vld [vmem:[%s353] ss:$8 sm:$0xf]
    %s355 = scalar_lea.vmem [#allocation0], 130
    %v356 = vld [vmem:[%s355] ss:$8 sm:$0xf0]
    %vm357 = vcmask 1047556
    %v358 = vsel %vm357, %v356, %v354
    %359 = vrot.lane.b32.xlu0 %v358, 24
    %v360 = vpop.permute.xlu0 %359
    %vm361 = vcmask 294080
    %s362 = scalar_lea.vmem %s1, 16
    %363 = vst.msk [vmem:[%s362] sm:$0xff] %vm361, %v360
    %s364 = scalar_lea.vmem [#allocation0], 194
    %v365 = vld [vmem:[%s364] ss:$8 sm:$0xf]
    %s366 = scalar_lea.vmem [#allocation0], 194
    %v367 = vld [vmem:[%s366] ss:$8 sm:$0xf0]
    %vm368 = vcmask 1047556
    %v369 = vsel %vm368, %v367, %v365
    %370 = vrot.lane.b32.xlu0 %v369, 24
    %v371 = vpop.permute.xlu0 %370
    %vm372 = vcmask 294080
    %s373 = scalar_lea.vmem %s1, 24
    %374 = vst.msk [vmem:[%s373] sm:$0xff] %vm372, %v371
    %s375 = scalar_lea.vmem [#allocation0], 1
    %v376 = vld [vmem:[%s375] ss:$8 sm:$0xf]
    %s377 = scalar_lea.vmem [#allocation0], 1
    %v378 = vld [vmem:[%s377] ss:$8 sm:$0xf0]
    %vm379 = vcmask 1047556
    %v380 = vsel %vm379, %v378, %v376
    %381 = vrot.lane.b32.xlu0 %v380, 12
    %v382 = vpop.permute.xlu0 %381
    %vm383 = vcmask 195680
    %384 = vst.msk [vmem:[%s1] sm:$0xff] %vm383, %v382
    %s385 = scalar_lea.vmem [#allocation0], 257
    %v386 = vld [vmem:[%s385] ss:$8 sm:$0xf]
    %s387 = scalar_lea.vmem [#allocation0], 257
    %v388 = vld [vmem:[%s387] ss:$8 sm:$0xf0]
    %vm389 = vcmask 1047556
    %v390 = vsel %vm389, %v388, %v386
    %391 = vrot.lane.b32.xlu0 %v390, 12
    %v392 = vpop.permute.xlu0 %391
    %vm393 = vcmask 195680
    %s394 = scalar_lea.vmem %s1, 32
    %395 = vst.msk [vmem:[%s394] sm:$0xff] %vm393, %v392
    %s396 = scalar_lea.vmem [#allocation0], 65
    %v397 = vld [vmem:[%s396] ss:$8 sm:$0xf]
    %s398 = scalar_lea.vmem [#allocation0], 65
    %v399 = vld [vmem:[%s398] ss:$8 sm:$0xf0]
    %vm400 = vcmask 1047556
    %v401 = vsel %vm400, %v399, %v397
    %402 = vrot.lane.b32.xlu0 %v401, 12
    %v403 = vpop.permute.xlu0 %402
    %vm404 = vcmask 195680
    %s405 = scalar_lea.vmem %s1, 8
    %406 = vst.msk [vmem:[%s405] sm:$0xff] %vm404, %v403
    %s407 = scalar_lea.vmem [#allocation0], 321
    %v408 = vld [vmem:[%s407] ss:$8 sm:$0xf]
    %s409 = scalar_lea.vmem [#allocation0], 321
    %v410 = vld [vmem:[%s409] ss:$8 sm:$0xf0]
    %vm411 = vcmask 1047556
    %v412 = vsel %vm411, %v410, %v408
    %413 = vrot.lane.b32.xlu0 %v412, 12
    %v414 = vpop.permute.xlu0 %413
    %vm415 = vcmask 195680
    %s416 = scalar_lea.vmem %s1, 40
    %417 = vst.msk [vmem:[%s416] sm:$0xff] %vm415, %v414
    %s418 = scalar_lea.vmem [#allocation0], 129
    %v419 = vld [vmem:[%s418] ss:$8 sm:$0xf]
    %s420 = scalar_lea.vmem [#allocation0], 129
    %v421 = vld [vmem:[%s420] ss:$8 sm:$0xf0]
    %vm422 = vcmask 1047556
    %v423 = vsel %vm422, %v421, %v419
    %424 = vrot.lane.b32.xlu0 %v423, 12
    %v425 = vpop.permute.xlu0 %424
    %vm426 = vcmask 195680
    %s427 = scalar_lea.vmem %s1, 16
    %428 = vst.msk [vmem:[%s427] sm:$0xff] %vm426, %v425
    %s429 = scalar_lea.vmem [#allocation0], 193
    %v430 = vld [vmem:[%s429] ss:$8 sm:$0xf]
    %s431 = scalar_lea.vmem [#allocation0], 193
    %v432 = vld [vmem:[%s431] ss:$8 sm:$0xf0]
    %vm433 = vcmask 1047556
    %v434 = vsel %vm433, %v432, %v430
    %435 = vrot.lane.b32.xlu0 %v434, 12
    %v436 = vpop.permute.xlu0 %435
    %vm437 = vcmask 195680
    %s438 = scalar_lea.vmem %s1, 24
    %439 = vst.msk [vmem:[%s438] sm:$0xff] %vm437, %v436

// kernel: tile.38
$region0: #{tile.38}
  #allocation0 [shape = 's32[1]{0}', space=sflag, size = 0x4, scoped, tag = 'scoped memory for tile.38']
  %s0 = inlined_call_operand.vmem [shape: f32[12,16], index: 0, kind: input, shape index: {}]
  %s1 = inlined_call_operand.vmem [shape: f32[4,12,4,16], index: 1, kind: output, shape index: {}]
  // Predicated region
  $region2: #{tile.38} parent=0 // pred_check
    _
  $region3: #{tile.38} parent=0 // pred_check_branch
    %3 = sbr.rel (0) target = $region5
  $region4: #{tile.38} parent=0 // pred_region
    _
  $region5: #{tile.38} parent=0 // pred_fallthru
    _
  %v4 = vld [vmem:[%s0] ss:$0 sm:$0xff]
  %5 = vst [vmem:[%s1] sm:$0xf] %v4
  %s6 = scalar_lea.vmem %s1, 48
  %7 = vst [vmem:[%s6] sm:$0xf] %v4
  %s8 = scalar_lea.vmem %s1, 96
  %9 = vst [vmem:[%s8] sm:$0xf] %v4
  %s10 = scalar_lea.vmem %s1, 144
  %11 = vst [vmem:[%s10] sm:$0xf] %v4
  %s12 = scalar_lea.vmem %s0, 1
  %v13 = vld [vmem:[%s12] ss:$0 sm:$0xff]
  %s14 = scalar_lea.vmem %s1, 4
  %15 = vst [vmem:[%s14] sm:$0xf] %v13
  %s16 = scalar_lea.vmem %s1, 52
  %17 = vst [vmem:[%s16] sm:$0xf] %v13
  %s18 = scalar_lea.vmem %s1, 100
  %19 = vst [vmem:[%s18] sm:$0xf] %v13
  %s20 = scalar_lea.vmem %s1, 148
  %21 = vst [vmem:[%s20] sm:$0xf] %v13
  %s22 = scalar_lea.vmem %s0, 2
  %v23 = vld [vmem:[%s22] ss:$0 sm:$0xff]
  %s24 = scalar_lea.vmem %s1, 8
  %25 = vst [vmem:[%s24] sm:$0xf] %v23
  %s26 = scalar_lea.vmem %s1, 56
  %27 = vst [vmem:[%s26] sm:$0xf] %v23
  %s28 = scalar_lea.vmem %s1, 104
  %29 = vst [vmem:[%s28] sm:$0xf] %v23
  %s30 = scalar_lea.vmem %s1, 152
  %31 = vst [vmem:[%s30] sm:$0xf] %v23
  %s32 = scalar_lea.vmem %s0, 3
  %v33 = vld [vmem:[%s32] ss:$0 sm:$0xff]
  %s34 = scalar_lea.vmem %s1, 12
  %35 = vst [vmem:[%s34] sm:$0xf] %v33
  %s36 = scalar_lea.vmem %s1, 60
  %37 = vst [vmem:[%s36] sm:$0xf] %v33
  %s38 = scalar_lea.vmem %s1, 108
  %39 = vst [vmem:[%s38] sm:$0xf] %v33
  %s40 = scalar_lea.vmem %s1, 156
  %41 = vst [vmem:[%s40] sm:$0xf] %v33
  %s42 = scalar_lea.vmem %s0, 4
  %v43 = vld [vmem:[%s42] ss:$0 sm:$0xff]
  %s44 = scalar_lea.vmem %s1, 16
  %45 = vst [vmem:[%s44] sm:$0xf] %v43
  %s46 = scalar_lea.vmem %s1, 64
  %47 = vst [vmem:[%s46] sm:$0xf] %v43
  %s48 = scalar_lea.vmem %s1, 112
  %49 = vst [vmem:[%s48] sm:$0xf] %v43
  %s50 = scalar_lea.vmem %s1, 160
  %51 = vst [vmem:[%s50] sm:$0xf] %v43
  %s52 = scalar_lea.vmem %s0, 5
  %v53 = vld [vmem:[%s52] ss:$0 sm:$0xff]
  %s54 = scalar_lea.vmem %s1, 20
  %55 = vst [vmem:[%s54] sm:$0xf] %v53
  %s56 = scalar_lea.vmem %s1, 68
  %57 = vst [vmem:[%s56] sm:$0xf] %v53
  %s58 = scalar_lea.vmem %s1, 116
  %59 = vst [vmem:[%s58] sm:$0xf] %v53
  %s60 = scalar_lea.vmem %s1, 164
  %61 = vst [vmem:[%s60] sm:$0xf] %v53
  %s62 = scalar_lea.vmem %s0, 6
  %v63 = vld [vmem:[%s62] ss:$0 sm:$0xff]
  %s64 = scalar_lea.vmem %s1, 24
  %65 = vst [vmem:[%s64] sm:$0xf] %v63
  %s66 = scalar_lea.vmem %s1, 72
  %67 = vst [vmem:[%s66] sm:$0xf] %v63
  %s68 = scalar_lea.vmem %s1, 120
  %69 = vst [vmem:[%s68] sm:$0xf] %v63
  %s70 = scalar_lea.vmem %s1, 168
  %71 = vst [vmem:[%s70] sm:$0xf] %v63
  %s72 = scalar_lea.vmem %s0, 7
  %v73 = vld [vmem:[%s72] ss:$0 sm:$0xff]
  %s74 = scalar_lea.vmem %s1, 28
  %75 = vst [vmem:[%s74] sm:$0xf] %v73
  %s76 = scalar_lea.vmem %s1, 76
  %77 = vst [vmem:[%s76] sm:$0xf] %v73
  %s78 = scalar_lea.vmem %s1, 124
  %79 = vst [vmem:[%s78] sm:$0xf] %v73
  %s80 = scalar_lea.vmem %s1, 172
  %81 = vst [vmem:[%s80] sm:$0xf] %v73
  %s82 = scalar_lea.vmem %s0, 8
  %v83 = vld [vmem:[%s82] ss:$0 sm:$0xff]
  %s84 = scalar_lea.vmem %s1, 32
  %85 = vst [vmem:[%s84] sm:$0xf] %v83
  %s86 = scalar_lea.vmem %s1, 80
  %87 = vst [vmem:[%s86] sm:$0xf] %v83
  %s88 = scalar_lea.vmem %s1, 128
  %89 = vst [vmem:[%s88] sm:$0xf] %v83
  %s90 = scalar_lea.vmem %s1, 176
  %91 = vst [vmem:[%s90] sm:$0xf] %v83
  %s92 = scalar_lea.vmem %s0, 8
  %s93 = scalar_lea.vmem %s92, 1
  %v94 = vld [vmem:[%s93] ss:$0 sm:$0xff]
  %s95 = scalar_lea.vmem %s1, 36
  %96 = vst [vmem:[%s95] sm:$0xf] %v94
  %s97 = scalar_lea.vmem %s1, 84
  %98 = vst [vmem:[%s97] sm:$0xf] %v94
  %s99 = scalar_lea.vmem %s1, 132
  %100 = vst [vmem:[%s99] sm:$0xf] %v94
  %s101 = scalar_lea.vmem %s1, 180
  %102 = vst [vmem:[%s101] sm:$0xf] %v94
  %s103 = scalar_lea.vmem %s0, 8
  %s104 = scalar_lea.vmem %s103, 2
  %v105 = vld [vmem:[%s104] ss:$0 sm:$0xff]
  %s106 = scalar_lea.vmem %s1, 40
  %107 = vst [vmem:[%s106] sm:$0xf] %v105
  %s108 = scalar_lea.vmem %s1, 88
  %109 = vst [vmem:[%s108] sm:$0xf] %v105
  %s110 = scalar_lea.vmem %s1, 136
  %111 = vst [vmem:[%s110] sm:$0xf] %v105
  %s112 = scalar_lea.vmem %s1, 184
  %113 = vst [vmem:[%s112] sm:$0xf] %v105
  %s114 = scalar_lea.vmem %s0, 8
  %s115 = scalar_lea.vmem %s114, 3
  %v116 = vld [vmem:[%s115] ss:$0 sm:$0xff]
  %s117 = scalar_lea.vmem %s1, 44
  %118 = vst [vmem:[%s117] sm:$0xf] %v116
  %s119 = scalar_lea.vmem %s1, 92
  %120 = vst [vmem:[%s119] sm:$0xf] %v116
  %s121 = scalar_lea.vmem %s1, 140
  %122 = vst [vmem:[%s121] sm:$0xf] %v116
  %s123 = scalar_lea.vmem %s1, 188
  %124 = vst [vmem:[%s123] sm:$0xf] %v116

// kernel: tile.39
$region0: #{tile.39}
  %s0 = inlined_call_operand.vmem [shape: f32[4,12,4,16], index: 0, kind: input, shape index: {}]
  %s1 = inlined_call_operand.vmem [shape: f32[48,64], index: 1, kind: output, shape index: {}]
  $region1: #{tile.39} parent=0
    #allocation0 [shape = 'u8[196608]{0}', space=vmem, size = 0x30000, scoped, tag = 'scoped mem for input reshape']
    %s3 = ssub.s32 16, 1
    %s4 = scalar_lea.vmem %s0, 188
    %v5 = vld [vmem:[%s4] sm:%s3]
    %s6 = scalar_lea.vmem [#allocation0], 376
    %7 = vst [vmem:[%s6] sm:%s3] %v5
    %s8 = scalar_lea.vmem %s0, 184
    %v9 = vld [vmem:[%s8] sm:%s3]
    %s10 = scalar_lea.vmem [#allocation0], 368
    %11 = vst [vmem:[%s10] sm:%s3] %v9
    %s12 = scalar_lea.vmem %s0, 180
    %v13 = vld [vmem:[%s12] sm:%s3]
    %s14 = scalar_lea.vmem [#allocation0], 360
    %15 = vst [vmem:[%s14] sm:%s3] %v13
    %s16 = scalar_lea.vmem %s0, 176
    %v17 = vld [vmem:[%s16] sm:%s3]
    %s18 = scalar_lea.vmem [#allocation0], 352
    %19 = vst [vmem:[%s18] sm:%s3] %v17
    %s20 = scalar_lea.vmem %s0, 172
    %v21 = vld [vmem:[%s20] sm:%s3]
    %s22 = scalar_lea.vmem [#allocation0], 344
    %23 = vst [vmem:[%s22] sm:%s3] %v21
    %s24 = scalar_lea.vmem %s0, 168
    %v25 = vld [vmem:[%s24] sm:%s3]
    %s26 = scalar_lea.vmem [#allocation0], 336
    %27 = vst [vmem:[%s26] sm:%s3] %v25
    %s28 = scalar_lea.vmem %s0, 164
    %v29 = vld [vmem:[%s28] sm:%s3]
    %s30 = scalar_lea.vmem [#allocation0], 328
    %31 = vst [vmem:[%s30] sm:%s3] %v29
    %s32 = scalar_lea.vmem %s0, 160
    %v33 = vld [vmem:[%s32] sm:%s3]
    %s34 = scalar_lea.vmem [#allocation0], 320
    %35 = vst [vmem:[%s34] sm:%s3] %v33
    %s36 = scalar_lea.vmem %s0, 156
    %v37 = vld [vmem:[%s36] sm:%s3]
    %s38 = scalar_lea.vmem [#allocation0], 312
    %39 = vst [vmem:[%s38] sm:%s3] %v37
    %s40 = scalar_lea.vmem %s0, 152
    %v41 = vld [vmem:[%s40] sm:%s3]
    %s42 = scalar_lea.vmem [#allocation0], 304
    %43 = vst [vmem:[%s42] sm:%s3] %v41
    %s44 = scalar_lea.vmem %s0, 148
    %v45 = vld [vmem:[%s44] sm:%s3]
    %s46 = scalar_lea.vmem [#allocation0], 296
    %47 = vst [vmem:[%s46] sm:%s3] %v45
    %s48 = scalar_lea.vmem %s0, 144
    %v49 = vld [vmem:[%s48] sm:%s3]
    %s50 = scalar_lea.vmem [#allocation0], 288
    %51 = vst [vmem:[%s50] sm:%s3] %v49
    %s52 = scalar_lea.vmem %s0, 140
    %v53 = vld [vmem:[%s52] sm:%s3]
    %s54 = scalar_lea.vmem [#allocation0], 280
    %55 = vst [vmem:[%s54] sm:%s3] %v53
    %s56 = scalar_lea.vmem %s0, 136
    %v57 = vld [vmem:[%s56] sm:%s3]
    %s58 = scalar_lea.vmem [#allocation0], 272
    %59 = vst [vmem:[%s58] sm:%s3] %v57
    %s60 = scalar_lea.vmem %s0, 132
    %v61 = vld [vmem:[%s60] sm:%s3]
    %s62 = scalar_lea.vmem [#allocation0], 264
    %63 = vst [vmem:[%s62] sm:%s3] %v61
    %s64 = scalar_lea.vmem %s0, 128
    %v65 = vld [vmem:[%s64] sm:%s3]
    %s66 = scalar_lea.vmem [#allocation0], 256
    %67 = vst [vmem:[%s66] sm:%s3] %v65
    %s68 = scalar_lea.vmem %s0, 124
    %v69 = vld [vmem:[%s68] sm:%s3]
    %s70 = scalar_lea.vmem [#allocation0], 248
    %71 = vst [vmem:[%s70] sm:%s3] %v69
    %s72 = scalar_lea.vmem %s0, 120
    %v73 = vld [vmem:[%s72] sm:%s3]
    %s74 = scalar_lea.vmem [#allocation0], 240
    %75 = vst [vmem:[%s74] sm:%s3] %v73
    %s76 = scalar_lea.vmem %s0, 116
    %v77 = vld [vmem:[%s76] sm:%s3]
    %s78 = scalar_lea.vmem [#allocation0], 232
    %79 = vst [vmem:[%s78] sm:%s3] %v77
    %s80 = scalar_lea.vmem %s0, 112
    %v81 = vld [vmem:[%s80] sm:%s3]
    %s82 = scalar_lea.vmem [#allocation0], 224
    %83 = vst [vmem:[%s82] sm:%s3] %v81
    %s84 = scalar_lea.vmem %s0, 108
    %v85 = vld [vmem:[%s84] sm:%s3]
    %s86 = scalar_lea.vmem [#allocation0], 216
    %87 = vst [vmem:[%s86] sm:%s3] %v85
    %s88 = scalar_lea.vmem %s0, 104
    %v89 = vld [vmem:[%s88] sm:%s3]
    %s90 = scalar_lea.vmem [#allocation0], 208
    %91 = vst [vmem:[%s90] sm:%s3] %v89
    %s92 = scalar_lea.vmem %s0, 100
    %v93 = vld [vmem:[%s92] sm:%s3]
    %s94 = scalar_lea.vmem [#allocation0], 200
    %95 = vst [vmem:[%s94] sm:%s3] %v93
    %s96 = scalar_lea.vmem %s0, 96
    %v97 = vld [vmem:[%s96] sm:%s3]
    %s98 = scalar_lea.vmem [#allocation0], 192
    %99 = vst [vmem:[%s98] sm:%s3] %v97
    %s100 = scalar_lea.vmem %s0, 92
    %v101 = vld [vmem:[%s100] sm:%s3]
    %s102 = scalar_lea.vmem [#allocation0], 184
    %103 = vst [vmem:[%s102] sm:%s3] %v101
    %s104 = scalar_lea.vmem %s0, 88
    %v105 = vld [vmem:[%s104] sm:%s3]
    %s106 = scalar_lea.vmem [#allocation0], 176
    %107 = vst [vmem:[%s106] sm:%s3] %v105
    %s108 = scalar_lea.vmem %s0, 84
    %v109 = vld [vmem:[%s108] sm:%s3]
    %s110 = scalar_lea.vmem [#allocation0], 168
    %111 = vst [vmem:[%s110] sm:%s3] %v109
    %s112 = scalar_lea.vmem %s0, 80
    %v113 = vld [vmem:[%s112] sm:%s3]
    %s114 = scalar_lea.vmem [#allocation0], 160
    %115 = vst [vmem:[%s114] sm:%s3] %v113
    %s116 = scalar_lea.vmem %s0, 76
    %v117 = vld [vmem:[%s116] sm:%s3]
    %s118 = scalar_lea.vmem [#allocation0], 152
    %119 = vst [vmem:[%s118] sm:%s3] %v117
    %s120 = scalar_lea.vmem %s0, 72
    %v121 = vld [vmem:[%s120] sm:%s3]
    %s122 = scalar_lea.vmem [#allocation0], 144
    %123 = vst [vmem:[%s122] sm:%s3] %v121
    %s124 = scalar_lea.vmem %s0, 68
    %v125 = vld [vmem:[%s124] sm:%s3]
    %s126 = scalar_lea.vmem [#allocation0], 136
    %127 = vst [vmem:[%s126] sm:%s3] %v125
    %s128 = scalar_lea.vmem %s0, 64
    %v129 = vld [vmem:[%s128] sm:%s3]
    %s130 = scalar_lea.vmem [#allocation0], 128
    %131 = vst [vmem:[%s130] sm:%s3] %v129
    %s132 = scalar_lea.vmem %s0, 60
    %v133 = vld [vmem:[%s132] sm:%s3]
    %s134 = scalar_lea.vmem [#allocation0], 120
    %135 = vst [vmem:[%s134] sm:%s3] %v133
    %s136 = scalar_lea.vmem %s0, 56
    %v137 = vld [vmem:[%s136] sm:%s3]
    %s138 = scalar_lea.vmem [#allocation0], 112
    %139 = vst [vmem:[%s138] sm:%s3] %v137
    %s140 = scalar_lea.vmem %s0, 52
    %v141 = vld [vmem:[%s140] sm:%s3]
    %s142 = scalar_lea.vmem [#allocation0], 104
    %143 = vst [vmem:[%s142] sm:%s3] %v141
    %s144 = scalar_lea.vmem %s0, 48
    %v145 = vld [vmem:[%s144] sm:%s3]
    %s146 = scalar_lea.vmem [#allocation0], 96
    %147 = vst [vmem:[%s146] sm:%s3] %v145
    %s148 = scalar_lea.vmem %s0, 44
    %v149 = vld [vmem:[%s148] sm:%s3]
    %s150 = scalar_lea.vmem [#allocation0], 88
    %151 = vst [vmem:[%s150] sm:%s3] %v149
    %s152 = scalar_lea.vmem %s0, 40
    %v153 = vld [vmem:[%s152] sm:%s3]
    %s154 = scalar_lea.vmem [#allocation0], 80
    %155 = vst [vmem:[%s154] sm:%s3] %v153
    %s156 = scalar_lea.vmem %s0, 36
    %v157 = vld [vmem:[%s156] sm:%s3]
    %s158 = scalar_lea.vmem [#allocation0], 72
    %159 = vst [vmem:[%s158] sm:%s3] %v157
    %s160 = scalar_lea.vmem %s0, 32
    %v161 = vld [vmem:[%s160] sm:%s3]
    %s162 = scalar_lea.vmem [#allocation0], 64
    %163 = vst [vmem:[%s162] sm:%s3] %v161
    %s164 = scalar_lea.vmem %s0, 28
    %v165 = vld [vmem:[%s164] sm:%s3]
    %s166 = scalar_lea.vmem [#allocation0], 56
    %167 = vst [vmem:[%s166] sm:%s3] %v165
    %s168 = scalar_lea.vmem %s0, 24
    %v169 = vld [vmem:[%s168] sm:%s3]
    %s170 = scalar_lea.vmem [#allocation0], 48
    %171 = vst [vmem:[%s170] sm:%s3] %v169
    %s172 = scalar_lea.vmem %s0, 20
    %v173 = vld [vmem:[%s172] sm:%s3]
    %s174 = scalar_lea.vmem [#allocation0], 40
    %175 = vst [vmem:[%s174] sm:%s3] %v173
    %s176 = scalar_lea.vmem %s0, 16
    %v177 = vld [vmem:[%s176] sm:%s3]
    %s178 = scalar_lea.vmem [#allocation0], 32
    %179 = vst [vmem:[%s178] sm:%s3] %v177
    %s180 = scalar_lea.vmem %s0, 12
    %v181 = vld [vmem:[%s180] sm:%s3]
    %s182 = scalar_lea.vmem [#allocation0], 24
    %183 = vst [vmem:[%s182] sm:%s3] %v181
    %s184 = scalar_lea.vmem %s0, 8
    %v185 = vld [vmem:[%s184] sm:%s3]
    %s186 = scalar_lea.vmem [#allocation0], 16
    %187 = vst [vmem:[%s186] sm:%s3] %v185
    %s188 = scalar_lea.vmem %s0, 4
    %v189 = vld [vmem:[%s188] sm:%s3]
    %s190 = scalar_lea.vmem [#allocation0], 8
    %191 = vst [vmem:[%s190] sm:%s3] %v189
    %v192 = vld [vmem:[%s0] sm:%s3]
    %193 = vst [vmem:[#allocation0] sm:%s3] %v192
    %v194 = vld [vmem:[#allocation0] ss:$8 sm:$0xf]
    %v195 = vld [vmem:[#allocation0] ss:$8 sm:$0xf0]
    %vm196 = vcmask 1047556
    %v197 = vsel %vm196, %v195, %v194
    %vm198 = vcmask 130048
    %199 = vst.msk [vmem:[%s1] sm:$0xff] %vm198, %v197
    %s200 = scalar_lea.vmem [#allocation0], 64
    %v201 = vld [vmem:[%s200] ss:$8 sm:$0xf]
    %s202 = scalar_lea.vmem [#allocation0], 64
    %v203 = vld [vmem:[%s202] ss:$8 sm:$0xf0]
    %vm204 = vcmask 1047556
    %v205 = vsel %vm204, %v203, %v201
    %vm206 = vcmask 130048
    %s207 = scalar_lea.vmem %s1, 8
    %208 = vst.msk [vmem:[%s207] sm:$0xff] %vm206, %v205
    %s209 = scalar_lea.vmem [#allocation0], 128
    %v210 = vld [vmem:[%s209] ss:$8 sm:$0xf]
    %s211 = scalar_lea.vmem [#allocation0], 128
    %v212 = vld [vmem:[%s211] ss:$8 sm:$0xf0]
    %vm213 = vcmask 1047556
    %v214 = vsel %vm213, %v212, %v210
    %vm215 = vcmask 130048
    %s216 = scalar_lea.vmem %s1, 16
    %217 = vst.msk [vmem:[%s216] sm:$0xff] %vm215, %v214
    %s218 = scalar_lea.vmem [#allocation0], 192
    %v219 = vld [vmem:[%s218] ss:$8 sm:$0xf]
    %s220 = scalar_lea.vmem [#allocation0], 192
    %v221 = vld [vmem:[%s220] ss:$8 sm:$0xf0]
    %vm222 = vcmask 1047556
    %v223 = vsel %vm222, %v221, %v219
    %vm224 = vcmask 130048
    %s225 = scalar_lea.vmem %s1, 24
    %226 = vst.msk [vmem:[%s225] sm:$0xff] %vm224, %v223
    %s227 = scalar_lea.vmem [#allocation0], 256
    %v228 = vld [vmem:[%s227] ss:$8 sm:$0xf]
    %s229 = scalar_lea.vmem [#allocation0], 256
    %v230 = vld [vmem:[%s229] ss:$8 sm:$0xf0]
    %vm231 = vcmask 1047556
    %v232 = vsel %vm231, %v230, %v228
    %vm233 = vcmask 130048
    %s234 = scalar_lea.vmem %s1, 32
    %235 = vst.msk [vmem:[%s234] sm:$0xff] %vm233, %v232
    %s236 = scalar_lea.vmem [#allocation0], 320
    %v237 = vld [vmem:[%s236] ss:$8 sm:$0xf]
    %s238 = scalar_lea.vmem [#allocation0], 320
    %v239 = vld [vmem:[%s238] ss:$8 sm:$0xf0]
    %vm240 = vcmask 1047556
    %v241 = vsel %vm240, %v239, %v237
    %vm242 = vcmask 130048
    %s243 = scalar_lea.vmem %s1, 40
    %244 = vst.msk [vmem:[%s243] sm:$0xff] %vm242, %v241
    %s245 = scalar_lea.vmem [#allocation0], 3
    %v246 = vld [vmem:[%s245] ss:$8 sm:$0xf]
    %s247 = scalar_lea.vmem [#allocation0], 3
    %v248 = vld [vmem:[%s247] ss:$8 sm:$0xf0]
    %vm249 = vcmask 1047556
    %v250 = vsel %vm249, %v248, %v246
    %251 = vrot.lane.b32.xlu0 %v250, 48
    %v252 = vpop.permute.xlu0 %251
    %vm253 = vcmask 523648
    %254 = vst.msk [vmem:[%s1] sm:$0xff] %vm253, %v252
    %s255 = scalar_lea.vmem [#allocation0], 259
    %v256 = vld [vmem:[%s255] ss:$8 sm:$0xf]
    %s257 = scalar_lea.vmem [#allocation0], 259
    %v258 = vld [vmem:[%s257] ss:$8 sm:$0xf0]
    %vm259 = vcmask 1047556
    %v260 = vsel %vm259, %v258, %v256
    %261 = vrot.lane.b32.xlu0 %v260, 48
    %v262 = vpop.permute.xlu0 %261
    %vm263 = vcmask 523648
    %s264 = scalar_lea.vmem %s1, 32
    %265 = vst.msk [vmem:[%s264] sm:$0xff] %vm263, %v262
    %s266 = scalar_lea.vmem [#allocation0], 67
    %v267 = vld [vmem:[%s266] ss:$8 sm:$0xf]
    %s268 = scalar_lea.vmem [#allocation0], 67
    %v269 = vld [vmem:[%s268] ss:$8 sm:$0xf0]
    %vm270 = vcmask 1047556
    %v271 = vsel %vm270, %v269, %v267
    %272 = vrot.lane.b32.xlu0 %v271, 48
    %v273 = vpop.permute.xlu0 %272
    %vm274 = vcmask 523648
    %s275 = scalar_lea.vmem %s1, 8
    %276 = vst.msk [vmem:[%s275] sm:$0xff] %vm274, %v273
    %s277 = scalar_lea.vmem [#allocation0], 323
    %v278 = vld [vmem:[%s277] ss:$8 sm:$0xf]
    %s279 = scalar_lea.vmem [#allocation0], 323
    %v280 = vld [vmem:[%s279] ss:$8 sm:$0xf0]
    %vm281 = vcmask 1047556
    %v282 = vsel %vm281, %v280, %v278
    %283 = vrot.lane.b32.xlu0 %v282, 48
    %v284 = vpop.permute.xlu0 %283
    %vm285 = vcmask 523648
    %s286 = scalar_lea.vmem %s1, 40
    %287 = vst.msk [vmem:[%s286] sm:$0xff] %vm285, %v284
    %s288 = scalar_lea.vmem [#allocation0], 131
    %v289 = vld [vmem:[%s288] ss:$8 sm:$0xf]
    %s290 = scalar_lea.vmem [#allocation0], 131
    %v291 = vld [vmem:[%s290] ss:$8 sm:$0xf0]
    %vm292 = vcmask 1047556
    %v293 = vsel %vm292, %v291, %v289
    %294 = vrot.lane.b32.xlu0 %v293, 48
    %v295 = vpop.permute.xlu0 %294
    %vm296 = vcmask 523648
    %s297 = scalar_lea.vmem %s1, 16
    %298 = vst.msk [vmem:[%s297] sm:$0xff] %vm296, %v295
    %s299 = scalar_lea.vmem [#allocation0], 195
    %v300 = vld [vmem:[%s299] ss:$8 sm:$0xf]
    %s301 = scalar_lea.vmem [#allocation0], 195
    %v302 = vld [vmem:[%s301] ss:$8 sm:$0xf0]
    %vm303 = vcmask 1047556
    %v304 = vsel %vm303, %v302, %v300
    %305 = vrot.lane.b32.xlu0 %v304, 48
    %v306 = vpop.permute.xlu0 %305
    %vm307 = vcmask 523648
    %s308 = scalar_lea.vmem %s1, 24
    %309 = vst.msk [vmem:[%s308] sm:$0xff] %vm307, %v306
    %s310 = scalar_lea.vmem [#allocation0], 2
    %v311 = vld [vmem:[%s310] ss:$8 sm:$0xf]
    %s312 = scalar_lea.vmem [#allocation0], 2
    %v313 = vld [vmem:[%s312] ss:$8 sm:$0xf0]
    %vm314 = vcmask 1047556
    %v315 = vsel %vm314, %v313, %v311
    %316 = vrot.lane.b32.xlu0 %v315, 32
    %v317 = vpop.permute.xlu0 %316
    %vm318 = vcmask 392448
    %319 = vst.msk [vmem:[%s1] sm:$0xff] %vm318, %v317
    %s320 = scalar_lea.vmem [#allocation0], 258
    %v321 = vld [vmem:[%s320] ss:$8 sm:$0xf]
    %s322 = scalar_lea.vmem [#allocation0], 258
    %v323 = vld [vmem:[%s322] ss:$8 sm:$0xf0]
    %vm324 = vcmask 1047556
    %v325 = vsel %vm324, %v323, %v321
    %326 = vrot.lane.b32.xlu0 %v325, 32
    %v327 = vpop.permute.xlu0 %326
    %vm328 = vcmask 392448
    %s329 = scalar_lea.vmem %s1, 32
    %330 = vst.msk [vmem:[%s329] sm:$0xff] %vm328, %v327
    %s331 = scalar_lea.vmem [#allocation0], 66
    %v332 = vld [vmem:[%s331] ss:$8 sm:$0xf]
    %s333 = scalar_lea.vmem [#allocation0], 66
    %v334 = vld [vmem:[%s333] ss:$8 sm:$0xf0]
    %vm335 = vcmask 1047556
    %v336 = vsel %vm335, %v334, %v332
    %337 = vrot.lane.b32.xlu0 %v336, 32
    %v338 = vpop.permute.xlu0 %337
    %vm339 = vcmask 392448
    %s340 = scalar_lea.vmem %s1, 8
    %341 = vst.msk [vmem:[%s340] sm:$0xff] %vm339, %v338
    %s342 = scalar_lea.vmem [#allocation0], 322
    %v343 = vld [vmem:[%s342] ss:$8 sm:$0xf]
    %s344 = scalar_lea.vmem [#allocation0], 322
    %v345 = vld [vmem:[%s344] ss:$8 sm:$0xf0]
    %vm346 = vcmask 1047556
    %v347 = vsel %vm346, %v345, %v343
    %348 = vrot.lane.b32.xlu0 %v347, 32
    %v349 = vpop.permute.xlu0 %348
    %vm350 = vcmask 392448
    %s351 = scalar_lea.vmem %s1, 40
    %352 = vst.msk [vmem:[%s351] sm:$0xff] %vm350, %v349
    %s353 = scalar_lea.vmem [#allocation0], 130
    %v354 = vld [vmem:[%s353] ss:$8 sm:$0xf]
    %s355 = scalar_lea.vmem [#allocation0], 130
    %v356 = vld [vmem:[%s355] ss:$8 sm:$0xf0]
    %vm357 = vcmask 1047556
    %v358 = vsel %vm357, %v356, %v354
    %359 = vrot.lane.b32.xlu0 %v358, 32
    %v360 = vpop.permute.xlu0 %359
    %vm361 = vcmask 392448
    %s362 = scalar_lea.vmem %s1, 16
    %363 = vst.msk [vmem:[%s362] sm:$0xff] %vm361, %v360
    %s364 = scalar_lea.vmem [#allocation0], 194
    %v365 = vld [vmem:[%s364] ss:$8 sm:$0xf]
    %s366 = scalar_lea.vmem [#allocation0], 194
    %v367 = vld [vmem:[%s366] ss:$8 sm:$0xf0]
    %vm368 = vcmask 1047556
    %v369 = vsel %vm368, %v367, %v365
    %370 = vrot.lane.b32.xlu0 %v369, 32
    %v371 = vpop.permute.xlu0 %370
    %vm372 = vcmask 392448
    %s373 = scalar_lea.vmem %s1, 24
    %374 = vst.msk [vmem:[%s373] sm:$0xff] %vm372, %v371
    %s375 = scalar_lea.vmem [#allocation0], 1
    %v376 = vld [vmem:[%s375] ss:$8 sm:$0xf]
    %s377 = scalar_lea.vmem [#allocation0], 1
    %v378 = vld [vmem:[%s377] ss:$8 sm:$0xf0]
    %vm379 = vcmask 1047556
    %v380 = vsel %vm379, %v378, %v376
    %381 = vrot.lane.b32.xlu0 %v380, 16
    %v382 = vpop.permute.xlu0 %381
    %vm383 = vcmask 261248
    %384 = vst.msk [vmem:[%s1] sm:$0xff] %vm383, %v382
    %s385 = scalar_lea.vmem [#allocation0], 257
    %v386 = vld [vmem:[%s385] ss:$8 sm:$0xf]
    %s387 = scalar_lea.vmem [#allocation0], 257
    %v388 = vld [vmem:[%s387] ss:$8 sm:$0xf0]
    %vm389 = vcmask 1047556
    %v390 = vsel %vm389, %v388, %v386
    %391 = vrot.lane.b32.xlu0 %v390, 16
    %v392 = vpop.permute.xlu0 %391
    %vm393 = vcmask 261248
    %s394 = scalar_lea.vmem %s1, 32
    %395 = vst.msk [vmem:[%s394] sm:$0xff] %vm393, %v392
    %s396 = scalar_lea.vmem [#allocation0], 65
    %v397 = vld [vmem:[%s396] ss:$8 sm:$0xf]
    %s398 = scalar_lea.vmem [#allocation0], 65
    %v399 = vld [vmem:[%s398] ss:$8 sm:$0xf0]
    %vm400 = vcmask 1047556
    %v401 = vsel %vm400, %v399, %v397
    %402 = vrot.lane.b32.xlu0 %v401, 16
    %v403 = vpop.permute.xlu0 %402
    %vm404 = vcmask 261248
    %s405 = scalar_lea.vmem %s1, 8
    %406 = vst.msk [vmem:[%s405] sm:$0xff] %vm404, %v403
    %s407 = scalar_lea.vmem [#allocation0], 321
    %v408 = vld [vmem:[%s407] ss:$8 sm:$0xf]
    %s409 = scalar_lea.vmem [#allocation0], 321
    %v410 = vld [vmem:[%s409] ss:$8 sm:$0xf0]
    %vm411 = vcmask 1047556
    %v412 = vsel %vm411, %v410, %v408
    %413 = vrot.lane.b32.xlu0 %v412, 16
    %v414 = vpop.permute.xlu0 %413
    %vm415 = vcmask 261248
    %s416 = scalar_lea.vmem %s1, 40
    %417 = vst.msk [vmem:[%s416] sm:$0xff] %vm415, %v414
    %s418 = scalar_lea.vmem [#allocation0], 129
    %v419 = vld [vmem:[%s418] ss:$8 sm:$0xf]
    %s420 = scalar_lea.vmem [#allocation0], 129
    %v421 = vld [vmem:[%s420] ss:$8 sm:$0xf0]
    %vm422 = vcmask 1047556
    %v423 = vsel %vm422, %v421, %v419
    %424 = vrot.lane.b32.xlu0 %v423, 16
    %v425 = vpop.permute.xlu0 %424
    %vm426 = vcmask 261248
    %s427 = scalar_lea.vmem %s1, 16
    %428 = vst.msk [vmem:[%s427] sm:$0xff] %vm426, %v425
    %s429 = scalar_lea.vmem [#allocation0], 193
    %v430 = vld [vmem:[%s429] ss:$8 sm:$0xf]
    %s431 = scalar_lea.vmem [#allocation0], 193
    %v432 = vld [vmem:[%s431] ss:$8 sm:$0xf0]
    %vm433 = vcmask 1047556
    %v434 = vsel %vm433, %v432, %v430
    %435 = vrot.lane.b32.xlu0 %v434, 16
    %v436 = vpop.permute.xlu0 %435
    %vm437 = vcmask 261248
    %s438 = scalar_lea.vmem %s1, 24
    %439 = vst.msk [vmem:[%s438] sm:$0xff] %vm437, %v436

// kernel: forward.1
$region0: #{forward.1}
  #allocation0 [shape = 'u32[]', space=smem, size = 0x4, offset = 0x4, fixed_abs, tag = 'smem constant byte address 0x4 - core index']
  #allocation1 [shape = 'u32[72,128]{1,0:T(1,128)}', space=vmem, size = 0x9000, scoped, tag = 'internal scratch']
  %s0 = inlined_call_operand.vmem [shape: f32[16,16], index: 0, kind: input, shape index: {}]
  %s1 = inlined_call_operand.vmem [shape: s32[12,1], index: 1, kind: input, shape index: {}]
  %s2 = inlined_call_operand.vmem [shape: f32[64,64], index: 2, kind: input, shape index: {}]
  %s3 = inlined_call_operand.vmem [shape: f32[48,48], index: 3, kind: input, shape index: {}]
  %s4 = inlined_call_operand.vmem [shape: f32[48,64], index: 4, kind: input, shape index: {}]
  %s5 = inlined_call_operand.vmem [shape: f32[512,128], index: 5, kind: input, shape index: {}]
  %s6 = inlined_call_operand.vmem [shape: f32[56,128], index: 6, kind: input, shape index: {}]
  %s7 = inlined_call_operand.vmem [shape: f32[12,128], index: 7, kind: output, shape index: {}]
  %s8 = sld [smem:[#allocation0]]
  $region38: #{forward.1} parent=0
    _
  %s10 = ssub.s32 1, %s8
  %s11 = scalar_select 0, %s10, %s8
  // Predicated region
  $region2: #{forward.1} parent=0 // pred_check
    _
  $region3: #{forward.1} parent=0 // pred_check_branch
    %13 = sbr.rel (0) target = $region5
  $region4: #{forward.1} parent=0 // pred_region
    _
  $region5: #{forward.1} parent=0 // pred_fallthru
    _
  // Predicated region
  $region6: #{forward.1} parent=0 // pred_check
    _
  $region7: #{forward.1} parent=0 // pred_check_branch
    %15 = sbr.rel (0) target = $region9
  $region8: #{forward.1} parent=0 // pred_region
    _
  $region9: #{forward.1} parent=0 // pred_fallthru
    _
  // Predicated region
  $region10: #{forward.1} parent=0 // pred_check
    _
  $region11: #{forward.1} parent=0 // pred_check_branch
    %17 = sbr.rel (0) target = $region13
  $region12: #{forward.1} parent=0 // pred_region
    _
  $region13: #{forward.1} parent=0 // pred_fallthru
    _
  // Predicated region
  $region14: #{forward.1} parent=0 // pred_check
    _
  $region15: #{forward.1} parent=0 // pred_check_branch
    %19 = sbr.rel (0) target = $region17
  $region16: #{forward.1} parent=0 // pred_region
    _
  $region17: #{forward.1} parent=0 // pred_fallthru
    _
  // Predicated region
  $region18: #{forward.1} parent=0 // pred_check
    _
  $region19: #{forward.1} parent=0 // pred_check_branch
    %21 = sbr.rel (0) target = $region21
  $region20: #{forward.1} parent=0 // pred_region
    _
  $region21: #{forward.1} parent=0 // pred_fallthru
    _
  // Predicated region
  $region22: #{forward.1} parent=0 // pred_check
    _
  $region23: #{forward.1} parent=0 // pred_check_branch
    %23 = sbr.rel (0) target = $region25
  $region24: #{forward.1} parent=0 // pred_region
    _
  $region25: #{forward.1} parent=0 // pred_fallthru
    _
  // Predicated region
  $region26: #{forward.1} parent=0 // pred_check
    _
  $region27: #{forward.1} parent=0 // pred_check_branch
    %25 = sbr.rel (0) target = $region29
  $region28: #{forward.1} parent=0 // pred_region
    _
  $region29: #{forward.1} parent=0 // pred_fallthru
    _
  %v26 = vld [vmem:[%s0] sm:$0xff]
  %v27 = vld [vmem:[%s0 + $0x8] sm:$0xff]
  %v28 = vlaneseq
  %v29 = vshrl.u32 %v28, 7
  %v30 = vadd.s32 %v29, 8
  %vm31 = vcmp.lt.s32.totalorder %v29, 0
  %v32 = vsub.s32 0, %v29
  %v33 = vsel %vm31, %v32, %v29
  %v34 = vshrl.u32 %v33, 3
  %v35 = vand.u32 %v33, 7
  %v36 = vsub.s32 0, %v35
  %v37 = vsel %vm31, %v36, %v35
  %vm38 = vcmp.lt.s32.totalorder %v30, 0
  %v39 = vsub.s32 0, %v30
  %v40 = vsel %vm38, %v39, %v30
  %v41 = vshrl.u32 %v40, 3
  %v42 = vand.u32 %v40, 7
  %v43 = vsub.s32 0, %v42
  %v44 = vsel %vm38, %v43, %v42
  %vm45 = vcmp.ne.s32.totalorder %v37, 0
  %vm46 = vcmp.ne.s32.totalorder %v44, 0
  %vm47 = vcmp.lt.s32.totalorder %v37, 0
  %vm48 = vcmp.lt.s32.totalorder %v44, 0
  %vm49 = vmand %vm47, %vm45
  %vm50 = vmand %vm48, %vm46
  %v51 = vadd.s32 %v37, 8
  %v52 = vadd.s32 %v44, 8
  %v53 = vsel %vm49, %v51, %v37
  %v54 = vsel %vm50, %v52, %v44
  %vm55 = vcmp.eq.s32.totalorder %v53, 0
  %vm56 = vcmp.eq.s32.totalorder %v54, 0
  %v57 = vrot.slane %v26, 7
  %v58 = vrot.slane %v27, 7
  %vm59 = vcmp.lt.s32.totalorder %v29, 1
  %v60 = vsel %vm59, %v57, %v58
  %v61 = vsel %vm59, %v58, %v57
  %v62 = vsel %vm55, 1, 0
  %v63 = vsel %vm56, 1, 0
  %vm64 = vcmp.eq.s32.totalorder %v62, 1
  %vm65 = vcmp.eq.s32.totalorder %v63, 1
  %v66 = vsel %vm64, 0.0, %v61
  %v67 = vsel %vm65, 0.0, %v60
  %vm68 = vcmp.eq.s32.totalorder %v53, 7
  %vm69 = vcmp.eq.s32.totalorder %v54, 7
  %v70 = vrot.slane %v26, 1
  %v71 = vrot.slane %v27, 1
  %vm72 = vcmp.lt.s32.totalorder %v29, 7
  %v73 = vsel %vm72, %v70, %v71
  %v74 = vsel %vm72, %v71, %v70
  %v75 = vsel %vm68, 1, 0
  %v76 = vsel %vm69, 1, 0
  %vm77 = vcmp.eq.s32.totalorder %v75, 1
  %vm78 = vcmp.eq.s32.totalorder %v76, 1
  %v79 = vsel %vm77, 0.0, %v73
  %v80 = vsel %vm78, 0.0, %v74
  %v81 = vld [vmem:[%s5] sm:$0xff]
  %v82 = vld [vmem:[%s5 + $0x8] sm:$0xff]
  %v83 = vld [vmem:[%s5 + $0x10] sm:$0xff]
  %v84 = vld [vmem:[%s5 + $0x18] sm:$0xff]
  %v85 = vld [vmem:[%s5 + $0x20] sm:$0xff]
  %v86 = vld [vmem:[%s5 + $0x28] sm:$0xff]
  %vm87 = vcmask 130048
  %v89 = vsel %vm87, %v26, 0
  %v92 = vsel %vm87, %v27, 0
  %94 = vmatpush.msra.mxu0 0.0
  %95 = vmatpush.msra.mxu0 0.0
  %96 = vmatpush.msra.mxu0 0.0
  %97 = vmatpush.msra.mxu0 0.0
  %98 = vmatpush.msra.mxu0 0.0
  %99 = vmatpush.msra.mxu0 0.0
  %100 = vmatpush.msra.mxu0 0.0
  %101 = vmatpush.msra.mxu0 0.0
  %102 = vmatpush.msra.mxu0 0.0
  %103 = vmatpush.msra.mxu0 0.0
  %104 = vmatpush.msra.mxu0 0.0
  %105 = vmatpush.msra.mxu0 0.0
  %106 = vmatpush.msra.mxu0 0.0
  %107 = vmatpush.msra.mxu0 0.0
  %108 = vmatpush.msra.mxu0 %v84
  %109 = vmatpush.msra.mxu0 %v83
  %110 = vmatmul.f32.gmra.mxu0 %v89
  %v111 = vpop.f32.mrf.mxu0
  %v112 = vadd.f32 0.0, %v111
  %113 = vmatmul.f32.gmra.mxu0 %v92
  %v114 = vpop.f32.mrf.mxu0
  %v115 = vadd.f32 0.0, %v114
  %116 = vdwg.mxu0
  %v118 = vsel %vm87, %v66, 0
  %v121 = vsel %vm87, %v67, 0
  %123 = vmatpush.msra.mxu0 0.0
  %124 = vmatpush.msra.mxu0 0.0
  %125 = vmatpush.msra.mxu0 0.0
  %126 = vmatpush.msra.mxu0 0.0
  %127 = vmatpush.msra.mxu0 0.0
  %128 = vmatpush.msra.mxu0 0.0
  %129 = vmatpush.msra.mxu0 0.0
  %130 = vmatpush.msra.mxu0 0.0
  %131 = vmatpush.msra.mxu0 0.0
  %132 = vmatpush.msra.mxu0 0.0
  %133 = vmatpush.msra.mxu0 0.0
  %134 = vmatpush.msra.mxu0 0.0
  %135 = vmatpush.msra.mxu0 0.0
  %136 = vmatpush.msra.mxu0 0.0
  %137 = vmatpush.msra.mxu0 %v82
  %138 = vmatpush.msra.mxu0 %v81
  %139 = vmatmul.f32.gmra.mxu0 %v118
  %v140 = vpop.f32.mrf.mxu0
  %v141 = vadd.f32 %v112, %v140
  %142 = vmatmul.f32.gmra.mxu0 %v121
  %v143 = vpop.f32.mrf.mxu0
  %v144 = vadd.f32 %v115, %v143
  %145 = vdwg.mxu0
  %v147 = vsel %vm87, %v79, 0
  %v150 = vsel %vm87, %v80, 0
  %152 = vmatpush.msra.mxu0 0.0
  %153 = vmatpush.msra.mxu0 0.0
  %154 = vmatpush.msra.mxu0 0.0
  %155 = vmatpush.msra.mxu0 0.0
  %156 = vmatpush.msra.mxu0 0.0
  %157 = vmatpush.msra.mxu0 0.0
  %158 = vmatpush.msra.mxu0 0.0
  %159 = vmatpush.msra.mxu0 0.0
  %160 = vmatpush.msra.mxu0 0.0
  %161 = vmatpush.msra.mxu0 0.0
  %162 = vmatpush.msra.mxu0 0.0
  %163 = vmatpush.msra.mxu0 0.0
  %164 = vmatpush.msra.mxu0 0.0
  %165 = vmatpush.msra.mxu0 0.0
  %166 = vmatpush.msra.mxu0 %v86
  %167 = vmatpush.msra.mxu0 %v85
  %168 = vmatmul.f32.gmra.mxu0 %v147
  %v169 = vpop.f32.mrf.mxu0
  %v170 = vadd.f32 0.0, %v169
  %171 = vmatmul.f32.gmra.mxu0 %v150
  %v172 = vpop.f32.mrf.mxu0
  %v173 = vadd.f32 0.0, %v172
  %174 = vdwg.mxu0
  %v175 = vadd.f32 %v141, %v170
  %v176 = vadd.f32 %v144, %v173
  %v177 = vld [vmem:[%s6] sm:$0x1]
  %v178 = vperm.slane %v177, 0
  %v179 = vadd.f32 %v175, %v178
  %v180 = vadd.f32 %v176, %v178
  %v181 = vmax.f32 %v179, 0.0
  %v182 = vmax.f32 %v180, 0.0
  %v183 = vld [vmem:[%s5 + $0x30] sm:$0xff]
  %v184 = vld [vmem:[%s5 + $0x38] sm:$0xff]
  %v185 = vld [vmem:[%s5 + $0x40] sm:$0xff]
  %v186 = vld [vmem:[%s5 + $0x48] sm:$0xff]
  %v187 = vld [vmem:[%s6 + $0x1] sm:$0x1]
  %v188 = vperm.slane %v187, 0
  %vm189 = vcmask 261120
  %v191 = vsel %vm189, %v181, 0
  %v194 = vsel %vm189, %v182, 0
  %196 = vmatpush.msra.mxu0 0.0
  %197 = vmatpush.msra.mxu0 0.0
  %198 = vmatpush.msra.mxu0 0.0
  %199 = vmatpush.msra.mxu0 0.0
  %200 = vmatpush.msra.mxu0 0.0
  %201 = vmatpush.msra.mxu0 0.0
  %202 = vmatpush.msra.mxu0 0.0
  %203 = vmatpush.msra.mxu0 0.0
  %204 = vmatpush.msra.mxu0 0.0
  %205 = vmatpush.msra.mxu0 0.0
  %206 = vmatpush.msra.mxu0 0.0
  %207 = vmatpush.msra.mxu0 0.0
  %208 = vmatpush.msra.mxu0 %v186
  %209 = vmatpush.msra.mxu0 %v185
  %210 = vmatpush.msra.mxu0 %v184
  %211 = vmatpush.msra.mxu0 %v183
  %212 = vmatmul.f32.gmra.mxu0 %v191
  %v213 = vpop.f32.mrf.mxu0
  %v214 = vadd.f32 %v188, %v213
  %215 = vmatmul.f32.gmra.mxu0 %v194
  %v216 = vpop.f32.mrf.mxu0
  %v217 = vadd.f32 %v188, %v216
  %218 = vdwg.mxu0
  %v219 = vmax.f32 %v214, 0.0
  %v220 = vmax.f32 %v217, 0.0
  %v221 = vld [vmem:[%s6 + $0x1b] sm:$0xff]
  %v222 = vld [vmem:[%s6 + $0x23] sm:$0xff]
  %v223 = vadd.f32 %v219, %v221
  %v224 = vadd.f32 %v220, %v222
  %v225 = vsel %vm189, %v223, 0.0
  %226 = vadd.xlane.f32.xlu0 %v225
  %v227 = vpop.xlane.xlu0 %226
  %v228 = vsel %vm189, %v224, 0.0
  %229 = vadd.xlane.f32.xlu0 %v228
  %v230 = vpop.xlane.xlu0 %229
  %v231 = vrcp.pop 32.0
  %v232 = vmul.f32 32.0, %v231
  %v233 = vsub.f32 1.0, %v232
  %v234 = vmul.f32 %v231, %v233
  %v235 = vadd.f32 %v231, %v234
  %vm236 = vweird.f32 %v231
  %v237 = vsel %vm236, %v231, %v235
  %v238 = vmul.f32 %v227, %v237
  %v239 = vmul.f32 %v230, %v237
  %v240 = vsub.f32 %v223, %v238
  %v241 = vsub.f32 %v224, %v239
  %v242 = vmul.f32 %v240, %v240
  %v243 = vmul.f32 %v241, %v241
  %v244 = vsel %vm189, %v242, 0.0
  %245 = vadd.xlane.f32.xlu0 %v244
  %v246 = vpop.xlane.xlu0 %245
  %v247 = vsel %vm189, %v243, 0.0
  %248 = vadd.xlane.f32.xlu0 %v247
  %v249 = vpop.xlane.xlu0 %248
  %v250 = vmul.f32 %v246, %v237
  %v251 = vmul.f32 %v249, %v237
  %v252 = vadd.f32 %v250, 1e-06
  %v253 = vadd.f32 %v251, 1e-06
  %v254 = vrsqrt.pop %v252
  %v255 = vmul.f32 %v254, %v252
  %v256 = vmul.f32 %v255, %v254
  %v257 = vmul.f32 0.5, %v256
  %v258 = vsub.f32 1.5, %v257
  %v259 = vmul.f32 %v254, %v258
  %vm260 = vweird.f32 %v252
  %vm261 = vweird.f32 %v254
  %vm262 = vmor %vm260, %vm261
  %v263 = vsel %vm262, %v254, %v259
  %v264 = vrsqrt.pop %v253
  %v265 = vmul.f32 %v264, %v253
  %v266 = vmul.f32 %v265, %v264
  %v267 = vmul.f32 0.5, %v266
  %v268 = vsub.f32 1.5, %v267
  %v269 = vmul.f32 %v264, %v268
  %vm270 = vweird.f32 %v253
  %vm271 = vweird.f32 %v264
  %vm272 = vmor %vm270, %vm271
  %v273 = vsel %vm272, %v264, %v269
  %v274 = vmul.f32 %v240, %v263
  %v275 = vmul.f32 %v241, %v273
  %v276 = vld [vmem:[%s6 + $0x4] sm:$0x1]
  %v277 = vperm.slane %v276, 0
  %v278 = vmul.f32 %v274, %v277
  %v279 = vmul.f32 %v275, %v277
  %v280 = vld [vmem:[%s6 + $0x5] sm:$0x1]
  %v281 = vperm.slane %v280, 0
  %v282 = vadd.f32 %v278, %v281
  %v283 = vadd.f32 %v279, %v281
  %v284 = vld [vmem:[%s5 + $0x50] sm:$0xff]
  %v285 = vld [vmem:[%s5 + $0x58] sm:$0xff]
  %v286 = vld [vmem:[%s5 + $0x60] sm:$0xff]
  %v287 = vld [vmem:[%s5 + $0x68] sm:$0xff]
  %v288 = vld [vmem:[%s6 + $0x2] sm:$0x1]
  %v289 = vperm.slane %v288, 0
  %v291 = vsel %vm189, %v282, 0
  %v294 = vsel %vm189, %v283, 0
  %296 = vmatpush.msra.mxu0 0.0
  %297 = vmatpush.msra.mxu0 0.0
  %298 = vmatpush.msra.mxu0 0.0
  %299 = vmatpush.msra.mxu0 0.0
  %300 = vmatpush.msra.mxu0 0.0
  %301 = vmatpush.msra.mxu0 0.0
  %302 = vmatpush.msra.mxu0 0.0
  %303 = vmatpush.msra.mxu0 0.0
  %304 = vmatpush.msra.mxu0 0.0
  %305 = vmatpush.msra.mxu0 0.0
  %306 = vmatpush.msra.mxu0 0.0
  %307 = vmatpush.msra.mxu0 0.0
  %308 = vmatpush.msra.mxu0 %v287
  %309 = vmatpush.msra.mxu0 %v286
  %310 = vmatpush.msra.mxu0 %v285
  %311 = vmatpush.msra.mxu0 %v284
  %312 = vmatmul.f32.gmra.mxu0 %v291
  %v313 = vpop.f32.mrf.mxu0
  %v314 = vadd.f32 %v289, %v313
  %315 = vmatmul.f32.gmra.mxu0 %v294
  %v316 = vpop.f32.mrf.mxu0
  %v317 = vadd.f32 %v289, %v316
  %318 = vdwg.mxu0
  %v319 = vld [vmem:[%s2] sm:$0xff]
  %v320 = vld [vmem:[%s2 + $0x8] sm:$0xff]
  %v321 = vld [vmem:[%s2 + $0x10] sm:$0xff]
  %v322 = vld [vmem:[%s2 + $0x18] sm:$0xff]
  %v323 = vld [vmem:[%s2 + $0x20] sm:$0xff]
  %v324 = vld [vmem:[%s2 + $0x28] sm:$0xff]
  %v325 = vld [vmem:[%s2 + $0x30] sm:$0xff]
  %v326 = vld [vmem:[%s2 + $0x38] sm:$0xff]
  %329 = vrot.lane.b32.xlu0 %v314, 120
  %v330 = vpop.permute.xlu0 %329
  %331 = vrot.lane.b32.xlu0 %v317, 120
  %v332 = vpop.permute.xlu0 %331
  %333 = vrot.lane.b32.xlu0 %v314, 112
  %v334 = vpop.permute.xlu0 %333
  %335 = vrot.lane.b32.xlu0 %v317, 112
  %v336 = vpop.permute.xlu0 %335
  %337 = vrot.lane.b32.xlu0 %v314, 104
  %v338 = vpop.permute.xlu0 %337
  %339 = vrot.lane.b32.xlu0 %v317, 104
  %v340 = vpop.permute.xlu0 %339
  %341 = vrot.lane.b32.xlu0 %v314, 96
  %v342 = vpop.permute.xlu0 %341
  %343 = vrot.lane.b32.xlu0 %v317, 96
  %v344 = vpop.permute.xlu0 %343
  %345 = vrot.lane.b32.xlu0 %v330, 96
  %v346 = vpop.permute.xlu0 %345
  %347 = vrot.lane.b32.xlu0 %v332, 96
  %v348 = vpop.permute.xlu0 %347
  %349 = vrot.lane.b32.xlu0 %v334, 96
  %v350 = vpop.permute.xlu0 %349
  %351 = vrot.lane.b32.xlu0 %v336, 96
  %v352 = vpop.permute.xlu0 %351
  %353 = vrot.lane.b32.xlu0 %v338, 96
  %v354 = vpop.permute.xlu0 %353
  %355 = vrot.lane.b32.xlu0 %v340, 96
  %v356 = vpop.permute.xlu0 %355
  %vm357 = vcmask 64512
  %v358 = vsel %vm357, %v314, 0
  %v360 = vsel %vm357, %v317, 0
  %v362 = vsel %vm357, %v330, 0
  %v364 = vsel %vm357, %v332, 0
  %v366 = vsel %vm357, %v334, 0
  %v368 = vsel %vm357, %v336, 0
  %v370 = vsel %vm357, %v338, 0
  %v372 = vsel %vm357, %v340, 0
  %v374 = vsel %vm357, %v342, 0
  %v376 = vsel %vm357, %v344, 0
  %v378 = vsel %vm357, %v346, 0
  %v380 = vsel %vm357, %v348, 0
  %v382 = vsel %vm357, %v350, 0
  %v384 = vsel %vm357, %v352, 0
  %v386 = vsel %vm357, %v354, 0
  %v388 = vsel %vm357, %v356, 0
  %390 = vmatpush.xpose.msra.mxu0 0.0
  %391 = vmatpush.xpose.msra.mxu0 0.0
  %392 = vmatpush.xpose.msra.mxu0 0.0
  %393 = vmatpush.xpose.msra.mxu0 0.0
  %394 = vmatpush.xpose.msra.mxu0 0.0
  %395 = vmatpush.xpose.msra.mxu0 0.0
  %396 = vmatpush.xpose.msra.mxu0 0.0
  %397 = vmatpush.xpose.msra.mxu0 0.0
  %398 = vmatpush.xpose.msra.mxu0 %v388
  %399 = vmatpush.xpose.msra.mxu0 %v386
  %400 = vmatpush.xpose.msra.mxu0 %v384
  %401 = vmatpush.xpose.msra.mxu0 %v382
  %402 = vmatpush.xpose.msra.mxu0 %v380
  %403 = vmatpush.xpose.msra.mxu0 %v378
  %404 = vmatpush.xpose.msra.mxu0 %v376
  %405 = vmatpush.xpose.msra.mxu0 %v374
  %406 = vmatmul.f32.gmra.mxu0 %v358
  %v407 = vpop.f32.mrf.mxu0
  %v408 = vadd.f32 %v319, %v407
  %409 = vmatmul.f32.gmra.mxu0 %v360
  %v410 = vpop.f32.mrf.mxu0
  %v411 = vadd.f32 %v320, %v410
  %412 = vmatmul.f32.gmra.mxu0 %v362
  %v413 = vpop.f32.mrf.mxu0
  %v414 = vadd.f32 %v321, %v413
  %415 = vmatmul.f32.gmra.mxu0 %v364
  %v416 = vpop.f32.mrf.mxu0
  %v417 = vadd.f32 %v322, %v416
  %418 = vmatmul.f32.gmra.mxu0 %v366
  %v419 = vpop.f32.mrf.mxu0
  %v420 = vadd.f32 %v323, %v419
  %421 = vmatmul.f32.gmra.mxu0 %v368
  %v422 = vpop.f32.mrf.mxu0
  %v423 = vadd.f32 %v324, %v422
  %424 = vmatmul.f32.gmra.mxu0 %v370
  %v425 = vpop.f32.mrf.mxu0
  %v426 = vadd.f32 %v325, %v425
  %427 = vmatmul.f32.gmra.mxu0 %v372
  %v428 = vpop.f32.mrf.mxu0
  %v429 = vadd.f32 %v326, %v428
  %430 = vdwg.mxu0
  %vm431 = vcmask 523264
  %v432 = vsel %vm431, %v408, -inf
  %433 = vmax.xlane.f32.xlu0 %v432
  %v434 = vpop.xlane.xlu0 %433
  %v435 = vsel %vm431, %v411, -inf
  %436 = vmax.xlane.f32.xlu0 %v435
  %v437 = vpop.xlane.xlu0 %436
  %v438 = vsel %vm431, %v414, -inf
  %439 = vmax.xlane.f32.xlu0 %v438
  %v440 = vpop.xlane.xlu0 %439
  %v441 = vsel %vm431, %v417, -inf
  %442 = vmax.xlane.f32.xlu0 %v441
  %v443 = vpop.xlane.xlu0 %442
  %v444 = vsel %vm431, %v420, -inf
  %445 = vmax.xlane.f32.xlu0 %v444
  %v446 = vpop.xlane.xlu0 %445
  %v447 = vsel %vm431, %v423, -inf
  %448 = vmax.xlane.f32.xlu0 %v447
  %v449 = vpop.xlane.xlu0 %448
  %v450 = vsel %vm431, %v426, -inf
  %451 = vmax.xlane.f32.xlu0 %v450
  %v452 = vpop.xlane.xlu0 %451
  %v453 = vsel %vm431, %v429, -inf
  %454 = vmax.xlane.f32.xlu0 %v453
  %v455 = vpop.xlane.xlu0 %454
  %v456 = vsub.f32 %v408, %v434
  %v457 = vsub.f32 %v411, %v437
  %v458 = vsub.f32 %v414, %v440
  %v459 = vsub.f32 %v417, %v443
  %v460 = vsub.f32 %v420, %v446
  %v461 = vsub.f32 %v423, %v449
  %v462 = vsub.f32 %v426, %v452
  %v463 = vsub.f32 %v429, %v455
  %v464 = vmul.f32 %v456, 1.442695
  %v465 = vpow.pop %v464
  %v466 = vmul.f32 %v457, 1.442695
  %v467 = vpow.pop %v466
  %v468 = vmul.f32 %v458, 1.442695
  %v469 = vpow.pop %v468
  %v470 = vmul.f32 %v459, 1.442695
  %v471 = vpow.pop %v470
  %v472 = vmul.f32 %v460, 1.442695
  %v473 = vpow.pop %v472
  %v474 = vmul.f32 %v461, 1.442695
  %v475 = vpow.pop %v474
  %v476 = vmul.f32 %v462, 1.442695
  %v477 = vpow.pop %v476
  %v478 = vmul.f32 %v463, 1.442695
  %v479 = vpow.pop %v478
  %v480 = vsel %vm431, %v465, 0.0
  %481 = vadd.xlane.f32.xlu0 %v480
  %v482 = vpop.xlane.xlu0 %481
  %v483 = vsel %vm431, %v467, 0.0
  %484 = vadd.xlane.f32.xlu0 %v483
  %v485 = vpop.xlane.xlu0 %484
  %v486 = vsel %vm431, %v469, 0.0
  %487 = vadd.xlane.f32.xlu0 %v486
  %v488 = vpop.xlane.xlu0 %487
  %v489 = vsel %vm431, %v471, 0.0
  %490 = vadd.xlane.f32.xlu0 %v489
  %v491 = vpop.xlane.xlu0 %490
  %v492 = vsel %vm431, %v473, 0.0
  %493 = vadd.xlane.f32.xlu0 %v492
  %v494 = vpop.xlane.xlu0 %493
  %v495 = vsel %vm431, %v475, 0.0
  %496 = vadd.xlane.f32.xlu0 %v495
  %v497 = vpop.xlane.xlu0 %496
  %v498 = vsel %vm431, %v477, 0.0
  %499 = vadd.xlane.f32.xlu0 %v498
  %v500 = vpop.xlane.xlu0 %499
  %v501 = vsel %vm431, %v479, 0.0
  %502 = vadd.xlane.f32.xlu0 %v501
  %v503 = vpop.xlane.xlu0 %502
  %v504 = vrcp.pop %v482
  %v505 = vmul.f32 %v482, %v504
  %v506 = vsub.f32 1.0, %v505
  %v507 = vmul.f32 %v504, %v506
  %v508 = vadd.f32 %v504, %v507
  %vm509 = vweird.f32 %v482
  %vm510 = vweird.f32 %v504
  %vm511 = vmor %vm509, %vm510
  %v512 = vsel %vm511, %v504, %v508
  %v513 = vand.u32 2147483647, %v482
  %vm514 = vcmp.eq.f32.partialorder %v513, 8.507059e+37
  %v515 = vand.u32 %v482, 2147483648
  %v516 = vor.u32 1.1754944e-38, %v515
  %v517 = vsel %vm514, %v516, %v512
  %v518 = vmul.f32 %v465, %v517
  %v519 = vrcp.pop %v485
  %v520 = vmul.f32 %v485, %v519
  %v521 = vsub.f32 1.0, %v520
  %v522 = vmul.f32 %v519, %v521
  %v523 = vadd.f32 %v519, %v522
  %vm524 = vweird.f32 %v485
  %vm525 = vweird.f32 %v519
  %vm526 = vmor %vm524, %vm525
  %v527 = vsel %vm526, %v519, %v523
  %v528 = vand.u32 2147483647, %v485
  %vm529 = vcmp.eq.f32.partialorder %v528, 8.507059e+37
  %v530 = vand.u32 %v485, 2147483648
  %v531 = vor.u32 1.1754944e-38, %v530
  %v532 = vsel %vm529, %v531, %v527
  %v533 = vmul.f32 %v467, %v532
  %v534 = vrcp.pop %v488
  %v535 = vmul.f32 %v488, %v534
  %v536 = vsub.f32 1.0, %v535
  %v537 = vmul.f32 %v534, %v536
  %v538 = vadd.f32 %v534, %v537
  %vm539 = vweird.f32 %v488
  %vm540 = vweird.f32 %v534
  %vm541 = vmor %vm539, %vm540
  %v542 = vsel %vm541, %v534, %v538
  %v543 = vand.u32 2147483647, %v488
  %vm544 = vcmp.eq.f32.partialorder %v543, 8.507059e+37
  %v545 = vand.u32 %v488, 2147483648
  %v546 = vor.u32 1.1754944e-38, %v545
  %v547 = vsel %vm544, %v546, %v542
  %v548 = vmul.f32 %v469, %v547
  %v549 = vrcp.pop %v491
  %v550 = vmul.f32 %v491, %v549
  %v551 = vsub.f32 1.0, %v550
  %v552 = vmul.f32 %v549, %v551
  %v553 = vadd.f32 %v549, %v552
  %vm554 = vweird.f32 %v491
  %vm555 = vweird.f32 %v549
  %vm556 = vmor %vm554, %vm555
  %v557 = vsel %vm556, %v549, %v553
  %v558 = vand.u32 2147483647, %v491
  %vm559 = vcmp.eq.f32.partialorder %v558, 8.507059e+37
  %v560 = vand.u32 %v491, 2147483648
  %v561 = vor.u32 1.1754944e-38, %v560
  %v562 = vsel %vm559, %v561, %v557
  %v563 = vmul.f32 %v471, %v562
  %v564 = vrcp.pop %v494
  %v565 = vmul.f32 %v494, %v564
  %v566 = vsub.f32 1.0, %v565
  %v567 = vmul.f32 %v564, %v566
  %v568 = vadd.f32 %v564, %v567
  %vm569 = vweird.f32 %v494
  %vm570 = vweird.f32 %v564
  %vm571 = vmor %vm569, %vm570
  %v572 = vsel %vm571, %v564, %v568
  %v573 = vand.u32 2147483647, %v494
  %vm574 = vcmp.eq.f32.partialorder %v573, 8.507059e+37
  %v575 = vand.u32 %v494, 2147483648
  %v576 = vor.u32 1.1754944e-38, %v575
  %v577 = vsel %vm574, %v576, %v572
  %v578 = vmul.f32 %v473, %v577
  %v579 = vrcp.pop %v497
  %v580 = vmul.f32 %v497, %v579
  %v581 = vsub.f32 1.0, %v580
  %v582 = vmul.f32 %v579, %v581
  %v583 = vadd.f32 %v579, %v582
  %vm584 = vweird.f32 %v497
  %vm585 = vweird.f32 %v579
  %vm586 = vmor %vm584, %vm585
  %v587 = vsel %vm586, %v579, %v583
  %v588 = vand.u32 2147483647, %v497
  %vm589 = vcmp.eq.f32.partialorder %v588, 8.507059e+37
  %v590 = vand.u32 %v497, 2147483648
  %v591 = vor.u32 1.1754944e-38, %v590
  %v592 = vsel %vm589, %v591, %v587
  %v593 = vmul.f32 %v475, %v592
  %v594 = vrcp.pop %v500
  %v595 = vmul.f32 %v500, %v594
  %v596 = vsub.f32 1.0, %v595
  %v597 = vmul.f32 %v594, %v596
  %v598 = vadd.f32 %v594, %v597
  %vm599 = vweird.f32 %v500
  %vm600 = vweird.f32 %v594
  %vm601 = vmor %vm599, %vm600
  %v602 = vsel %vm601, %v594, %v598
  %v603 = vand.u32 2147483647, %v500
  %vm604 = vcmp.eq.f32.partialorder %v603, 8.507059e+37
  %v605 = vand.u32 %v500, 2147483648
  %v606 = vor.u32 1.1754944e-38, %v605
  %v607 = vsel %vm604, %v606, %v602
  %v608 = vmul.f32 %v477, %v607
  %v609 = vrcp.pop %v503
  %v610 = vmul.f32 %v503, %v609
  %v611 = vsub.f32 1.0, %v610
  %v612 = vmul.f32 %v609, %v611
  %v613 = vadd.f32 %v609, %v612
  %vm614 = vweird.f32 %v503
  %vm615 = vweird.f32 %v609
  %vm616 = vmor %vm614, %vm615
  %v617 = vsel %vm616, %v609, %v613
  %v618 = vand.u32 2147483647, %v503
  %vm619 = vcmp.eq.f32.partialorder %v618, 8.507059e+37
  %v620 = vand.u32 %v503, 2147483648
  %v621 = vor.u32 1.1754944e-38, %v620
  %v622 = vsel %vm619, %v621, %v617
  %v623 = vmul.f32 %v479, %v622
  %624 = vrot.lane.b32.xlu0 %v314, 64
  %v625 = vpop.permute.xlu0 %624
  %626 = vrot.lane.b32.xlu0 %v317, 64
  %v627 = vpop.permute.xlu0 %626
  %628 = vrot.lane.b32.xlu0 %v330, 64
  %v629 = vpop.permute.xlu0 %628
  %630 = vrot.lane.b32.xlu0 %v332, 64
  %v631 = vpop.permute.xlu0 %630
  %632 = vrot.lane.b32.xlu0 %v334, 64
  %v633 = vpop.permute.xlu0 %632
  %634 = vrot.lane.b32.xlu0 %v336, 64
  %v635 = vpop.permute.xlu0 %634
  %636 = vrot.lane.b32.xlu0 %v338, 64
  %v637 = vpop.permute.xlu0 %636
  %638 = vrot.lane.b32.xlu0 %v340, 64
  %v639 = vpop.permute.xlu0 %638
  %v649 = vsel %vm431, %v518, 0
  %v652 = vsel %vm431, %v533, 0
  %v655 = vsel %vm431, %v548, 0
  %v658 = vsel %vm431, %v563, 0
  %v661 = vsel %vm431, %v578, 0
  %v664 = vsel %vm431, %v593, 0
  %v667 = vsel %vm431, %v608, 0
  %v670 = vsel %vm431, %v623, 0
  %672 = vmatpush.msra.mxu0 0.0
  %673 = vmatpush.msra.mxu0 0.0
  %674 = vmatpush.msra.mxu0 0.0
  %675 = vmatpush.msra.mxu0 0.0
  %676 = vmatpush.msra.mxu0 0.0
  %677 = vmatpush.msra.mxu0 0.0
  %678 = vmatpush.msra.mxu0 0.0
  %679 = vmatpush.msra.mxu0 0.0
  %680 = vmatpush.msra.mxu0 %v639
  %681 = vmatpush.msra.mxu0 %v637
  %682 = vmatpush.msra.mxu0 %v635
  %683 = vmatpush.msra.mxu0 %v633
  %684 = vmatpush.msra.mxu0 %v631
  %685 = vmatpush.msra.mxu0 %v629
  %686 = vmatpush.msra.mxu0 %v627
  %687 = vmatpush.msra.mxu0 %v625
  %688 = vmatmul.f32.gmra.mxu0 %v649
  %v689 = vpop.f32.mrf.mxu0
  %v690 = vadd.f32 0.0, %v689
  %691 = vmatmul.f32.gmra.mxu0 %v652
  %v692 = vpop.f32.mrf.mxu0
  %v693 = vadd.f32 0.0, %v692
  %694 = vmatmul.f32.gmra.mxu0 %v655
  %v695 = vpop.f32.mrf.mxu0
  %v696 = vadd.f32 0.0, %v695
  %697 = vmatmul.f32.gmra.mxu0 %v658
  %v698 = vpop.f32.mrf.mxu0
  %v699 = vadd.f32 0.0, %v698
  %700 = vmatmul.f32.gmra.mxu0 %v661
  %v701 = vpop.f32.mrf.mxu0
  %v702 = vadd.f32 0.0, %v701
  %703 = vmatmul.f32.gmra.mxu0 %v664
  %v704 = vpop.f32.mrf.mxu0
  %v705 = vadd.f32 0.0, %v704
  %706 = vmatmul.f32.gmra.mxu0 %v667
  %v707 = vpop.f32.mrf.mxu0
  %v708 = vadd.f32 0.0, %v707
  %709 = vmatmul.f32.gmra.mxu0 %v670
  %v710 = vpop.f32.mrf.mxu0
  %v711 = vadd.f32 0.0, %v710
  %712 = vdwg.mxu0
  %715 = vrot.lane.b32.xlu0 %v696, 8
  %v716 = vpop.permute.xlu0 %715
  %717 = vrot.lane.b32.xlu0 %v699, 8
  %v718 = vpop.permute.xlu0 %717
  %723 = vrot.lane.b32.xlu0 %v702, 16
  %v724 = vpop.permute.xlu0 %723
  %725 = vrot.lane.b32.xlu0 %v705, 16
  %v726 = vpop.permute.xlu0 %725
  %731 = vrot.lane.b32.xlu0 %v708, 24
  %v732 = vpop.permute.xlu0 %731
  %733 = vrot.lane.b32.xlu0 %v711, 24
  %v734 = vpop.permute.xlu0 %733
  %v737 = vsel %vm357, %v690, %v716
  %v738 = vsel %vm357, %v693, %v718
  %v739 = vsel %vm87, %v737, %v724
  %v740 = vsel %vm87, %v738, %v726
  %vm741 = vcmask 195584
  %v742 = vsel %vm741, %v739, %v732
  %v743 = vsel %vm741, %v740, %v734
  %v744 = vld [vmem:[%s5 + $0x70] sm:$0xff]
  %v745 = vld [vmem:[%s5 + $0x78] sm:$0xff]
  %v746 = vld [vmem:[%s5 + $0x80] sm:$0xff]
  %v747 = vld [vmem:[%s5 + $0x88] sm:$0xff]
  %v748 = vld [vmem:[%s6 + $0x3] sm:$0x1]
  %v749 = vperm.slane %v748, 0
  %v751 = vsel %vm189, %v742, 0
  %v754 = vsel %vm189, %v743, 0
  %756 = vmatpush.msra.mxu0 0.0
  %757 = vmatpush.msra.mxu0 0.0
  %758 = vmatpush.msra.mxu0 0.0
  %759 = vmatpush.msra.mxu0 0.0
  %760 = vmatpush.msra.mxu0 0.0
  %761 = vmatpush.msra.mxu0 0.0
  %762 = vmatpush.msra.mxu0 0.0
  %763 = vmatpush.msra.mxu0 0.0
  %764 = vmatpush.msra.mxu0 0.0
  %765 = vmatpush.msra.mxu0 0.0
  %766 = vmatpush.msra.mxu0 0.0
  %767 = vmatpush.msra.mxu0 0.0
  %768 = vmatpush.msra.mxu0 %v747
  %769 = vmatpush.msra.mxu0 %v746
  %770 = vmatpush.msra.mxu0 %v745
  %771 = vmatpush.msra.mxu0 %v744
  %772 = vmatmul.f32.gmra.mxu0 %v751
  %v773 = vpop.f32.mrf.mxu0
  %v774 = vadd.f32 %v749, %v773
  %775 = vmatmul.f32.gmra.mxu0 %v754
  %v776 = vpop.f32.mrf.mxu0
  %v777 = vadd.f32 %v749, %v776
  %778 = vdwg.mxu0
  %v779 = vadd.f32 %v223, %v774
  %v780 = vadd.f32 %v224, %v777
  %v781 = vsel %vm189, %v779, 0.0
  %782 = vadd.xlane.f32.xlu0 %v781
  %v783 = vpop.xlane.xlu0 %782
  %v784 = vsel %vm189, %v780, 0.0
  %785 = vadd.xlane.f32.xlu0 %v784
  %v786 = vpop.xlane.xlu0 %785
  %v787 = vmul.f32 %v783, %v237
  %v788 = vmul.f32 %v786, %v237
  %v789 = vsub.f32 %v779, %v787
  %v790 = vsub.f32 %v780, %v788
  %v791 = vmul.f32 %v789, %v789
  %v792 = vmul.f32 %v790, %v790
  %v793 = vsel %vm189, %v791, 0.0
  %794 = vadd.xlane.f32.xlu0 %v793
  %v795 = vpop.xlane.xlu0 %794
  %v796 = vsel %vm189, %v792, 0.0
  %797 = vadd.xlane.f32.xlu0 %v796
  %v798 = vpop.xlane.xlu0 %797
  %v799 = vmul.f32 %v795, %v237
  %v800 = vmul.f32 %v798, %v237
  %v801 = vadd.f32 %v799, 1e-06
  %v802 = vadd.f32 %v800, 1e-06
  %v803 = vrsqrt.pop %v801
  %v804 = vmul.f32 %v803, %v801
  %v805 = vmul.f32 %v804, %v803
  %v806 = vmul.f32 0.5, %v805
  %v807 = vsub.f32 1.5, %v806
  %v808 = vmul.f32 %v803, %v807
  %vm809 = vweird.f32 %v801
  %vm810 = vweird.f32 %v803
  %vm811 = vmor %vm809, %vm810
  %v812 = vsel %vm811, %v803, %v808
  %v813 = vrsqrt.pop %v802
  %v814 = vmul.f32 %v813, %v802
  %v815 = vmul.f32 %v814, %v813
  %v816 = vmul.f32 0.5, %v815
  %v817 = vsub.f32 1.5, %v816
  %v818 = vmul.f32 %v813, %v817
  %vm819 = vweird.f32 %v802
  %vm820 = vweird.f32 %v813
  %vm821 = vmor %vm819, %vm820
  %v822 = vsel %vm821, %v813, %v818
  %v823 = vmul.f32 %v789, %v812
  %v824 = vmul.f32 %v790, %v822
  %v825 = vld [vmem:[%s6 + $0x6] sm:$0x1]
  %v826 = vperm.slane %v825, 0
  %v827 = vmul.f32 %v823, %v826
  %v828 = vmul.f32 %v824, %v826
  %v829 = vld [vmem:[%s6 + $0x7] sm:$0x1]
  %v830 = vperm.slane %v829, 0
  %v831 = vadd.f32 %v827, %v830
  %v832 = vadd.f32 %v828, %v830
  %v833 = vld [vmem:[%s5 + $0x90] sm:$0xff]
  %v834 = vld [vmem:[%s5 + $0x98] sm:$0xff]
  %v835 = vld [vmem:[%s5 + $0xa0] sm:$0xff]
  %v836 = vld [vmem:[%s5 + $0xa8] sm:$0xff]
  %v837 = vld [vmem:[%s6 + $0xa] sm:$0x1]
  %v838 = vperm.slane %v837, 0
  %v840 = vsel %vm189, %v831, 0
  %v843 = vsel %vm189, %v832, 0
  %845 = vmatpush.msra.mxu0 0.0
  %846 = vmatpush.msra.mxu0 0.0
  %847 = vmatpush.msra.mxu0 0.0
  %848 = vmatpush.msra.mxu0 0.0
  %849 = vmatpush.msra.mxu0 0.0
  %850 = vmatpush.msra.mxu0 0.0
  %851 = vmatpush.msra.mxu0 0.0
  %852 = vmatpush.msra.mxu0 0.0
  %853 = vmatpush.msra.mxu0 0.0
  %854 = vmatpush.msra.mxu0 0.0
  %855 = vmatpush.msra.mxu0 0.0
  %856 = vmatpush.msra.mxu0 0.0
  %857 = vmatpush.msra.mxu0 %v836
  %858 = vmatpush.msra.mxu0 %v835
  %859 = vmatpush.msra.mxu0 %v834
  %860 = vmatpush.msra.mxu0 %v833
  %861 = vmatmul.f32.gmra.mxu0 %v840
  %v862 = vpop.f32.mrf.mxu0
  %v863 = vadd.f32 %v838, %v862
  %864 = vmatmul.f32.gmra.mxu0 %v843
  %v865 = vpop.f32.mrf.mxu0
  %v866 = vadd.f32 %v838, %v865
  %867 = vdwg.mxu0
  %v868 = vmax.f32 %v863, 0.0
  %v869 = vmax.f32 %v866, 0.0
  %v870 = vld [vmem:[%s5 + $0xb0] sm:$0xff]
  %v871 = vld [vmem:[%s5 + $0xb8] sm:$0xff]
  %v872 = vld [vmem:[%s5 + $0xc0] sm:$0xff]
  %v873 = vld [vmem:[%s5 + $0xc8] sm:$0xff]
  %v874 = vld [vmem:[%s5 + $0xd0] sm:$0xff]
  %v875 = vld [vmem:[%s5 + $0xd8] sm:$0xff]
  %v876 = vld [vmem:[%s5 + $0xe0] sm:$0xff]
  %v877 = vld [vmem:[%s5 + $0xe8] sm:$0xff]
  %v878 = vld [vmem:[%s6 + $0xb] sm:$0x1]
  %v879 = vperm.slane %v878, 0
  %v881 = vsel %vm431, %v868, 0
  %v884 = vsel %vm431, %v869, 0
  %886 = vmatpush.msra.mxu0 0.0
  %887 = vmatpush.msra.mxu0 0.0
  %888 = vmatpush.msra.mxu0 0.0
  %889 = vmatpush.msra.mxu0 0.0
  %890 = vmatpush.msra.mxu0 0.0
  %891 = vmatpush.msra.mxu0 0.0
  %892 = vmatpush.msra.mxu0 0.0
  %893 = vmatpush.msra.mxu0 0.0
  %894 = vmatpush.msra.mxu0 %v877
  %895 = vmatpush.msra.mxu0 %v876
  %896 = vmatpush.msra.mxu0 %v875
  %897 = vmatpush.msra.mxu0 %v874
  %898 = vmatpush.msra.mxu0 %v873
  %899 = vmatpush.msra.mxu0 %v872
  %900 = vmatpush.msra.mxu0 %v871
  %901 = vmatpush.msra.mxu0 %v870
  %902 = vmatmul.f32.gmra.mxu0 %v881
  %v903 = vpop.f32.mrf.mxu0
  %v904 = vadd.f32 %v879, %v903
  %905 = vmatmul.f32.gmra.mxu0 %v884
  %v906 = vpop.f32.mrf.mxu0
  %v907 = vadd.f32 %v879, %v906
  %908 = vdwg.mxu0
  %v909 = vadd.f32 %v779, %v904
  %v910 = vadd.f32 %v780, %v907
  %v911 = vsel %vm189, %v909, 0.0
  %912 = vadd.xlane.f32.xlu0 %v911
  %v913 = vpop.xlane.xlu0 %912
  %v914 = vsel %vm189, %v910, 0.0
  %915 = vadd.xlane.f32.xlu0 %v914
  %v916 = vpop.xlane.xlu0 %915
  %v917 = vmul.f32 %v913, %v237
  %v918 = vmul.f32 %v916, %v237
  %v919 = vsub.f32 %v909, %v917
  %v920 = vsub.f32 %v910, %v918
  %v921 = vmul.f32 %v919, %v919
  %v922 = vmul.f32 %v920, %v920
  %v923 = vsel %vm189, %v921, 0.0
  %924 = vadd.xlane.f32.xlu0 %v923
  %v925 = vpop.xlane.xlu0 %924
  %v926 = vsel %vm189, %v922, 0.0
  %927 = vadd.xlane.f32.xlu0 %v926
  %v928 = vpop.xlane.xlu0 %927
  %v929 = vmul.f32 %v925, %v237
  %v930 = vmul.f32 %v928, %v237
  %v931 = vadd.f32 %v929, 1e-06
  %v932 = vadd.f32 %v930, 1e-06
  %v933 = vrsqrt.pop %v931
  %v934 = vmul.f32 %v933, %v931
  %v935 = vmul.f32 %v934, %v933
  %v936 = vmul.f32 0.5, %v935
  %v937 = vsub.f32 1.5, %v936
  %v938 = vmul.f32 %v933, %v937
  %vm939 = vweird.f32 %v931
  %vm940 = vweird.f32 %v933
  %vm941 = vmor %vm939, %vm940
  %v942 = vsel %vm941, %v933, %v938
  %v943 = vrsqrt.pop %v932
  %v944 = vmul.f32 %v943, %v932
  %v945 = vmul.f32 %v944, %v943
  %v946 = vmul.f32 0.5, %v945
  %v947 = vsub.f32 1.5, %v946
  %v948 = vmul.f32 %v943, %v947
  %vm949 = vweird.f32 %v932
  %vm950 = vweird.f32 %v943
  %vm951 = vmor %vm949, %vm950
  %v952 = vsel %vm951, %v943, %v948
  %v953 = vmul.f32 %v919, %v942
  %v954 = vmul.f32 %v920, %v952
  %v955 = vld [vmem:[%s6 + $0x8] sm:$0x1]
  %v956 = vperm.slane %v955, 0
  %v957 = vmul.f32 %v953, %v956
  %v958 = vmul.f32 %v954, %v956
  %v959 = vld [vmem:[%s6 + $0x9] sm:$0x1]
  %v960 = vperm.slane %v959, 0
  %v961 = vadd.f32 %v957, %v960
  %v962 = vadd.f32 %v958, %v960
  %v963 = vld [vmem:[%s1] sm:$0xff]
  %v964 = vld [vmem:[%s1 + $0x8] sm:$0xf]
  %v965 = vlaneseq
  %v966 = vand.u32 %v965, 127
  %967 = vset.pattern.permute.xlu0 0
  %968 = vperm.xlu0 %967, %v963
  %v969 = vpop.permute.xlu0 %968
  %970 = vset.pattern.permute.xlu0 0
  %971 = vperm.xlu0 %970, %v964
  %v972 = vpop.permute.xlu0 %971
  %vm973 = vcmp.eq.s32.totalorder %v969, %v966
  %vm974 = vcmp.eq.s32.totalorder %v972, %v966
  %v975 = vsel %vm973, 1, 0
  %v976 = vsel %vm974, 1, 0
  %v977 = vcvt.s32.f32 %v975
  %v978 = vcvt.s32.f32 %v976
  %v979 = vld [vmem:[%s5 + $0xf0] sm:$0xff]
  %v980 = vld [vmem:[%s5 + $0xf8] sm:$0xff]
  %v981 = vld [vmem:[%s6 + $0x2b] sm:$0xff]
  %v982 = vld [vmem:[%s6 + $0x33] sm:$0xf]
  %v984 = vsel %vm87, %v977, 0
  %v987 = vsel %vm87, %v978, 0
  %989 = vmatpush.msra.mxu0 0.0
  %990 = vmatpush.msra.mxu0 0.0
  %991 = vmatpush.msra.mxu0 0.0
  %992 = vmatpush.msra.mxu0 0.0
  %993 = vmatpush.msra.mxu0 0.0
  %994 = vmatpush.msra.mxu0 0.0
  %995 = vmatpush.msra.mxu0 0.0
  %996 = vmatpush.msra.mxu0 0.0
  %997 = vmatpush.msra.mxu0 0.0
  %998 = vmatpush.msra.mxu0 0.0
  %999 = vmatpush.msra.mxu0 0.0
  %1000 = vmatpush.msra.mxu0 0.0
  %1001 = vmatpush.msra.mxu0 0.0
  %1002 = vmatpush.msra.mxu0 0.0
  %1003 = vmatpush.msra.mxu0 %v980
  %1004 = vmatpush.msra.mxu0 %v979
  %1005 = vmatmul.f32.gmra.mxu0 %v984
  %v1006 = vpop.f32.mrf.mxu0
  %v1007 = vadd.f32 %v981, %v1006
  %1008 = vmatmul.f32.gmra.mxu0 %v987
  %v1009 = vpop.f32.mrf.mxu0
  %v1010 = vadd.f32 %v982, %v1009
  %1011 = vdwg.mxu0
  %v1012 = vsel %vm189, %v1007, 0.0
  %1013 = vadd.xlane.f32.xlu0 %v1012
  %v1014 = vpop.xlane.xlu0 %1013
  %vm1015 = vcmask 257024
  %v1016 = vsel %vm1015, %v1010, 0.0
  %1017 = vadd.xlane.f32.xlu0 %v1016
  %v1018 = vpop.xlane.xlu0 %1017
  %v1019 = vmul.f32 %v1014, %v237
  %v1020 = vmul.f32 %v1018, %v237
  %v1021 = vsub.f32 %v1007, %v1019
  %v1022 = vsub.f32 %v1010, %v1020
  %v1023 = vmul.f32 %v1021, %v1021
  %v1024 = vmul.f32 %v1022, %v1022
  %v1025 = vsel %vm189, %v1023, 0.0
  %1026 = vadd.xlane.f32.xlu0 %v1025
  %v1027 = vpop.xlane.xlu0 %1026
  %v1028 = vsel %vm1015, %v1024, 0.0
  %1029 = vadd.xlane.f32.xlu0 %v1028
  %v1030 = vpop.xlane.xlu0 %1029
  %v1031 = vmul.f32 %v1027, %v237
  %v1032 = vmul.f32 %v1030, %v237
  %v1033 = vadd.f32 %v1031, 1e-06
  %v1034 = vadd.f32 %v1032, 1e-06
  %v1035 = vrsqrt.pop %v1033
  %v1036 = vmul.f32 %v1035, %v1033
  %v1037 = vmul.f32 %v1036, %v1035
  %v1038 = vmul.f32 0.5, %v1037
  %v1039 = vsub.f32 1.5, %v1038
  %v1040 = vmul.f32 %v1035, %v1039
  %vm1041 = vweird.f32 %v1033
  %vm1042 = vweird.f32 %v1035
  %vm1043 = vmor %vm1041, %vm1042
  %v1044 = vsel %vm1043, %v1035, %v1040
  %v1045 = vrsqrt.pop %v1034
  %v1046 = vmul.f32 %v1045, %v1034
  %v1047 = vmul.f32 %v1046, %v1045
  %v1048 = vmul.f32 0.5, %v1047
  %v1049 = vsub.f32 1.5, %v1048
  %v1050 = vmul.f32 %v1045, %v1049
  %vm1051 = vweird.f32 %v1034
  %vm1052 = vweird.f32 %v1045
  %vm1053 = vmor %vm1051, %vm1052
  %v1054 = vsel %vm1053, %v1045, %v1050
  %v1055 = vmul.f32 %v1021, %v1044
  %v1056 = vmul.f32 %v1022, %v1054
  %v1057 = vld [vmem:[%s6 + $0x10] sm:$0x1]
  %v1058 = vperm.slane %v1057, 0
  %v1059 = vmul.f32 %v1055, %v1058
  %v1060 = vmul.f32 %v1056, %v1058
  %v1061 = vld [vmem:[%s6 + $0x11] sm:$0x1]
  %v1062 = vperm.slane %v1061, 0
  %v1063 = vadd.f32 %v1059, %v1062
  %v1064 = vadd.f32 %v1060, %v1062
  %v1065 = vld [vmem:[%s5 + $0x100] sm:$0xff]
  %v1066 = vld [vmem:[%s5 + $0x108] sm:$0xff]
  %v1067 = vld [vmem:[%s5 + $0x110] sm:$0xff]
  %v1068 = vld [vmem:[%s5 + $0x118] sm:$0xff]
  %v1069 = vld [vmem:[%s6 + $0xc] sm:$0x1]
  %v1070 = vperm.slane %v1069, 0
  %v1072 = vsel %vm189, %v1063, 0
  %v1075 = vsel %vm189, %v1064, 0
  %1077 = vmatpush.msra.mxu0 0.0
  %1078 = vmatpush.msra.mxu0 0.0
  %1079 = vmatpush.msra.mxu0 0.0
  %1080 = vmatpush.msra.mxu0 0.0
  %1081 = vmatpush.msra.mxu0 0.0
  %1082 = vmatpush.msra.mxu0 0.0
  %1083 = vmatpush.msra.mxu0 0.0
  %1084 = vmatpush.msra.mxu0 0.0
  %1085 = vmatpush.msra.mxu0 0.0
  %1086 = vmatpush.msra.mxu0 0.0
  %1087 = vmatpush.msra.mxu0 0.0
  %1088 = vmatpush.msra.mxu0 0.0
  %1089 = vmatpush.msra.mxu0 %v1068
  %1090 = vmatpush.msra.mxu0 %v1067
  %1091 = vmatpush.msra.mxu0 %v1066
  %1092 = vmatpush.msra.mxu0 %v1065
  %1093 = vmatmul.f32.gmra.mxu0 %v1072
  %v1094 = vpop.f32.mrf.mxu0
  %v1095 = vadd.f32 %v1070, %v1094
  %1096 = vmatmul.f32.gmra.mxu0 %v1075
  %v1097 = vpop.f32.mrf.mxu0
  %v1098 = vadd.f32 %v1070, %v1097
  %1099 = vdwg.mxu0
  %v1100 = vld [vmem:[%s3] sm:$0xff]
  %v1101 = vld [vmem:[%s3 + $0x8] sm:$0xff]
  %v1102 = vld [vmem:[%s3 + $0x10] sm:$0xff]
  %v1103 = vld [vmem:[%s3 + $0x18] sm:$0xff]
  %v1104 = vld [vmem:[%s3 + $0x20] sm:$0xff]
  %v1105 = vld [vmem:[%s3 + $0x28] sm:$0xff]
  %vm1108 = vcmask 1043456
  %v1109 = vrot.slane %v1095, 4
  %v1110 = vrot.slane %v1098, 4
  %v1111 = vsel %vm1108, %v1109, %v1110
  %1112 = vrot.lane.b32.xlu0 %v1109, 120
  %v1113 = vpop.permute.xlu0 %1112
  %1114 = vrot.lane.b32.xlu0 %v1111, 120
  %v1115 = vpop.permute.xlu0 %1114
  %1117 = vrot.lane.b32.xlu0 %v1095, 112
  %v1118 = vpop.permute.xlu0 %1117
  %1119 = vrot.lane.b32.xlu0 %v1098, 112
  %v1120 = vpop.permute.xlu0 %1119
  %1122 = vrot.lane.b32.xlu0 %v1109, 104
  %v1123 = vpop.permute.xlu0 %1122
  %1124 = vrot.lane.b32.xlu0 %v1111, 104
  %v1125 = vpop.permute.xlu0 %1124
  %v1127 = vsel %vm1108, %v1098, %v1113
  %v1128 = vsel %vm1108, %v1120, %v1123
  %1131 = vrot.lane.b32.xlu0 %v1095, 96
  %v1132 = vpop.permute.xlu0 %1131
  %1133 = vrot.lane.b32.xlu0 %v1127, 96
  %v1134 = vpop.permute.xlu0 %1133
  %1135 = vrot.lane.b32.xlu0 %v1115, 96
  %v1136 = vpop.permute.xlu0 %1135
  %1137 = vrot.lane.b32.xlu0 %v1118, 96
  %v1138 = vpop.permute.xlu0 %1137
  %1139 = vrot.lane.b32.xlu0 %v1128, 96
  %v1140 = vpop.permute.xlu0 %1139
  %1141 = vrot.lane.b32.xlu0 %v1125, 96
  %v1142 = vpop.permute.xlu0 %1141
  %v1143 = vsel %vm357, %v1095, 0
  %v1145 = vsel %vm357, %v1127, 0
  %v1147 = vsel %vm357, %v1115, 0
  %v1149 = vsel %vm357, %v1118, 0
  %v1151 = vsel %vm357, %v1128, 0
  %v1153 = vsel %vm357, %v1125, 0
  %v1155 = vsel %vm357, %v1132, 0
  %v1157 = vsel %vm357, %v1134, 0
  %v1159 = vsel %vm357, %v1136, 0
  %v1161 = vsel %vm357, %v1138, 0
  %v1163 = vsel %vm357, %v1140, 0
  %v1165 = vsel %vm357, %v1142, 0
  %1167 = vmatpush.xpose.msra.mxu0 0.0
  %1168 = vmatpush.xpose.msra.mxu0 0.0
  %1169 = vmatpush.xpose.msra.mxu0 0.0
  %1170 = vmatpush.xpose.msra.mxu0 0.0
  %1171 = vmatpush.xpose.msra.mxu0 0.0
  %1172 = vmatpush.xpose.msra.mxu0 0.0
  %1173 = vmatpush.xpose.msra.mxu0 0.0
  %1174 = vmatpush.xpose.msra.mxu0 0.0
  %1175 = vmatpush.xpose.msra.mxu0 0.0
  %1176 = vmatpush.xpose.msra.mxu0 0.0
  %1177 = vmatpush.xpose.msra.mxu0 %v1165
  %1178 = vmatpush.xpose.msra.mxu0 %v1163
  %1179 = vmatpush.xpose.msra.mxu0 %v1161
  %1180 = vmatpush.xpose.msra.mxu0 %v1159
  %1181 = vmatpush.xpose.msra.mxu0 %v1157
  %1182 = vmatpush.xpose.msra.mxu0 %v1155
  %1183 = vmatmul.f32.gmra.mxu0 %v1143
  %v1184 = vpop.f32.mrf.mxu0
  %v1185 = vadd.f32 %v1100, %v1184
  %1186 = vmatmul.f32.gmra.mxu0 %v1145
  %v1187 = vpop.f32.mrf.mxu0
  %v1188 = vadd.f32 %v1101, %v1187
  %1189 = vmatmul.f32.gmra.mxu0 %v1147
  %v1190 = vpop.f32.mrf.mxu0
  %v1191 = vadd.f32 %v1102, %v1190
  %1192 = vmatmul.f32.gmra.mxu0 %v1149
  %v1193 = vpop.f32.mrf.mxu0
  %v1194 = vadd.f32 %v1103, %v1193
  %1195 = vmatmul.f32.gmra.mxu0 %v1151
  %v1196 = vpop.f32.mrf.mxu0
  %v1197 = vadd.f32 %v1104, %v1196
  %1198 = vmatmul.f32.gmra.mxu0 %v1153
  %v1199 = vpop.f32.mrf.mxu0
  %v1200 = vadd.f32 %v1105, %v1199
  %1201 = vdwg.mxu0
  %vm1202 = vcmask 392192
  %v1203 = vsel %vm1202, %v1185, -inf
  %1204 = vmax.xlane.f32.xlu0 %v1203
  %v1205 = vpop.xlane.xlu0 %1204
  %v1206 = vsel %vm1202, %v1188, -inf
  %1207 = vmax.xlane.f32.xlu0 %v1206
  %v1208 = vpop.xlane.xlu0 %1207
  %v1209 = vsel %vm1202, %v1191, -inf
  %1210 = vmax.xlane.f32.xlu0 %v1209
  %v1211 = vpop.xlane.xlu0 %1210
  %v1212 = vsel %vm1202, %v1194, -inf
  %1213 = vmax.xlane.f32.xlu0 %v1212
  %v1214 = vpop.xlane.xlu0 %1213
  %v1215 = vsel %vm1202, %v1197, -inf
  %1216 = vmax.xlane.f32.xlu0 %v1215
  %v1217 = vpop.xlane.xlu0 %1216
  %v1218 = vsel %vm1202, %v1200, -inf
  %1219 = vmax.xlane.f32.xlu0 %v1218
  %v1220 = vpop.xlane.xlu0 %1219
  %v1221 = vsub.f32 %v1185, %v1205
  %v1222 = vsub.f32 %v1188, %v1208
  %v1223 = vsub.f32 %v1191, %v1211
  %v1224 = vsub.f32 %v1194, %v1214
  %v1225 = vsub.f32 %v1197, %v1217
  %v1226 = vsub.f32 %v1200, %v1220
  %v1227 = vmul.f32 %v1221, 1.442695
  %v1228 = vpow.pop %v1227
  %v1229 = vmul.f32 %v1222, 1.442695
  %v1230 = vpow.pop %v1229
  %v1231 = vmul.f32 %v1223, 1.442695
  %v1232 = vpow.pop %v1231
  %v1233 = vmul.f32 %v1224, 1.442695
  %v1234 = vpow.pop %v1233
  %v1235 = vmul.f32 %v1225, 1.442695
  %v1236 = vpow.pop %v1235
  %v1237 = vmul.f32 %v1226, 1.442695
  %v1238 = vpow.pop %v1237
  %v1239 = vsel %vm1202, %v1228, 0.0
  %1240 = vadd.xlane.f32.xlu0 %v1239
  %v1241 = vpop.xlane.xlu0 %1240
  %v1242 = vsel %vm1202, %v1230, 0.0
  %1243 = vadd.xlane.f32.xlu0 %v1242
  %v1244 = vpop.xlane.xlu0 %1243
  %v1245 = vsel %vm1202, %v1232, 0.0
  %1246 = vadd.xlane.f32.xlu0 %v1245
  %v1247 = vpop.xlane.xlu0 %1246
  %v1248 = vsel %vm1202, %v1234, 0.0
  %1249 = vadd.xlane.f32.xlu0 %v1248
  %v1250 = vpop.xlane.xlu0 %1249
  %v1251 = vsel %vm1202, %v1236, 0.0
  %1252 = vadd.xlane.f32.xlu0 %v1251
  %v1253 = vpop.xlane.xlu0 %1252
  %v1254 = vsel %vm1202, %v1238, 0.0
  %1255 = vadd.xlane.f32.xlu0 %v1254
  %v1256 = vpop.xlane.xlu0 %1255
  %v1257 = vrcp.pop %v1241
  %v1258 = vmul.f32 %v1241, %v1257
  %v1259 = vsub.f32 1.0, %v1258
  %v1260 = vmul.f32 %v1257, %v1259
  %v1261 = vadd.f32 %v1257, %v1260
  %vm1262 = vweird.f32 %v1241
  %vm1263 = vweird.f32 %v1257
  %vm1264 = vmor %vm1262, %vm1263
  %v1265 = vsel %vm1264, %v1257, %v1261
  %v1266 = vand.u32 2147483647, %v1241
  %vm1267 = vcmp.eq.f32.partialorder %v1266, 8.507059e+37
  %v1268 = vand.u32 %v1241, 2147483648
  %v1269 = vor.u32 1.1754944e-38, %v1268
  %v1270 = vsel %vm1267, %v1269, %v1265
  %v1271 = vmul.f32 %v1228, %v1270
  %v1272 = vrcp.pop %v1244
  %v1273 = vmul.f32 %v1244, %v1272
  %v1274 = vsub.f32 1.0, %v1273
  %v1275 = vmul.f32 %v1272, %v1274
  %v1276 = vadd.f32 %v1272, %v1275
  %vm1277 = vweird.f32 %v1244
  %vm1278 = vweird.f32 %v1272
  %vm1279 = vmor %vm1277, %vm1278
  %v1280 = vsel %vm1279, %v1272, %v1276
  %v1281 = vand.u32 2147483647, %v1244
  %vm1282 = vcmp.eq.f32.partialorder %v1281, 8.507059e+37
  %v1283 = vand.u32 %v1244, 2147483648
  %v1284 = vor.u32 1.1754944e-38, %v1283
  %v1285 = vsel %vm1282, %v1284, %v1280
  %v1286 = vmul.f32 %v1230, %v1285
  %v1287 = vrcp.pop %v1247
  %v1288 = vmul.f32 %v1247, %v1287
  %v1289 = vsub.f32 1.0, %v1288
  %v1290 = vmul.f32 %v1287, %v1289
  %v1291 = vadd.f32 %v1287, %v1290
  %vm1292 = vweird.f32 %v1247
  %vm1293 = vweird.f32 %v1287
  %vm1294 = vmor %vm1292, %vm1293
  %v1295 = vsel %vm1294, %v1287, %v1291
  %v1296 = vand.u32 2147483647, %v1247
  %vm1297 = vcmp.eq.f32.partialorder %v1296, 8.507059e+37
  %v1298 = vand.u32 %v1247, 2147483648
  %v1299 = vor.u32 1.1754944e-38, %v1298
  %v1300 = vsel %vm1297, %v1299, %v1295
  %v1301 = vmul.f32 %v1232, %v1300
  %v1302 = vrcp.pop %v1250
  %v1303 = vmul.f32 %v1250, %v1302
  %v1304 = vsub.f32 1.0, %v1303
  %v1305 = vmul.f32 %v1302, %v1304
  %v1306 = vadd.f32 %v1302, %v1305
  %vm1307 = vweird.f32 %v1250
  %vm1308 = vweird.f32 %v1302
  %vm1309 = vmor %vm1307, %vm1308
  %v1310 = vsel %vm1309, %v1302, %v1306
  %v1311 = vand.u32 2147483647, %v1250
  %vm1312 = vcmp.eq.f32.partialorder %v1311, 8.507059e+37
  %v1313 = vand.u32 %v1250, 2147483648
  %v1314 = vor.u32 1.1754944e-38, %v1313
  %v1315 = vsel %vm1312, %v1314, %v1310
  %v1316 = vmul.f32 %v1234, %v1315
  %v1317 = vrcp.pop %v1253
  %v1318 = vmul.f32 %v1253, %v1317
  %v1319 = vsub.f32 1.0, %v1318
  %v1320 = vmul.f32 %v1317, %v1319
  %v1321 = vadd.f32 %v1317, %v1320
  %vm1322 = vweird.f32 %v1253
  %vm1323 = vweird.f32 %v1317
  %vm1324 = vmor %vm1322, %vm1323
  %v1325 = vsel %vm1324, %v1317, %v1321
  %v1326 = vand.u32 2147483647, %v1253
  %vm1327 = vcmp.eq.f32.partialorder %v1326, 8.507059e+37
  %v1328 = vand.u32 %v1253, 2147483648
  %v1329 = vor.u32 1.1754944e-38, %v1328
  %v1330 = vsel %vm1327, %v1329, %v1325
  %v1331 = vmul.f32 %v1236, %v1330
  %v1332 = vrcp.pop %v1256
  %v1333 = vmul.f32 %v1256, %v1332
  %v1334 = vsub.f32 1.0, %v1333
  %v1335 = vmul.f32 %v1332, %v1334
  %v1336 = vadd.f32 %v1332, %v1335
  %vm1337 = vweird.f32 %v1256
  %vm1338 = vweird.f32 %v1332
  %vm1339 = vmor %vm1337, %vm1338
  %v1340 = vsel %vm1339, %v1332, %v1336
  %v1341 = vand.u32 2147483647, %v1256
  %vm1342 = vcmp.eq.f32.partialorder %v1341, 8.507059e+37
  %v1343 = vand.u32 %v1256, 2147483648
  %v1344 = vor.u32 1.1754944e-38, %v1343
  %v1345 = vsel %vm1342, %v1344, %v1340
  %v1346 = vmul.f32 %v1238, %v1345
  %1347 = vrot.lane.b32.xlu0 %v1095, 64
  %v1348 = vpop.permute.xlu0 %1347
  %1349 = vrot.lane.b32.xlu0 %v1127, 64
  %v1350 = vpop.permute.xlu0 %1349
  %1351 = vrot.lane.b32.xlu0 %v1115, 64
  %v1352 = vpop.permute.xlu0 %1351
  %1353 = vrot.lane.b32.xlu0 %v1118, 64
  %v1354 = vpop.permute.xlu0 %1353
  %1355 = vrot.lane.b32.xlu0 %v1128, 64
  %v1356 = vpop.permute.xlu0 %1355
  %1357 = vrot.lane.b32.xlu0 %v1125, 64
  %v1358 = vpop.permute.xlu0 %1357
  %v1366 = vsel %vm1202, %v1271, 0
  %v1369 = vsel %vm1202, %v1286, 0
  %v1372 = vsel %vm1202, %v1301, 0
  %v1375 = vsel %vm1202, %v1316, 0
  %v1378 = vsel %vm1202, %v1331, 0
  %v1381 = vsel %vm1202, %v1346, 0
  %1383 = vmatpush.msra.mxu0 0.0
  %1384 = vmatpush.msra.mxu0 0.0
  %1385 = vmatpush.msra.mxu0 0.0
  %1386 = vmatpush.msra.mxu0 0.0
  %1387 = vmatpush.msra.mxu0 0.0
  %1388 = vmatpush.msra.mxu0 0.0
  %1389 = vmatpush.msra.mxu0 0.0
  %1390 = vmatpush.msra.mxu0 0.0
  %1391 = vmatpush.msra.mxu0 0.0
  %1392 = vmatpush.msra.mxu0 0.0
  %1393 = vmatpush.msra.mxu0 %v1358
  %1394 = vmatpush.msra.mxu0 %v1356
  %1395 = vmatpush.msra.mxu0 %v1354
  %1396 = vmatpush.msra.mxu0 %v1352
  %1397 = vmatpush.msra.mxu0 %v1350
  %1398 = vmatpush.msra.mxu0 %v1348
  %1399 = vmatmul.f32.gmra.mxu0 %v1366
  %v1400 = vpop.f32.mrf.mxu0
  %v1401 = vadd.f32 0.0, %v1400
  %1402 = vmatmul.f32.gmra.mxu0 %v1369
  %v1403 = vpop.f32.mrf.mxu0
  %v1404 = vadd.f32 0.0, %v1403
  %1405 = vmatmul.f32.gmra.mxu0 %v1372
  %v1406 = vpop.f32.mrf.mxu0
  %v1407 = vadd.f32 0.0, %v1406
  %1408 = vmatmul.f32.gmra.mxu0 %v1375
  %v1409 = vpop.f32.mrf.mxu0
  %v1410 = vadd.f32 0.0, %v1409
  %1411 = vmatmul.f32.gmra.mxu0 %v1378
  %v1412 = vpop.f32.mrf.mxu0
  %v1413 = vadd.f32 0.0, %v1412
  %1414 = vmatmul.f32.gmra.mxu0 %v1381
  %v1415 = vpop.f32.mrf.mxu0
  %v1416 = vadd.f32 0.0, %v1415
  %1417 = vdwg.mxu0
  %v1420 = vrot.slane %v1404, 4
  %v1421 = vrot.slane %v1407, 4
  %v1422 = vsel %vm1108, %v1420, %v1421
  %1423 = vrot.lane.b32.xlu0 %v1422, 8
  %v1424 = vpop.permute.xlu0 %1423
  %1425 = vrot.lane.b32.xlu0 %v1421, 8
  %v1426 = vpop.permute.xlu0 %1425
  %1431 = vrot.lane.b32.xlu0 %v1410, 16
  %v1432 = vpop.permute.xlu0 %1431
  %1433 = vrot.lane.b32.xlu0 %v1413, 16
  %v1434 = vpop.permute.xlu0 %1433
  %v1438 = vrot.slane %v1413, 4
  %v1439 = vrot.slane %v1416, 4
  %v1440 = vsel %vm1108, %v1438, %v1439
  %1441 = vrot.lane.b32.xlu0 %v1440, 24
  %v1442 = vpop.permute.xlu0 %1441
  %1443 = vrot.lane.b32.xlu0 %v1439, 24
  %v1444 = vpop.permute.xlu0 %1443
  %v1447 = vsel %vm357, %v1401, %v1424
  %v1448 = vsel %vm357, %v1404, %v1426
  %v1449 = vsel %vm87, %v1447, %v1432
  %v1450 = vsel %vm87, %v1448, %v1434
  %v1451 = vsel %vm741, %v1449, %v1442
  %v1452 = vsel %vm741, %v1450, %v1444
  %v1453 = vld [vmem:[%s5 + $0x120] sm:$0xff]
  %v1454 = vld [vmem:[%s5 + $0x128] sm:$0xff]
  %v1455 = vld [vmem:[%s5 + $0x130] sm:$0xff]
  %v1456 = vld [vmem:[%s5 + $0x138] sm:$0xff]
  %v1457 = vld [vmem:[%s6 + $0xd] sm:$0x1]
  %v1458 = vperm.slane %v1457, 0
  %v1460 = vsel %vm189, %v1451, 0
  %v1463 = vsel %vm189, %v1452, 0
  %1465 = vmatpush.msra.mxu0 0.0
  %1466 = vmatpush.msra.mxu0 0.0
  %1467 = vmatpush.msra.mxu0 0.0
  %1468 = vmatpush.msra.mxu0 0.0
  %1469 = vmatpush.msra.mxu0 0.0
  %1470 = vmatpush.msra.mxu0 0.0
  %1471 = vmatpush.msra.mxu0 0.0
  %1472 = vmatpush.msra.mxu0 0.0
  %1473 = vmatpush.msra.mxu0 0.0
  %1474 = vmatpush.msra.mxu0 0.0
  %1475 = vmatpush.msra.mxu0 0.0
  %1476 = vmatpush.msra.mxu0 0.0
  %1477 = vmatpush.msra.mxu0 %v1456
  %1478 = vmatpush.msra.mxu0 %v1455
  %1479 = vmatpush.msra.mxu0 %v1454
  %1480 = vmatpush.msra.mxu0 %v1453
  %1481 = vmatmul.f32.gmra.mxu0 %v1460
  %v1482 = vpop.f32.mrf.mxu0
  %v1483 = vadd.f32 %v1458, %v1482
  %1484 = vmatmul.f32.gmra.mxu0 %v1463
  %v1485 = vpop.f32.mrf.mxu0
  %v1486 = vadd.f32 %v1458, %v1485
  %1487 = vdwg.mxu0
  %v1488 = vadd.f32 %v1007, %v1483
  %v1489 = vadd.f32 %v1010, %v1486
  %v1490 = vld [vmem:[%s5 + $0x140] sm:$0xff]
  %v1491 = vld [vmem:[%s5 + $0x148] sm:$0xff]
  %v1492 = vld [vmem:[%s5 + $0x150] sm:$0xff]
  %v1493 = vld [vmem:[%s5 + $0x158] sm:$0xff]
  %v1494 = vld [vmem:[%s6 + $0xe] sm:$0x1]
  %v1495 = vsel %vm189, %v1488, 0.0
  %1496 = vadd.xlane.f32.xlu0 %v1495
  %v1497 = vpop.xlane.xlu0 %1496
  %v1498 = vsel %vm1015, %v1489, 0.0
  %1499 = vadd.xlane.f32.xlu0 %v1498
  %v1500 = vpop.xlane.xlu0 %1499
  %v1501 = vmul.f32 %v1497, %v237
  %v1502 = vmul.f32 %v1500, %v237
  %v1503 = vsub.f32 %v1488, %v1501
  %v1504 = vsub.f32 %v1489, %v1502
  %v1505 = vmul.f32 %v1503, %v1503
  %v1506 = vmul.f32 %v1504, %v1504
  %v1507 = vsel %vm189, %v1505, 0.0
  %1508 = vadd.xlane.f32.xlu0 %v1507
  %v1509 = vpop.xlane.xlu0 %1508
  %v1510 = vsel %vm1015, %v1506, 0.0
  %1511 = vadd.xlane.f32.xlu0 %v1510
  %v1512 = vpop.xlane.xlu0 %1511
  %v1513 = vmul.f32 %v1509, %v237
  %v1514 = vmul.f32 %v1512, %v237
  %v1515 = vadd.f32 %v1513, 1e-06
  %v1516 = vadd.f32 %v1514, 1e-06
  %v1517 = vrsqrt.pop %v1515
  %v1518 = vmul.f32 %v1517, %v1515
  %v1519 = vmul.f32 %v1518, %v1517
  %v1520 = vmul.f32 0.5, %v1519
  %v1521 = vsub.f32 1.5, %v1520
  %v1522 = vmul.f32 %v1517, %v1521
  %vm1523 = vweird.f32 %v1515
  %vm1524 = vweird.f32 %v1517
  %vm1525 = vmor %vm1523, %vm1524
  %v1526 = vsel %vm1525, %v1517, %v1522
  %v1527 = vrsqrt.pop %v1516
  %v1528 = vmul.f32 %v1527, %v1516
  %v1529 = vmul.f32 %v1528, %v1527
  %v1530 = vmul.f32 0.5, %v1529
  %v1531 = vsub.f32 1.5, %v1530
  %v1532 = vmul.f32 %v1527, %v1531
  %vm1533 = vweird.f32 %v1516
  %vm1534 = vweird.f32 %v1527
  %vm1535 = vmor %vm1533, %vm1534
  %v1536 = vsel %vm1535, %v1527, %v1532
  %v1537 = vmul.f32 %v1503, %v1526
  %v1538 = vmul.f32 %v1504, %v1536
  %v1539 = vld [vmem:[%s6 + $0x12] sm:$0x1]
  %v1540 = vperm.slane %v1539, 0
  %v1541 = vmul.f32 %v1537, %v1540
  %v1542 = vmul.f32 %v1538, %v1540
  %v1543 = vld [vmem:[%s6 + $0x13] sm:$0x1]
  %v1544 = vperm.slane %v1543, 0
  %v1545 = vadd.f32 %v1541, %v1544
  %v1546 = vadd.f32 %v1542, %v1544
  %v1547 = vperm.slane %v1494, 0
  %v1549 = vsel %vm189, %v1545, 0
  %v1552 = vsel %vm189, %v1546, 0
  %1554 = vmatpush.msra.mxu0 0.0
  %1555 = vmatpush.msra.mxu0 0.0
  %1556 = vmatpush.msra.mxu0 0.0
  %1557 = vmatpush.msra.mxu0 0.0
  %1558 = vmatpush.msra.mxu0 0.0
  %1559 = vmatpush.msra.mxu0 0.0
  %1560 = vmatpush.msra.mxu0 0.0
  %1561 = vmatpush.msra.mxu0 0.0
  %1562 = vmatpush.msra.mxu0 0.0
  %1563 = vmatpush.msra.mxu0 0.0
  %1564 = vmatpush.msra.mxu0 0.0
  %1565 = vmatpush.msra.mxu0 0.0
  %1566 = vmatpush.msra.mxu0 %v1493
  %1567 = vmatpush.msra.mxu0 %v1492
  %1568 = vmatpush.msra.mxu0 %v1491
  %1569 = vmatpush.msra.mxu0 %v1490
  %1570 = vmatmul.f32.gmra.mxu0 %v1549
  %v1571 = vpop.f32.mrf.mxu0
  %v1572 = vadd.f32 %v1547, %v1571
  %1573 = vmatmul.f32.gmra.mxu0 %v1552
  %v1574 = vpop.f32.mrf.mxu0
  %v1575 = vadd.f32 %v1547, %v1574
  %1576 = vdwg.mxu0
  %1581 = vrot.lane.b32.xlu0 %v1490, 96
  %v1582 = vpop.permute.xlu0 %1581
  %1583 = vrot.lane.b32.xlu0 %v1491, 96
  %v1584 = vpop.permute.xlu0 %1583
  %1585 = vrot.lane.b32.xlu0 %v1492, 96
  %v1586 = vpop.permute.xlu0 %1585
  %1587 = vrot.lane.b32.xlu0 %v1493, 96
  %v1588 = vpop.permute.xlu0 %1587
  %1594 = vrot.lane.b32.xlu0 %v1547, 96
  %v1595 = vpop.permute.xlu0 %1594
  %v1598 = vsel %vm189, %v961, 0
  %v1601 = vsel %vm189, %v962, 0
  %1603 = vmatpush.msra.mxu0 0.0
  %1604 = vmatpush.msra.mxu0 0.0
  %1605 = vmatpush.msra.mxu0 0.0
  %1606 = vmatpush.msra.mxu0 0.0
  %1607 = vmatpush.msra.mxu0 0.0
  %1608 = vmatpush.msra.mxu0 0.0
  %1609 = vmatpush.msra.mxu0 0.0
  %1610 = vmatpush.msra.mxu0 0.0
  %1611 = vmatpush.msra.mxu0 0.0
  %1612 = vmatpush.msra.mxu0 0.0
  %1613 = vmatpush.msra.mxu0 0.0
  %1614 = vmatpush.msra.mxu0 0.0
  %1615 = vmatpush.msra.mxu0 %v1588
  %1616 = vmatpush.msra.mxu0 %v1586
  %1617 = vmatpush.msra.mxu0 %v1584
  %1618 = vmatpush.msra.mxu0 %v1582
  %1619 = vmatmul.f32.gmra.mxu0 %v1598
  %v1620 = vpop.f32.mrf.mxu0
  %v1621 = vadd.f32 %v1595, %v1620
  %1622 = vmatmul.f32.gmra.mxu0 %v1601
  %v1623 = vpop.f32.mrf.mxu0
  %v1624 = vadd.f32 %v1595, %v1623
  %1625 = vdwg.mxu0
  %v1626 = vld [vmem:[%s4] sm:$0xff]
  %v1627 = vld [vmem:[%s4 + $0x8] sm:$0xff]
  %v1628 = vld [vmem:[%s4 + $0x10] sm:$0xff]
  %v1629 = vld [vmem:[%s4 + $0x18] sm:$0xff]
  %v1630 = vld [vmem:[%s4 + $0x20] sm:$0xff]
  %v1631 = vld [vmem:[%s4 + $0x28] sm:$0xff]
  %v1634 = vrot.slane %v1572, 4
  %v1635 = vrot.slane %v1575, 4
  %v1636 = vsel %vm1108, %v1634, %v1635
  %1637 = vrot.lane.b32.xlu0 %v1634, 120
  %v1638 = vpop.permute.xlu0 %1637
  %1639 = vrot.lane.b32.xlu0 %v1636, 120
  %v1640 = vpop.permute.xlu0 %1639
  %1642 = vrot.lane.b32.xlu0 %v1572, 112
  %v1643 = vpop.permute.xlu0 %1642
  %1644 = vrot.lane.b32.xlu0 %v1575, 112
  %v1645 = vpop.permute.xlu0 %1644
  %1647 = vrot.lane.b32.xlu0 %v1634, 104
  %v1648 = vpop.permute.xlu0 %1647
  %1649 = vrot.lane.b32.xlu0 %v1636, 104
  %v1650 = vpop.permute.xlu0 %1649
  %v1652 = vsel %vm1108, %v1575, %v1638
  %v1653 = vsel %vm1108, %v1645, %v1648
  %1656 = vrot.lane.b32.xlu0 %v1621, 120
  %v1657 = vpop.permute.xlu0 %1656
  %1658 = vrot.lane.b32.xlu0 %v1624, 120
  %v1659 = vpop.permute.xlu0 %1658
  %1660 = vrot.lane.b32.xlu0 %v1621, 112
  %v1661 = vpop.permute.xlu0 %1660
  %1662 = vrot.lane.b32.xlu0 %v1624, 112
  %v1663 = vpop.permute.xlu0 %1662
  %1664 = vrot.lane.b32.xlu0 %v1621, 104
  %v1665 = vpop.permute.xlu0 %1664
  %1666 = vrot.lane.b32.xlu0 %v1624, 104
  %v1667 = vpop.permute.xlu0 %1666
  %v1668 = vsel %vm357, %v1572, 0
  %v1671 = vsel %vm357, %v1652, 0
  %v1673 = vsel %vm357, %v1640, 0
  %v1675 = vsel %vm357, %v1643, 0
  %v1678 = vsel %vm357, %v1653, 0
  %v1680 = vsel %vm357, %v1650, 0
  %v1682 = vsel %vm357, %v1621, 0
  %v1684 = vsel %vm357, %v1624, 0
  %v1686 = vsel %vm357, %v1657, 0
  %v1688 = vsel %vm357, %v1659, 0
  %v1690 = vsel %vm357, %v1661, 0
  %v1692 = vsel %vm357, %v1663, 0
  %v1694 = vsel %vm357, %v1665, 0
  %v1696 = vsel %vm357, %v1667, 0
  %1698 = vmatpush.xpose.msra.mxu0 0.0
  %1699 = vmatpush.xpose.msra.mxu0 0.0
  %1700 = vmatpush.xpose.msra.mxu0 0.0
  %1701 = vmatpush.xpose.msra.mxu0 0.0
  %1702 = vmatpush.xpose.msra.mxu0 0.0
  %1703 = vmatpush.xpose.msra.mxu0 0.0
  %1704 = vmatpush.xpose.msra.mxu0 0.0
  %1705 = vmatpush.xpose.msra.mxu0 0.0
  %1706 = vmatpush.xpose.msra.mxu0 %v1696
  %1707 = vmatpush.xpose.msra.mxu0 %v1694
  %1708 = vmatpush.xpose.msra.mxu0 %v1692
  %1709 = vmatpush.xpose.msra.mxu0 %v1690
  %1710 = vmatpush.xpose.msra.mxu0 %v1688
  %1711 = vmatpush.xpose.msra.mxu0 %v1686
  %1712 = vmatpush.xpose.msra.mxu0 %v1684
  %1713 = vmatpush.xpose.msra.mxu0 %v1682
  %1714 = vmatmul.f32.gmra.mxu0 %v1668
  %v1715 = vpop.f32.mrf.mxu0
  %v1716 = vadd.f32 %v1626, %v1715
  %1717 = vmatmul.f32.gmra.mxu0 %v1671
  %v1718 = vpop.f32.mrf.mxu0
  %v1719 = vadd.f32 %v1627, %v1718
  %1720 = vmatmul.f32.gmra.mxu0 %v1673
  %v1721 = vpop.f32.mrf.mxu0
  %v1722 = vadd.f32 %v1628, %v1721
  %1723 = vmatmul.f32.gmra.mxu0 %v1675
  %v1724 = vpop.f32.mrf.mxu0
  %v1725 = vadd.f32 %v1629, %v1724
  %1726 = vmatmul.f32.gmra.mxu0 %v1678
  %v1727 = vpop.f32.mrf.mxu0
  %v1728 = vadd.f32 %v1630, %v1727
  %1729 = vmatmul.f32.gmra.mxu0 %v1680
  %v1730 = vpop.f32.mrf.mxu0
  %v1731 = vadd.f32 %v1631, %v1730
  %1732 = vdwg.mxu0
  %v1733 = vsel %vm431, %v1716, -inf
  %1734 = vmax.xlane.f32.xlu0 %v1733
  %v1735 = vpop.xlane.xlu0 %1734
  %v1736 = vsel %vm431, %v1719, -inf
  %1737 = vmax.xlane.f32.xlu0 %v1736
  %v1738 = vpop.xlane.xlu0 %1737
  %v1739 = vsel %vm431, %v1722, -inf
  %1740 = vmax.xlane.f32.xlu0 %v1739
  %v1741 = vpop.xlane.xlu0 %1740
  %v1742 = vsel %vm431, %v1725, -inf
  %1743 = vmax.xlane.f32.xlu0 %v1742
  %v1744 = vpop.xlane.xlu0 %1743
  %v1745 = vsel %vm431, %v1728, -inf
  %1746 = vmax.xlane.f32.xlu0 %v1745
  %v1747 = vpop.xlane.xlu0 %1746
  %v1748 = vsel %vm431, %v1731, -inf
  %1749 = vmax.xlane.f32.xlu0 %v1748
  %v1750 = vpop.xlane.xlu0 %1749
  %v1751 = vsub.f32 %v1716, %v1735
  %v1752 = vsub.f32 %v1719, %v1738
  %v1753 = vsub.f32 %v1722, %v1741
  %v1754 = vsub.f32 %v1725, %v1744
  %v1755 = vsub.f32 %v1728, %v1747
  %v1756 = vsub.f32 %v1731, %v1750
  %v1757 = vmul.f32 %v1751, 1.442695
  %v1758 = vpow.pop %v1757
  %v1759 = vmul.f32 %v1752, 1.442695
  %v1760 = vpow.pop %v1759
  %v1761 = vmul.f32 %v1753, 1.442695
  %v1762 = vpow.pop %v1761
  %v1763 = vmul.f32 %v1754, 1.442695
  %v1764 = vpow.pop %v1763
  %v1765 = vmul.f32 %v1755, 1.442695
  %v1766 = vpow.pop %v1765
  %v1767 = vmul.f32 %v1756, 1.442695
  %v1768 = vpow.pop %v1767
  %v1769 = vsel %vm431, %v1758, 0.0
  %1770 = vadd.xlane.f32.xlu0 %v1769
  %v1771 = vpop.xlane.xlu0 %1770
  %v1772 = vsel %vm431, %v1760, 0.0
  %1773 = vadd.xlane.f32.xlu0 %v1772
  %v1774 = vpop.xlane.xlu0 %1773
  %v1775 = vsel %vm431, %v1762, 0.0
  %1776 = vadd.xlane.f32.xlu0 %v1775
  %v1777 = vpop.xlane.xlu0 %1776
  %v1778 = vsel %vm431, %v1764, 0.0
  %1779 = vadd.xlane.f32.xlu0 %v1778
  %v1780 = vpop.xlane.xlu0 %1779
  %v1781 = vsel %vm431, %v1766, 0.0
  %1782 = vadd.xlane.f32.xlu0 %v1781
  %v1783 = vpop.xlane.xlu0 %1782
  %v1784 = vsel %vm431, %v1768, 0.0
  %1785 = vadd.xlane.f32.xlu0 %v1784
  %v1786 = vpop.xlane.xlu0 %1785
  %v1787 = vrcp.pop %v1771
  %v1788 = vmul.f32 %v1771, %v1787
  %v1789 = vsub.f32 1.0, %v1788
  %v1790 = vmul.f32 %v1787, %v1789
  %v1791 = vadd.f32 %v1787, %v1790
  %vm1792 = vweird.f32 %v1771
  %vm1793 = vweird.f32 %v1787
  %vm1794 = vmor %vm1792, %vm1793
  %v1795 = vsel %vm1794, %v1787, %v1791
  %v1796 = vand.u32 2147483647, %v1771
  %vm1797 = vcmp.eq.f32.partialorder %v1796, 8.507059e+37
  %v1798 = vand.u32 %v1771, 2147483648
  %v1799 = vor.u32 1.1754944e-38, %v1798
  %v1800 = vsel %vm1797, %v1799, %v1795
  %v1801 = vmul.f32 %v1758, %v1800
  %v1802 = vrcp.pop %v1774
  %v1803 = vmul.f32 %v1774, %v1802
  %v1804 = vsub.f32 1.0, %v1803
  %v1805 = vmul.f32 %v1802, %v1804
  %v1806 = vadd.f32 %v1802, %v1805
  %vm1807 = vweird.f32 %v1774
  %vm1808 = vweird.f32 %v1802
  %vm1809 = vmor %vm1807, %vm1808
  %v1810 = vsel %vm1809, %v1802, %v1806
  %v1811 = vand.u32 2147483647, %v1774
  %vm1812 = vcmp.eq.f32.partialorder %v1811, 8.507059e+37
  %v1813 = vand.u32 %v1774, 2147483648
  %v1814 = vor.u32 1.1754944e-38, %v1813
  %v1815 = vsel %vm1812, %v1814, %v1810
  %v1816 = vmul.f32 %v1760, %v1815
  %v1817 = vrcp.pop %v1777
  %v1818 = vmul.f32 %v1777, %v1817
  %v1819 = vsub.f32 1.0, %v1818
  %v1820 = vmul.f32 %v1817, %v1819
  %v1821 = vadd.f32 %v1817, %v1820
  %vm1822 = vweird.f32 %v1777
  %vm1823 = vweird.f32 %v1817
  %vm1824 = vmor %vm1822, %vm1823
  %v1825 = vsel %vm1824, %v1817, %v1821
  %v1826 = vand.u32 2147483647, %v1777
  %vm1827 = vcmp.eq.f32.partialorder %v1826, 8.507059e+37
  %v1828 = vand.u32 %v1777, 2147483648
  %v1829 = vor.u32 1.1754944e-38, %v1828
  %v1830 = vsel %vm1827, %v1829, %v1825
  %v1831 = vmul.f32 %v1762, %v1830
  %v1832 = vrcp.pop %v1780
  %v1833 = vmul.f32 %v1780, %v1832
  %v1834 = vsub.f32 1.0, %v1833
  %v1835 = vmul.f32 %v1832, %v1834
  %v1836 = vadd.f32 %v1832, %v1835
  %vm1837 = vweird.f32 %v1780
  %vm1838 = vweird.f32 %v1832
  %vm1839 = vmor %vm1837, %vm1838
  %v1840 = vsel %vm1839, %v1832, %v1836
  %v1841 = vand.u32 2147483647, %v1780
  %vm1842 = vcmp.eq.f32.partialorder %v1841, 8.507059e+37
  %v1843 = vand.u32 %v1780, 2147483648
  %v1844 = vor.u32 1.1754944e-38, %v1843
  %v1845 = vsel %vm1842, %v1844, %v1840
  %v1846 = vmul.f32 %v1764, %v1845
  %v1847 = vrcp.pop %v1783
  %v1848 = vmul.f32 %v1783, %v1847
  %v1849 = vsub.f32 1.0, %v1848
  %v1850 = vmul.f32 %v1847, %v1849
  %v1851 = vadd.f32 %v1847, %v1850
  %vm1852 = vweird.f32 %v1783
  %vm1853 = vweird.f32 %v1847
  %vm1854 = vmor %vm1852, %vm1853
  %v1855 = vsel %vm1854, %v1847, %v1851
  %v1856 = vand.u32 2147483647, %v1783
  %vm1857 = vcmp.eq.f32.partialorder %v1856, 8.507059e+37
  %v1858 = vand.u32 %v1783, 2147483648
  %v1859 = vor.u32 1.1754944e-38, %v1858
  %v1860 = vsel %vm1857, %v1859, %v1855
  %v1861 = vmul.f32 %v1766, %v1860
  %v1862 = vrcp.pop %v1786
  %v1863 = vmul.f32 %v1786, %v1862
  %v1864 = vsub.f32 1.0, %v1863
  %v1865 = vmul.f32 %v1862, %v1864
  %v1866 = vadd.f32 %v1862, %v1865
  %vm1867 = vweird.f32 %v1786
  %vm1868 = vweird.f32 %v1862
  %vm1869 = vmor %vm1867, %vm1868
  %v1870 = vsel %vm1869, %v1862, %v1866
  %v1871 = vand.u32 2147483647, %v1786
  %vm1872 = vcmp.eq.f32.partialorder %v1871, 8.507059e+37
  %v1873 = vand.u32 %v1786, 2147483648
  %v1874 = vor.u32 1.1754944e-38, %v1873
  %v1875 = vsel %vm1872, %v1874, %v1870
  %v1876 = vmul.f32 %v1768, %v1875
  %1877 = vrot.lane.b32.xlu0 %v1621, 96
  %v1878 = vpop.permute.xlu0 %1877
  %1879 = vrot.lane.b32.xlu0 %v1624, 96
  %v1880 = vpop.permute.xlu0 %1879
  %1881 = vrot.lane.b32.xlu0 %v1657, 96
  %v1882 = vpop.permute.xlu0 %1881
  %1883 = vrot.lane.b32.xlu0 %v1659, 96
  %v1884 = vpop.permute.xlu0 %1883
  %1885 = vrot.lane.b32.xlu0 %v1661, 96
  %v1886 = vpop.permute.xlu0 %1885
  %1887 = vrot.lane.b32.xlu0 %v1663, 96
  %v1888 = vpop.permute.xlu0 %1887
  %1889 = vrot.lane.b32.xlu0 %v1665, 96
  %v1890 = vpop.permute.xlu0 %1889
  %1891 = vrot.lane.b32.xlu0 %v1667, 96
  %v1892 = vpop.permute.xlu0 %1891
  %v1902 = vsel %vm431, %v1801, 0
  %v1905 = vsel %vm431, %v1816, 0
  %v1908 = vsel %vm431, %v1831, 0
  %v1911 = vsel %vm431, %v1846, 0
  %v1914 = vsel %vm431, %v1861, 0
  %v1917 = vsel %vm431, %v1876, 0
  %1919 = vmatpush.msra.mxu0 0.0
  %1920 = vmatpush.msra.mxu0 0.0
  %1921 = vmatpush.msra.mxu0 0.0
  %1922 = vmatpush.msra.mxu0 0.0
  %1923 = vmatpush.msra.mxu0 0.0
  %1924 = vmatpush.msra.mxu0 0.0
  %1925 = vmatpush.msra.mxu0 0.0
  %1926 = vmatpush.msra.mxu0 0.0
  %1927 = vmatpush.msra.mxu0 %v1892
  %1928 = vmatpush.msra.mxu0 %v1890
  %1929 = vmatpush.msra.mxu0 %v1888
  %1930 = vmatpush.msra.mxu0 %v1886
  %1931 = vmatpush.msra.mxu0 %v1884
  %1932 = vmatpush.msra.mxu0 %v1882
  %1933 = vmatpush.msra.mxu0 %v1880
  %1934 = vmatpush.msra.mxu0 %v1878
  %1935 = vmatmul.f32.gmra.mxu0 %v1902
  %v1936 = vpop.f32.mrf.mxu0
  %v1937 = vadd.f32 0.0, %v1936
  %1938 = vmatmul.f32.gmra.mxu0 %v1905
  %v1939 = vpop.f32.mrf.mxu0
  %v1940 = vadd.f32 0.0, %v1939
  %1941 = vmatmul.f32.gmra.mxu0 %v1908
  %v1942 = vpop.f32.mrf.mxu0
  %v1943 = vadd.f32 0.0, %v1942
  %1944 = vmatmul.f32.gmra.mxu0 %v1911
  %v1945 = vpop.f32.mrf.mxu0
  %v1946 = vadd.f32 0.0, %v1945
  %1947 = vmatmul.f32.gmra.mxu0 %v1914
  %v1948 = vpop.f32.mrf.mxu0
  %v1949 = vadd.f32 0.0, %v1948
  %1950 = vmatmul.f32.gmra.mxu0 %v1917
  %v1951 = vpop.f32.mrf.mxu0
  %v1952 = vadd.f32 0.0, %v1951
  %1953 = vdwg.mxu0
  %v1956 = vrot.slane %v1940, 4
  %v1957 = vrot.slane %v1943, 4
  %v1958 = vsel %vm1108, %v1956, %v1957
  %1959 = vrot.lane.b32.xlu0 %v1958, 8
  %v1960 = vpop.permute.xlu0 %1959
  %1961 = vrot.lane.b32.xlu0 %v1957, 8
  %v1962 = vpop.permute.xlu0 %1961
  %1967 = vrot.lane.b32.xlu0 %v1946, 16
  %v1968 = vpop.permute.xlu0 %1967
  %1969 = vrot.lane.b32.xlu0 %v1949, 16
  %v1970 = vpop.permute.xlu0 %1969
  %v1974 = vrot.slane %v1949, 4
  %v1975 = vrot.slane %v1952, 4
  %v1976 = vsel %vm1108, %v1974, %v1975
  %1977 = vrot.lane.b32.xlu0 %v1976, 24
  %v1978 = vpop.permute.xlu0 %1977
  %1979 = vrot.lane.b32.xlu0 %v1975, 24
  %v1980 = vpop.permute.xlu0 %1979
  %v1983 = vsel %vm357, %v1937, %v1960
  %v1984 = vsel %vm357, %v1940, %v1962
  %v1985 = vsel %vm87, %v1983, %v1968
  %v1986 = vsel %vm87, %v1984, %v1970
  %v1987 = vsel %vm741, %v1985, %v1978
  %v1988 = vsel %vm741, %v1986, %v1980
  %v1989 = vld [vmem:[%s5 + $0x160] sm:$0xff]
  %v1990 = vld [vmem:[%s5 + $0x168] sm:$0xff]
  %v1991 = vld [vmem:[%s5 + $0x170] sm:$0xff]
  %v1992 = vld [vmem:[%s5 + $0x178] sm:$0xff]
  %v1993 = vld [vmem:[%s6 + $0xf] sm:$0x1]
  %v1994 = vperm.slane %v1993, 0
  %v1996 = vsel %vm189, %v1987, 0
  %v1999 = vsel %vm189, %v1988, 0
  %2001 = vmatpush.msra.mxu0 0.0
  %2002 = vmatpush.msra.mxu0 0.0
  %2003 = vmatpush.msra.mxu0 0.0
  %2004 = vmatpush.msra.mxu0 0.0
  %2005 = vmatpush.msra.mxu0 0.0
  %2006 = vmatpush.msra.mxu0 0.0
  %2007 = vmatpush.msra.mxu0 0.0
  %2008 = vmatpush.msra.mxu0 0.0
  %2009 = vmatpush.msra.mxu0 0.0
  %2010 = vmatpush.msra.mxu0 0.0
  %2011 = vmatpush.msra.mxu0 0.0
  %2012 = vmatpush.msra.mxu0 0.0
  %2013 = vmatpush.msra.mxu0 %v1992
  %2014 = vmatpush.msra.mxu0 %v1991
  %2015 = vmatpush.msra.mxu0 %v1990
  %2016 = vmatpush.msra.mxu0 %v1989
  %2017 = vmatmul.f32.gmra.mxu0 %v1996
  %v2018 = vpop.f32.mrf.mxu0
  %v2019 = vadd.f32 %v1994, %v2018
  %2020 = vmatmul.f32.gmra.mxu0 %v1999
  %v2021 = vpop.f32.mrf.mxu0
  %v2022 = vadd.f32 %v1994, %v2021
  %2023 = vdwg.mxu0
  %v2024 = vadd.f32 %v1488, %v2019
  %v2025 = vadd.f32 %v1489, %v2022
  %v2026 = vsel %vm189, %v2024, 0.0
  %2027 = vadd.xlane.f32.xlu0 %v2026
  %v2028 = vpop.xlane.xlu0 %2027
  %v2029 = vsel %vm1015, %v2025, 0.0
  %2030 = vadd.xlane.f32.xlu0 %v2029
  %v2031 = vpop.xlane.xlu0 %2030
  %v2032 = vmul.f32 %v2028, %v237
  %v2033 = vmul.f32 %v2031, %v237
  %v2034 = vsub.f32 %v2024, %v2032
  %v2035 = vsub.f32 %v2025, %v2033
  %v2036 = vmul.f32 %v2034, %v2034
  %v2037 = vmul.f32 %v2035, %v2035
  %v2038 = vsel %vm189, %v2036, 0.0
  %2039 = vadd.xlane.f32.xlu0 %v2038
  %v2040 = vpop.xlane.xlu0 %2039
  %v2041 = vsel %vm1015, %v2037, 0.0
  %2042 = vadd.xlane.f32.xlu0 %v2041
  %v2043 = vpop.xlane.xlu0 %2042
  %v2044 = vmul.f32 %v2040, %v237
  %v2045 = vmul.f32 %v2043, %v237
  %v2046 = vadd.f32 %v2044, 1e-06
  %v2047 = vadd.f32 %v2045, 1e-06
  %v2048 = vrsqrt.pop %v2046
  %v2049 = vmul.f32 %v2048, %v2046
  %v2050 = vmul.f32 %v2049, %v2048
  %v2051 = vmul.f32 0.5, %v2050
  %v2052 = vsub.f32 1.5, %v2051
  %v2053 = vmul.f32 %v2048, %v2052
  %vm2054 = vweird.f32 %v2046
  %vm2055 = vweird.f32 %v2048
  %vm2056 = vmor %vm2054, %vm2055
  %v2057 = vsel %vm2056, %v2048, %v2053
  %v2058 = vrsqrt.pop %v2047
  %v2059 = vmul.f32 %v2058, %v2047
  %v2060 = vmul.f32 %v2059, %v2058
  %v2061 = vmul.f32 0.5, %v2060
  %v2062 = vsub.f32 1.5, %v2061
  %v2063 = vmul.f32 %v2058, %v2062
  %vm2064 = vweird.f32 %v2047
  %vm2065 = vweird.f32 %v2058
  %vm2066 = vmor %vm2064, %vm2065
  %v2067 = vsel %vm2066, %v2058, %v2063
  %v2068 = vmul.f32 %v2034, %v2057
  %v2069 = vmul.f32 %v2035, %v2067
  %v2070 = vld [vmem:[%s6 + $0x14] sm:$0x1]
  %v2071 = vperm.slane %v2070, 0
  %v2072 = vmul.f32 %v2068, %v2071
  %v2073 = vmul.f32 %v2069, %v2071
  %v2074 = vld [vmem:[%s6 + $0x15] sm:$0x1]
  %v2075 = vperm.slane %v2074, 0
  %v2076 = vadd.f32 %v2072, %v2075
  %v2077 = vadd.f32 %v2073, %v2075
  %v2078 = vld [vmem:[%s5 + $0x180] sm:$0xff]
  %v2079 = vld [vmem:[%s5 + $0x188] sm:$0xff]
  %v2080 = vld [vmem:[%s5 + $0x190] sm:$0xff]
  %v2081 = vld [vmem:[%s5 + $0x198] sm:$0xff]
  %v2082 = vld [vmem:[%s6 + $0x18] sm:$0x1]
  %v2083 = vperm.slane %v2082, 0
  %v2085 = vsel %vm189, %v2076, 0
  %v2088 = vsel %vm189, %v2077, 0
  %2090 = vmatpush.msra.mxu0 0.0
  %2091 = vmatpush.msra.mxu0 0.0
  %2092 = vmatpush.msra.mxu0 0.0
  %2093 = vmatpush.msra.mxu0 0.0
  %2094 = vmatpush.msra.mxu0 0.0
  %2095 = vmatpush.msra.mxu0 0.0
  %2096 = vmatpush.msra.mxu0 0.0
  %2097 = vmatpush.msra.mxu0 0.0
  %2098 = vmatpush.msra.mxu0 0.0
  %2099 = vmatpush.msra.mxu0 0.0
  %2100 = vmatpush.msra.mxu0 0.0
  %2101 = vmatpush.msra.mxu0 0.0
  %2102 = vmatpush.msra.mxu0 %v2081
  %2103 = vmatpush.msra.mxu0 %v2080
  %2104 = vmatpush.msra.mxu0 %v2079
  %2105 = vmatpush.msra.mxu0 %v2078
  %2106 = vmatmul.f32.gmra.mxu0 %v2085
  %v2107 = vpop.f32.mrf.mxu0
  %v2108 = vadd.f32 %v2083, %v2107
  %2109 = vmatmul.f32.gmra.mxu0 %v2088
  %v2110 = vpop.f32.mrf.mxu0
  %v2111 = vadd.f32 %v2083, %v2110
  %2112 = vdwg.mxu0
  %v2113 = vmax.f32 %v2108, 0.0
  %v2114 = vmax.f32 %v2111, 0.0
  %v2115 = vld [vmem:[%s5 + $0x1a0] sm:$0xff]
  %v2116 = vld [vmem:[%s5 + $0x1a8] sm:$0xff]
  %v2117 = vld [vmem:[%s5 + $0x1b0] sm:$0xff]
  %v2118 = vld [vmem:[%s5 + $0x1b8] sm:$0xff]
  %v2119 = vld [vmem:[%s5 + $0x1c0] sm:$0xff]
  %v2120 = vld [vmem:[%s5 + $0x1c8] sm:$0xff]
  %v2121 = vld [vmem:[%s5 + $0x1d0] sm:$0xff]
  %v2122 = vld [vmem:[%s5 + $0x1d8] sm:$0xff]
  %v2123 = vld [vmem:[%s6 + $0x19] sm:$0x1]
  %v2124 = vperm.slane %v2123, 0
  %v2126 = vsel %vm431, %v2113, 0
  %v2129 = vsel %vm431, %v2114, 0
  %2131 = vmatpush.msra.mxu0 0.0
  %2132 = vmatpush.msra.mxu0 0.0
  %2133 = vmatpush.msra.mxu0 0.0
  %2134 = vmatpush.msra.mxu0 0.0
  %2135 = vmatpush.msra.mxu0 0.0
  %2136 = vmatpush.msra.mxu0 0.0
  %2137 = vmatpush.msra.mxu0 0.0
  %2138 = vmatpush.msra.mxu0 0.0
  %2139 = vmatpush.msra.mxu0 %v2122
  %2140 = vmatpush.msra.mxu0 %v2121
  %2141 = vmatpush.msra.mxu0 %v2120
  %2142 = vmatpush.msra.mxu0 %v2119
  %2143 = vmatpush.msra.mxu0 %v2118
  %2144 = vmatpush.msra.mxu0 %v2117
  %2145 = vmatpush.msra.mxu0 %v2116
  %2146 = vmatpush.msra.mxu0 %v2115
  %2147 = vmatmul.f32.gmra.mxu0 %v2126
  %v2148 = vpop.f32.mrf.mxu0
  %v2149 = vadd.f32 %v2124, %v2148
  %2150 = vmatmul.f32.gmra.mxu0 %v2129
  %v2151 = vpop.f32.mrf.mxu0
  %v2152 = vadd.f32 %v2124, %v2151
  %2153 = vdwg.mxu0
  %v2154 = vadd.f32 %v2024, %v2149
  %v2155 = vadd.f32 %v2025, %v2152
  %v2156 = vsel %vm189, %v2154, 0.0
  %2157 = vadd.xlane.f32.xlu0 %v2156
  %v2158 = vpop.xlane.xlu0 %2157
  %v2159 = vsel %vm1015, %v2155, 0.0
  %2160 = vadd.xlane.f32.xlu0 %v2159
  %v2161 = vpop.xlane.xlu0 %2160
  %v2162 = vmul.f32 %v2158, %v237
  %v2163 = vmul.f32 %v2161, %v237
  %v2164 = vsub.f32 %v2154, %v2162
  %v2165 = vsub.f32 %v2155, %v2163
  %v2166 = vmul.f32 %v2164, %v2164
  %v2167 = vmul.f32 %v2165, %v2165
  %v2168 = vsel %vm189, %v2166, 0.0
  %2169 = vadd.xlane.f32.xlu0 %v2168
  %v2170 = vpop.xlane.xlu0 %2169
  %v2171 = vsel %vm1015, %v2167, 0.0
  %2172 = vadd.xlane.f32.xlu0 %v2171
  %v2173 = vpop.xlane.xlu0 %2172
  %v2174 = vmul.f32 %v2170, %v237
  %v2175 = vmul.f32 %v2173, %v237
  %v2176 = vadd.f32 %v2174, 1e-06
  %v2177 = vadd.f32 %v2175, 1e-06
  %v2178 = vrsqrt.pop %v2176
  %v2179 = vmul.f32 %v2178, %v2176
  %v2180 = vmul.f32 %v2179, %v2178
  %v2181 = vmul.f32 0.5, %v2180
  %v2182 = vsub.f32 1.5, %v2181
  %v2183 = vmul.f32 %v2178, %v2182
  %vm2184 = vweird.f32 %v2176
  %vm2185 = vweird.f32 %v2178
  %vm2186 = vmor %vm2184, %vm2185
  %v2187 = vsel %vm2186, %v2178, %v2183
  %v2188 = vrsqrt.pop %v2177
  %v2189 = vmul.f32 %v2188, %v2177
  %v2190 = vmul.f32 %v2189, %v2188
  %v2191 = vmul.f32 0.5, %v2190
  %v2192 = vsub.f32 1.5, %v2191
  %v2193 = vmul.f32 %v2188, %v2192
  %vm2194 = vweird.f32 %v2177
  %vm2195 = vweird.f32 %v2188
  %vm2196 = vmor %vm2194, %vm2195
  %v2197 = vsel %vm2196, %v2188, %v2193
  %v2198 = vmul.f32 %v2164, %v2187
  %v2199 = vmul.f32 %v2165, %v2197
  %v2200 = vld [vmem:[%s6 + $0x16] sm:$0x1]
  %v2201 = vperm.slane %v2200, 0
  %v2202 = vmul.f32 %v2198, %v2201
  %v2203 = vmul.f32 %v2199, %v2201
  %v2204 = vld [vmem:[%s6 + $0x17] sm:$0x1]
  %v2205 = vperm.slane %v2204, 0
  %v2206 = vadd.f32 %v2202, %v2205
  %v2207 = vadd.f32 %v2203, %v2205
  %v2208 = vld [vmem:[%s5 + $0x1e0] sm:$0xff]
  %v2209 = vld [vmem:[%s5 + $0x1e8] sm:$0xff]
  %v2210 = vld [vmem:[%s5 + $0x1f0] sm:$0xff]
  %v2211 = vld [vmem:[%s5 + $0x1f8] sm:$0xff]
  %v2212 = vld [vmem:[%s6 + $0x1a] sm:$0x1]
  %v2213 = vperm.slane %v2212, 0
  %v2215 = vsel %vm189, %v2206, 0
  %v2218 = vsel %vm189, %v2207, 0
  %2220 = vmatpush.msra.mxu0 0.0
  %2221 = vmatpush.msra.mxu0 0.0
  %2222 = vmatpush.msra.mxu0 0.0
  %2223 = vmatpush.msra.mxu0 0.0
  %2224 = vmatpush.msra.mxu0 0.0
  %2225 = vmatpush.msra.mxu0 0.0
  %2226 = vmatpush.msra.mxu0 0.0
  %2227 = vmatpush.msra.mxu0 0.0
  %2228 = vmatpush.msra.mxu0 0.0
  %2229 = vmatpush.msra.mxu0 0.0
  %2230 = vmatpush.msra.mxu0 0.0
  %2231 = vmatpush.msra.mxu0 0.0
  %2232 = vmatpush.msra.mxu0 %v2211
  %2233 = vmatpush.msra.mxu0 %v2210
  %2234 = vmatpush.msra.mxu0 %v2209
  %2235 = vmatpush.msra.mxu0 %v2208
  %2236 = vmatmul.f32.gmra.mxu0 %v2215
  %v2237 = vpop.f32.mrf.mxu0
  %v2238 = vadd.f32 %v2213, %v2237
  %2239 = vmatmul.f32.gmra.mxu0 %v2218
  %v2240 = vpop.f32.mrf.mxu0
  %v2241 = vadd.f32 %v2213, %v2240
  %2242 = vdwg.mxu0
  %2243 = vst [vmem:[%s7] sm:$0xff] %v2238
  %2244 = vst [vmem:[%s7 + $0x8] sm:$0xf] %v2241
  // Predicated region
  $region30: #{forward.1} parent=0 // pred_check
    _
  $region31: #{forward.1} parent=0 // pred_check_branch
    %2246 = sbr.rel (0) target = $region33
  $region32: #{forward.1} parent=0 // pred_region
    _
  $region33: #{forward.1} parent=0 // pred_fallthru
    _
  // Predicated region
  $region34: #{forward.1} parent=0 // pred_check
    _
  $region35: #{forward.1} parent=0 // pred_check_branch
    %2248 = sbr.rel (0) target = $region37
  $region36: #{forward.1} parent=0 // pred_region
    _
  $region37: #{forward.1} parent=0 // pred_fallthru
    _

</llo_original>
